<compile_context>
chip_gen: v7x
topology: tpu7x:2x2x1
jax: 0.10.0
libtpu: 0.0.40
codegen_flags: <defaults>
</compile_context>

<pallas_src>
import functools

import jax
import jax.numpy as jnp
import numpy as np
from jax import lax
from jax.experimental import pallas as pl
from jax.experimental.pallas import tpu as pltpu


def _prelu(v, alpha):
    return jnp.where(v >= 0.0, v, alpha * v)


# ---------------------------------------------------------------------------
# Fused Pallas kernel: the entire HeadBlock for one batch element per grid step
# ---------------------------------------------------------------------------
def _head_block_kernel(x_ref, w0_ref, w3_ref, w1_ref, b_ref, a_ref, o_ref,
                       ph_ref, bpad_ref, col_ref, *, H, W, chan):
    """
    x_ref : (1, 4, H//2+2, W//2+2, 1)  stride-2 phases of the pad-2 1-channel input
    w0_ref: (9, chan)                  stem taps, BN scale folded
    w3_ref: (3, 9*chan, chan)          dense grouped 3x3 slabs [b1_0, b1_2, b2_0]
    w1_ref: (3, chan, chan)            1x1 weights, BN scale folded [b1_1, b1_3, b2_1]
    b_ref : (4, chan)                  biases [stem, b1_1, b1_3, b2_1]
    a_ref : (3, chan)                  PReLU alphas [stem, b1_1, head]
    o_ref : (1, H//2, W//2, chan)
    scratch:
      ph_ref  : (4, H//2+1, W//2+1, chan)  space-to-depth of zero-padded stem output
      bpad_ref: (H//2+2, W//2+2, chan)     zero-padded bran1 intermediate
      col_ref : (H//2 * W//2, 9*chan)      im2col staging (reused for both 3x3 stages)
    """
    Ho, Wo = H // 2, W // 2
    rows = Ho * Wo
    f32 = jnp.float32

    w0 = w0_ref[...]          # (9, chan)
    bias = b_ref[...]         # (4, chan)
    alpha = a_ref[...]        # (3, chan)

    def prelu(v, idx):
        al = alpha[idx:idx + 1, :]          # (1, chan), broadcasts over rows
        return jnp.where(v >= 0.0, v, v * al)

    # ---- stem: 3x3 s1 p1 (Cin=1) + folded BN + PReLU --------------------------
    # Computed per output phase and written straight into the zero-padded
    # space-to-depth scratch that feeds both stride-2 branch convs:
    #   ph[2a+b, i, j, :] == ypad[2i+a, 2j+b, :]   (ypad = zero-pad(stem_out, 1))
    ph_ref[...] = jnp.zeros_like(ph_ref)
    for pa in (0, 1):
        for pb in (0, 1):
            i0, j0 = 1 - pa, 1 - pb          # interior offset for this phase
            acc = jnp.zeros((rows, chan), f32)
            for kh in range(3):
                for kw in range(3):
                    p = ((pa + kh) % 2) * 2 + ((pb + kw) % 2)
                    r0 = i0 + (pa + kh) // 2
                    c0 = j0 + (pb + kw) // 2
                    patch = x_ref[0, p, r0:r0 + Ho, c0:c0 + Wo, :].reshape(rows, 1)
                    acc = acc + patch * w0[kh * 3 + kw:kh * 3 + kw + 1, :]
            y = prelu(acc + bias[0:1, :], 0)
            ph_ref[pa * 2 + pb, i0:i0 + Ho, j0:j0 + Wo, :] = y.reshape(Ho, Wo, chan)

    # ---- shared stride-2 im2col staged in VMEM: (rows, 9*chan) ----------------
    for kh in range(3):
        for kw in range(3):
            p = (kh % 2) * 2 + (kw % 2)
            dh, dw = kh // 2, kw // 2
            t = kh * 3 + kw
            col_ref[:, t * chan:(t + 1) * chan] = (
                ph_ref[p, dh:dh + Ho, dw:dw + Wo, :].reshape(rows, chan))
    col_s2 = col_ref[...]                                   # (rows, 9*chan)

    # ---- bran2: grouped 3x3 s2 -> 1x1 + BN ------------------------------------
    b2 = jnp.dot(col_s2, w3_ref[2], preferred_element_type=f32)
    b2 = jnp.dot(b2, w1_ref[2], preferred_element_type=f32) + bias[3:4, :]

    # ---- bran1: grouped 3x3 s2 -> 1x1+BN+PReLU -> grouped 3x3 s1 -> 1x1+BN -----
    b1 = jnp.dot(col_s2, w3_ref[0], preferred_element_type=f32)
    b1 = jnp.dot(b1, w1_ref[0], preferred_element_type=f32) + bias[1:2, :]
    b1 = prelu(b1, 1)

    bpad_ref[...] = jnp.zeros_like(bpad_ref)
    bpad_ref[1:Ho + 1, 1:Wo + 1, :] = b1.reshape(Ho, Wo, chan)
    for kh in range(3):
        for kw in range(3):
            t = kh * 3 + kw
            col_ref[:, t * chan:(t + 1) * chan] = (
                bpad_ref[kh:kh + Ho, kw:kw + Wo, :].reshape(rows, chan))
    col_s1 = col_ref[...]                                   # (rows, 9*chan)

    b1 = jnp.dot(col_s1, w3_ref[1], preferred_element_type=f32)
    b1 = jnp.dot(b1, w1_ref[1], preferred_element_type=f32) + bias[2:3, :]

    # ---- residual add + head PReLU --------------------------------------------
    out = prelu(b1 + b2, 2)                                 # (rows, chan)
    o_ref[0] = out.reshape(Ho, Wo, chan).astype(o_ref.dtype)


# ---------------------------------------------------------------------------
# Forward wrapper (single pallas_call)
# ---------------------------------------------------------------------------
def head_block_pallas(x_nhwc, prep):
    """x_nhwc: (N, H, W, 1) float32 -> (N, H//2, W//2, chan) float32."""
    N, H, W, _ = x_nhwc.shape
    chan = prep["w0"].shape[1]
    Ho, Wo = H // 2, W // 2

    # tiny host glue on the raw 1-channel input: pad by 2 and split into the four
    # stride-2 phases so every in-kernel slice is unit-stride (a few KB total).
    x = x_nhwc[..., 0]
    xp = jnp.pad(x, ((0, 0), (2, 2), (2, 2)))
    xph = jnp.stack([xp[:, a::2, b::2] for a in (0, 1) for b in (0, 1)],
                    axis=1)[..., None]                      # (N, 4, Ho+2, Wo+2, 1)

    kern = functools.partial(_head_block_kernel, H=H, W=W, chan=chan)
    return pl.pallas_call(
        kern,
        out_shape=jax.ShapeDtypeStruct((N, Ho, Wo, chan), jnp.float32),
        grid=(N,),
        in_specs=[
            pl.BlockSpec((1, 4, Ho + 2, Wo + 2, 1), lambda n: (n, 0, 0, 0, 0)),
            pl.BlockSpec((9, chan), lambda n: (0, 0)),
            pl.BlockSpec((3, 9 * chan, chan), lambda n: (0, 0, 0)),
            pl.BlockSpec((3, chan, chan), lambda n: (0, 0, 0)),
            pl.BlockSpec((4, chan), lambda n: (0, 0)),
            pl.BlockSpec((3, chan), lambda n: (0, 0)),
        ],
        out_specs=pl.BlockSpec((1, Ho, Wo, chan), lambda n: (n, 0, 0, 0)),
        scratch_shapes=[
            pltpu.VMEM((4, Ho + 1, Wo + 1, chan), jnp.float32),
            pltpu.VMEM((Ho + 2, Wo + 2, chan), jnp.float32),
            pltpu.VMEM((Ho * Wo, 9 * chan), jnp.float32),
        ],
        compiler_params=pltpu.CompilerParams(dimension_semantics=("parallel",)),
    )(xph, prep["w0"], prep["w3"], prep["w1"], prep["bias"], prep["alpha"])


# ---------------------------------------------------------------------------
# One-time host-side parameter preparation (hoisted out of the forward pass)
# ---------------------------------------------------------------------------
def _grouped_oihw_to_dense_taps(w_oihw, groups):
    """(Cout, Cin//g, 3, 3) -> dense (9, Cin, Cout); off-group blocks are zero."""
    cout, cin_g, kh, kw = w_oihw.shape
    cin = cin_g * groups
    cout_g = cout // groups
    w_hwio = jnp.transpose(w_oihw, (2, 3, 1, 0))  # (kh, kw, Cin//g, Cout)
    dense = jnp.zeros((kh, kw, cin, cout), w_oihw.dtype)
    for g in range(groups):
        dense = dense.at[:, :, g * cin_g:(g + 1) * cin_g,
                         g * cout_g:(g + 1) * cout_g].set(
            w_hwio[:, :, :, g * cout_g:(g + 1) * cout_g])
    return dense.reshape(kh * kw, cin, cout)


def _fold_bn(gamma, beta, mean, var, eps=1e-5):
    scale = gamma / jnp.sqrt(var + eps)
    return scale, beta - mean * scale


def prepare_params(p):
    """OIHW -> matmul slabs, grouped densification, BN (eval) folding, alpha rows."""
    chan = p["w0"].shape[0]
    groups = p["groups"]

    def fold_1x1(w_oihw, stats):
        s, b = _fold_bn(*stats)
        w = jnp.transpose(w_oihw[:, :, 0, 0], (1, 0))       # (Cin, Cout)
        return w * s[None, :], b

    # stem 3x3 (Cin=1) with BN scale folded into the taps
    s0, b0 = _fold_bn(*p["bn0"])
    w0 = jnp.transpose(p["w0"][:, 0, :, :], (1, 2, 0)).reshape(9, chan) * s0[None, :]

    def slab(w_oihw):
        return _grouped_oihw_to_dense_taps(w_oihw, groups).reshape(9 * chan, chan)

    w11, bias11 = fold_1x1(p["wb1_1"], p["bn_b1_1"])
    w13, bias13 = fold_1x1(p["wb1_3"], p["bn_b1_3"])
    w21, bias21 = fold_1x1(p["wb2_1"], p["bn_b2_1"])

    full = lambda v: jnp.full((chan,), v, jnp.float32)
    return {
        "w0": w0,
        "w3": jnp.stack([slab(p["wb1_0"]), slab(p["wb1_2"]), slab(p["wb2_0"])]),
        "w1": jnp.stack([w11, w13, w21]),
        "bias": jnp.stack([b0, bias11, bias13, bias21]),
        "alpha": jnp.stack([full(p["alpha0"]), full(p["alpha1"]),
                            full(p["alpha_head"])]),
    }


def init_params(chan, group_size, key):
    groups = chan // group_size
    ks = jax.random.split(key, 8)

    def w(k, shape):
        return 0.2 * jax.random.normal(k, shape, jnp.float32)

    def bn(i):
        c = jnp.arange(chan, dtype=jnp.float32)
        gamma = 1.0 + 0.1 * jnp.sin(c + i)
        beta = 0.05 * jnp.cos(c + i)
        mean = 0.02 * jnp.sin(0.5 * c + i)
        var = 1.0 + 0.1 * jnp.cos(0.3 * c + i) ** 2
        return gamma, beta, mean, var

    return {
        "groups": groups,
        "w0": w(ks[0], (chan, 1, 3, 3)),
        "bn0": bn(0),
        "alpha0": 0.25,                         # nn.PReLU() scalar
        "wb1_0": w(ks[1], (chan, chan // groups, 3, 3)),
        "wb1_1": w(ks[2], (chan, chan, 1, 1)),
        "bn_b1_1": bn(1),
        "alpha1": 0.2,
        "wb1_2": w(ks[3], (chan, chan // groups, 3, 3)),
        "wb1_3": w(ks[4], (chan, chan, 1, 1)),
        "bn_b1_3": bn(2),
        "wb2_0": w(ks[5], (chan, chan // groups, 3, 3)),
        "wb2_1": w(ks[6], (chan, chan, 1, 1)),
        "bn_b2_1": bn(3),
        "alpha_head": 0.3,
    }


# ---------------------------------------------------------------------------
# Pure-JAX reference (for correctness check only)
# ---------------------------------------------------------------------------
def _conv_ref(x, w_oihw, stride, padding, groups):
    w_hwio = jnp.transpose(w_oihw, (2, 3, 1, 0))
    return lax.conv_general_dilated(
        x, w_hwio, window_strides=(stride, stride),
        padding=((padding, padding), (padding, padding)),
        dimension_numbers=("NHWC", "HWIO", "NHWC"),
        feature_group_count=groups,
        precision=lax.Precision.HIGHEST)


def head_block_ref(x, p):
    groups = p["groups"]

    def bn(v, stats):
        s, b = _fold_bn(*stats)
        return v * s + b

    y = _prelu(bn(_conv_ref(x, p["w0"], 1, 1, 1), p["bn0"]), p["alpha0"])

    b1 = _conv_ref(y, p["wb1_0"], 2, 1, groups)
    b1 = _prelu(bn(_conv_ref(b1, p["wb1_1"], 1, 0, 1), p["bn_b1_1"]), p["alpha1"])
    b1 = _conv_ref(b1, p["wb1_2"], 1, 1, groups)
    b1 = bn(_conv_ref(b1, p["wb1_3"], 1, 0, 1), p["bn_b1_3"])

    b2 = _conv_ref(y, p["wb2_0"], 2, 1, groups)
    b2 = bn(_conv_ref(b2, p["wb2_1"], 1, 0, 1), p["bn_b2_1"])

    return _prelu(b1 + b2, p["alpha_head"])


if __name__ == "__main__":
    N, H, W = 2, 16, 16
    chan, group_size = 32, 16          # HeadBlock(chan=32, group_size=16) -> groups=2
    key = jax.random.PRNGKey(0)
    kp, kx = jax.random.split(key)
    params = init_params(chan, group_size, kp)
    prep = prepare_params(params)      # hoisted: runs once, not per forward call

    # PyTorch HeadBlock consumes NCHW (N, 1, H, W); the kernel uses NHWC.
    x_nchw = jax.random.normal(kx, (N, 1, H, W), jnp.float32)
    x = jnp.transpose(x_nchw, (0, 2, 3, 1))

    fwd = jax.jit(head_block_pallas)
    out = jax.block_until_ready(fwd(x, prep))
    ref = jax.block_until_ready(head_block_ref(x, params))
    assert out.shape == (N, H // 2, W // 2, chan)
    np.testing.assert_allclose(np.asarray(out), np.asarray(ref), rtol=2e-2, atol=2e-2)
    print("KERNEL_OK")
</pallas_src>

<mosaic_0001>
module attributes {stable_mosaic.version = 11 : i64} {
  func.func @_head_block_kernel(%arg0: i32, %arg1: memref<1x4x10x10x1xf32, #tpu.memory_space<vmem>>, %arg2: memref<9x32xf32, #tpu.memory_space<vmem>>, %arg3: memref<3x288x32xf32, #tpu.memory_space<vmem>>, %arg4: memref<3x32x32xf32, #tpu.memory_space<vmem>>, %arg5: memref<4x32xf32, #tpu.memory_space<vmem>>, %arg6: memref<3x32xf32, #tpu.memory_space<vmem>>, %arg7: memref<1x8x8x32xf32, #tpu.memory_space<vmem>>, %arg8: memref<4x9x9x32xf32, #tpu.memory_space<vmem>>, %arg9: memref<10x10x32xf32, #tpu.memory_space<vmem>>, %arg10: memref<64x288xf32, #tpu.memory_space<vmem>>) attributes {dimension_semantics = [#tpu.dimension_semantics<parallel>], iteration_bounds = array<i64: 2>, scalar_prefetch = 0 : i64, scratch_operands = 3 : i64, tpu.core_type = #tpu.core_type<tc>, window_params = [{transform_indices = @transform_0, window_bounds = array<i64: 1, 4, 10, 10, 1>}, {pipeline_mode = #tpu.pipeline_mode<synchronous>, transform_indices = @transform_1, window_bounds = array<i64: 9, 32>}, {pipeline_mode = #tpu.pipeline_mode<synchronous>, transform_indices = @transform_2, window_bounds = array<i64: 3, 288, 32>}, {pipeline_mode = #tpu.pipeline_mode<synchronous>, transform_indices = @transform_3, window_bounds = array<i64: 3, 32, 32>}, {pipeline_mode = #tpu.pipeline_mode<synchronous>, transform_indices = @transform_4, window_bounds = array<i64: 4, 32>}, {pipeline_mode = #tpu.pipeline_mode<synchronous>, transform_indices = @transform_5, window_bounds = array<i64: 3, 32>}, {transform_indices = @transform_6, window_bounds = array<i64: 1, 8, 8, 32>}]} {
    %c0 = arith.constant 0 : index
    %c0_0 = arith.constant 0 : index
    %0 = vector.load %arg2[%c0, %c0_0] : memref<9x32xf32, #tpu.memory_space<vmem>>, vector<9x32xf32>
    %c0_1 = arith.constant 0 : index
    %c0_2 = arith.constant 0 : index
    %1 = vector.load %arg5[%c0_1, %c0_2] : memref<4x32xf32, #tpu.memory_space<vmem>>, vector<4x32xf32>
    %c0_3 = arith.constant 0 : index
    %c0_4 = arith.constant 0 : index
    %2 = vector.load %arg6[%c0_3, %c0_4] : memref<3x32xf32, #tpu.memory_space<vmem>>, vector<3x32xf32>
    %cst = arith.constant 0.000000e+00 : f32
    %3 = vector.broadcast %cst : f32 to vector<4x9x9x32xf32>
    %c0_5 = arith.constant 0 : index
    %c0_6 = arith.constant 0 : index
    %c0_7 = arith.constant 0 : index
    %c0_8 = arith.constant 0 : index
    %4 = vector.load %arg8[%c0_5, %c0_6, %c0_7, %c0_8] : memref<4x9x9x32xf32, #tpu.memory_space<vmem>>, vector<4x9x9x32xf32>
    tpu.vector_store %arg8[%c0_5, %c0_6, %c0_7, %c0_8], %3 {strides = array<i32>} : memref<4x9x9x32xf32, #tpu.memory_space<vmem>>, vector<4x9x9x32xf32>,
    %cst_9 = arith.constant 0.000000e+00 : f32
    %5 = vector.broadcast %cst_9 : f32 to vector<64x32xf32>
    %c0_10 = arith.constant 0 : index
    %c0_11 = arith.constant 0 : index
    %c1 = arith.constant 1 : index
    %c1_12 = arith.constant 1 : index
    %c0_13 = arith.constant 0 : index
    %6 = vector.load %arg1[%c0_10, %c0_11, %c1, %c1_12, %c0_13] : memref<1x4x10x10x1xf32, #tpu.memory_space<vmem>>, vector<1x1x8x8x1xf32>
    %7 = vector.shape_cast %6 : vector<1x1x8x8x1xf32> to vector<8x8x1xf32>
    %8 = vector.shape_cast %7 : vector<8x8x1xf32> to vector<64x1xf32>
    %9 = vector.extract_strided_slice %0 {offsets = [0, 0], sizes = [1, 32], strides = [1, 1]} : vector<9x32xf32> to vector<1x32xf32>
    %10 = vector.broadcast %8 : vector<64x1xf32> to vector<64x32xf32>
    %11 = vector.broadcast %9 : vector<1x32xf32> to vector<64x32xf32>
    %12 = arith.mulf %10, %11 : vector<64x32xf32>
    %13 = arith.addf %5, %12 : vector<64x32xf32>
    %c0_14 = arith.constant 0 : index
    %c1_15 = arith.constant 1 : index
    %c1_16 = arith.constant 1 : index
    %c1_17 = arith.constant 1 : index
    %c0_18 = arith.constant 0 : index
    %14 = vector.load %arg1[%c0_14, %c1_15, %c1_16, %c1_17, %c0_18] : memref<1x4x10x10x1xf32, #tpu.memory_space<vmem>>, vector<1x1x8x8x1xf32>
    %15 = vector.shape_cast %14 : vector<1x1x8x8x1xf32> to vector<8x8x1xf32>
    %16 = vector.shape_cast %15 : vector<8x8x1xf32> to vector<64x1xf32>
    %17 = vector.extract_strided_slice %0 {offsets = [1, 0], sizes = [1, 32], strides = [1, 1]} : vector<9x32xf32> to vector<1x32xf32>
    %18 = vector.broadcast %16 : vector<64x1xf32> to vector<64x32xf32>
    %19 = vector.broadcast %17 : vector<1x32xf32> to vector<64x32xf32>
    %20 = arith.mulf %18, %19 : vector<64x32xf32>
    %21 = arith.addf %13, %20 : vector<64x32xf32>
    %c0_19 = arith.constant 0 : index
    %c0_20 = arith.constant 0 : index
    %c1_21 = arith.constant 1 : index
    %c2 = arith.constant 2 : index
    %c0_22 = arith.constant 0 : index
    %22 = vector.load %arg1[%c0_19, %c0_20, %c1_21, %c2, %c0_22] : memref<1x4x10x10x1xf32, #tpu.memory_space<vmem>>, vector<1x1x8x8x1xf32>
    %23 = vector.shape_cast %22 : vector<1x1x8x8x1xf32> to vector<8x8x1xf32>
    %24 = vector.shape_cast %23 : vector<8x8x1xf32> to vector<64x1xf32>
    %25 = vector.extract_strided_slice %0 {offsets = [2, 0], sizes = [1, 32], strides = [1, 1]} : vector<9x32xf32> to vector<1x32xf32>
    %26 = vector.broadcast %24 : vector<64x1xf32> to vector<64x32xf32>
    %27 = vector.broadcast %25 : vector<1x32xf32> to vector<64x32xf32>
    %28 = arith.mulf %26, %27 : vector<64x32xf32>
    %29 = arith.addf %21, %28 : vector<64x32xf32>
    %c0_23 = arith.constant 0 : index
    %c2_24 = arith.constant 2 : index
    %c1_25 = arith.constant 1 : index
    %c1_26 = arith.constant 1 : index
    %c0_27 = arith.constant 0 : index
    %30 = vector.load %arg1[%c0_23, %c2_24, %c1_25, %c1_26, %c0_27] : memref<1x4x10x10x1xf32, #tpu.memory_space<vmem>>, vector<1x1x8x8x1xf32>
    %31 = vector.shape_cast %30 : vector<1x1x8x8x1xf32> to vector<8x8x1xf32>
    %32 = vector.shape_cast %31 : vector<8x8x1xf32> to vector<64x1xf32>
    %33 = vector.extract_strided_slice %0 {offsets = [3, 0], sizes = [1, 32], strides = [1, 1]} : vector<9x32xf32> to vector<1x32xf32>
    %34 = vector.broadcast %32 : vector<64x1xf32> to vector<64x32xf32>
    %35 = vector.broadcast %33 : vector<1x32xf32> to vector<64x32xf32>
    %36 = arith.mulf %34, %35 : vector<64x32xf32>
    %37 = arith.addf %29, %36 : vector<64x32xf32>
    %c0_28 = arith.constant 0 : index
    %c3 = arith.constant 3 : index
    %c1_29 = arith.constant 1 : index
    %c1_30 = arith.constant 1 : index
    %c0_31 = arith.constant 0 : index
    %38 = vector.load %arg1[%c0_28, %c3, %c1_29, %c1_30, %c0_31] : memref<1x4x10x10x1xf32, #tpu.memory_space<vmem>>, vector<1x1x8x8x1xf32>
    %39 = vector.shape_cast %38 : vector<1x1x8x8x1xf32> to vector<8x8x1xf32>
    %40 = vector.shape_cast %39 : vector<8x8x1xf32> to vector<64x1xf32>
    %41 = vector.extract_strided_slice %0 {offsets = [4, 0], sizes = [1, 32], strides = [1, 1]} : vector<9x32xf32> to vector<1x32xf32>
    %42 = vector.broadcast %40 : vector<64x1xf32> to vector<64x32xf32>
    %43 = vector.broadcast %41 : vector<1x32xf32> to vector<64x32xf32>
    %44 = arith.mulf %42, %43 : vector<64x32xf32>
    %45 = arith.addf %37, %44 : vector<64x32xf32>
    %c0_32 = arith.constant 0 : index
    %c2_33 = arith.constant 2 : index
    %c1_34 = arith.constant 1 : index
    %c2_35 = arith.constant 2 : index
    %c0_36 = arith.constant 0 : index
    %46 = vector.load %arg1[%c0_32, %c2_33, %c1_34, %c2_35, %c0_36] : memref<1x4x10x10x1xf32, #tpu.memory_space<vmem>>, vector<1x1x8x8x1xf32>
    %47 = vector.shape_cast %46 : vector<1x1x8x8x1xf32> to vector<8x8x1xf32>
    %48 = vector.shape_cast %47 : vector<8x8x1xf32> to vector<64x1xf32>
    %49 = vector.extract_strided_slice %0 {offsets = [5, 0], sizes = [1, 32], strides = [1, 1]} : vector<9x32xf32> to vector<1x32xf32>
    %50 = vector.broadcast %48 : vector<64x1xf32> to vector<64x32xf32>
    %51 = vector.broadcast %49 : vector<1x32xf32> to vector<64x32xf32>
    %52 = arith.mulf %50, %51 : vector<64x32xf32>
    %53 = arith.addf %45, %52 : vector<64x32xf32>
    %c0_37 = arith.constant 0 : index
    %c0_38 = arith.constant 0 : index
    %c2_39 = arith.constant 2 : index
    %c1_40 = arith.constant 1 : index
    %c0_41 = arith.constant 0 : index
    %54 = vector.load %arg1[%c0_37, %c0_38, %c2_39, %c1_40, %c0_41] : memref<1x4x10x10x1xf32, #tpu.memory_space<vmem>>, vector<1x1x8x8x1xf32>
    %55 = vector.shape_cast %54 : vector<1x1x8x8x1xf32> to vector<8x8x1xf32>
    %56 = vector.shape_cast %55 : vector<8x8x1xf32> to vector<64x1xf32>
    %57 = vector.extract_strided_slice %0 {offsets = [6, 0], sizes = [1, 32], strides = [1, 1]} : vector<9x32xf32> to vector<1x32xf32>
    %58 = vector.broadcast %56 : vector<64x1xf32> to vector<64x32xf32>
    %59 = vector.broadcast %57 : vector<1x32xf32> to vector<64x32xf32>
    %60 = arith.mulf %58, %59 : vector<64x32xf32>
    %61 = arith.addf %53, %60 : vector<64x32xf32>
    %c0_42 = arith.constant 0 : index
    %c1_43 = arith.constant 1 : index
    %c2_44 = arith.constant 2 : index
    %c1_45 = arith.constant 1 : index
    %c0_46 = arith.constant 0 : index
    %62 = vector.load %arg1[%c0_42, %c1_43, %c2_44, %c1_45, %c0_46] : memref<1x4x10x10x1xf32, #tpu.memory_space<vmem>>, vector<1x1x8x8x1xf32>
    %63 = vector.shape_cast %62 : vector<1x1x8x8x1xf32> to vector<8x8x1xf32>
    %64 = vector.shape_cast %63 : vector<8x8x1xf32> to vector<64x1xf32>
    %65 = vector.extract_strided_slice %0 {offsets = [7, 0], sizes = [1, 32], strides = [1, 1]} : vector<9x32xf32> to vector<1x32xf32>
    %66 = vector.broadcast %64 : vector<64x1xf32> to vector<64x32xf32>
    %67 = vector.broadcast %65 : vector<1x32xf32> to vector<64x32xf32>
    %68 = arith.mulf %66, %67 : vector<64x32xf32>
    %69 = arith.addf %61, %68 : vector<64x32xf32>
    %c0_47 = arith.constant 0 : index
    %c0_48 = arith.constant 0 : index
    %c2_49 = arith.constant 2 : index
    %c2_50 = arith.constant 2 : index
    %c0_51 = arith.constant 0 : index
    %70 = vector.load %arg1[%c0_47, %c0_48, %c2_49, %c2_50, %c0_51] : memref<1x4x10x10x1xf32, #tpu.memory_space<vmem>>, vector<1x1x8x8x1xf32>
    %71 = vector.shape_cast %70 : vector<1x1x8x8x1xf32> to vector<8x8x1xf32>
    %72 = vector.shape_cast %71 : vector<8x8x1xf32> to vector<64x1xf32>
    %73 = vector.extract_strided_slice %0 {offsets = [8, 0], sizes = [1, 32], strides = [1, 1]} : vector<9x32xf32> to vector<1x32xf32>
    %74 = vector.broadcast %72 : vector<64x1xf32> to vector<64x32xf32>
    %75 = vector.broadcast %73 : vector<1x32xf32> to vector<64x32xf32>
    %76 = arith.mulf %74, %75 : vector<64x32xf32>
    %77 = arith.addf %69, %76 : vector<64x32xf32>
    %78 = vector.extract_strided_slice %1 {offsets = [0, 0], sizes = [1, 32], strides = [1, 1]} : vector<4x32xf32> to vector<1x32xf32>
    %79 = vector.broadcast %78 : vector<1x32xf32> to vector<64x32xf32>
    %80 = arith.addf %77, %79 : vector<64x32xf32>
    %81 = vector.extract_strided_slice %2 {offsets = [0, 0], sizes = [1, 32], strides = [1, 1]} : vector<3x32xf32> to vector<1x32xf32>
    %cst_52 = arith.constant 0.000000e+00 : f32
    %82 = vector.broadcast %cst_52 : f32 to vector<64x32xf32>
    %83 = arith.cmpf oge, %80, %82 : vector<64x32xf32>
    %84 = vector.broadcast %81 : vector<1x32xf32> to vector<64x32xf32>
    %85 = arith.mulf %80, %84 : vector<64x32xf32>
    %86 = arith.select %83, %80, %85 : vector<64x32xi1>, vector<64x32xf32>
    %87 = vector.shape_cast %86 : vector<64x32xf32> to vector<8x8x32xf32>
    %c0_53 = arith.constant 0 : index
    %c1_54 = arith.constant 1 : index
    %c1_55 = arith.constant 1 : index
    %c0_56 = arith.constant 0 : index
    %88 = vector.load %arg8[%c0_53, %c1_54, %c1_55, %c0_56] : memref<4x9x9x32xf32, #tpu.memory_space<vmem>>, vector<1x8x8x32xf32>
    %89 = vector.shape_cast %88 : vector<1x8x8x32xf32> to vector<8x8x32xf32>
    %90 = vector.shape_cast %87 : vector<8x8x32xf32> to vector<1x8x8x32xf32>
    tpu.vector_store %arg8[%c0_53, %c1_54, %c1_55, %c0_56], %90 {strides = array<i32>} : memref<4x9x9x32xf32, #tpu.memory_space<vmem>>, vector<1x8x8x32xf32>,
    %cst_57 = arith.constant 0.000000e+00 : f32
    %91 = vector.broadcast %cst_57 : f32 to vector<64x32xf32>
    %c0_58 = arith.constant 0 : index
    %c1_59 = arith.constant 1 : index
    %c1_60 = arith.constant 1 : index
    %c0_61 = arith.constant 0 : index
    %c0_62 = arith.constant 0 : index
    %92 = vector.load %arg1[%c0_58, %c1_59, %c1_60, %c0_61, %c0_62] : memref<1x4x10x10x1xf32, #tpu.memory_space<vmem>>, vector<1x1x8x8x1xf32>
    %93 = vector.shape_cast %92 : vector<1x1x8x8x1xf32> to vector<8x8x1xf32>
    %94 = vector.shape_cast %93 : vector<8x8x1xf32> to vector<64x1xf32>
    %95 = vector.extract_strided_slice %0 {offsets = [0, 0], sizes = [1, 32], strides = [1, 1]} : vector<9x32xf32> to vector<1x32xf32>
    %96 = vector.broadcast %94 : vector<64x1xf32> to vector<64x32xf32>
    %97 = vector.broadcast %95 : vector<1x32xf32> to vector<64x32xf32>
    %98 = arith.mulf %96, %97 : vector<64x32xf32>
    %99 = arith.addf %91, %98 : vector<64x32xf32>
    %c0_63 = arith.constant 0 : index
    %c0_64 = arith.constant 0 : index
    %c1_65 = arith.constant 1 : index
    %c1_66 = arith.constant 1 : index
    %c0_67 = arith.constant 0 : index
    %100 = vector.load %arg1[%c0_63, %c0_64, %c1_65, %c1_66, %c0_67] : memref<1x4x10x10x1xf32, #tpu.memory_space<vmem>>, vector<1x1x8x8x1xf32>
    %101 = vector.shape_cast %100 : vector<1x1x8x8x1xf32> to vector<8x8x1xf32>
    %102 = vector.shape_cast %101 : vector<8x8x1xf32> to vector<64x1xf32>
    %103 = vector.extract_strided_slice %0 {offsets = [1, 0], sizes = [1, 32], strides = [1, 1]} : vector<9x32xf32> to vector<1x32xf32>
    %104 = vector.broadcast %102 : vector<64x1xf32> to vector<64x32xf32>
    %105 = vector.broadcast %103 : vector<1x32xf32> to vector<64x32xf32>
    %106 = arith.mulf %104, %105 : vector<64x32xf32>
    %107 = arith.addf %99, %106 : vector<64x32xf32>
    %c0_68 = arith.constant 0 : index
    %c1_69 = arith.constant 1 : index
    %c1_70 = arith.constant 1 : index
    %c1_71 = arith.constant 1 : index
    %c0_72 = arith.constant 0 : index
    %108 = vector.load %arg1[%c0_68, %c1_69, %c1_70, %c1_71, %c0_72] : memref<1x4x10x10x1xf32, #tpu.memory_space<vmem>>, vector<1x1x8x8x1xf32>
    %109 = vector.shape_cast %108 : vector<1x1x8x8x1xf32> to vector<8x8x1xf32>
    %110 = vector.shape_cast %109 : vector<8x8x1xf32> to vector<64x1xf32>
    %111 = vector.extract_strided_slice %0 {offsets = [2, 0], sizes = [1, 32], strides = [1, 1]} : vector<9x32xf32> to vector<1x32xf32>
    %112 = vector.broadcast %110 : vector<64x1xf32> to vector<64x32xf32>
    %113 = vector.broadcast %111 : vector<1x32xf32> to vector<64x32xf32>
    %114 = arith.mulf %112, %113 : vector<64x32xf32>
    %115 = arith.addf %107, %114 : vector<64x32xf32>
    %c0_73 = arith.constant 0 : index
    %c3_74 = arith.constant 3 : index
    %c1_75 = arith.constant 1 : index
    %c0_76 = arith.constant 0 : index
    %c0_77 = arith.constant 0 : index
    %116 = vector.load %arg1[%c0_73, %c3_74, %c1_75, %c0_76, %c0_77] : memref<1x4x10x10x1xf32, #tpu.memory_space<vmem>>, vector<1x1x8x8x1xf32>
    %117 = vector.shape_cast %116 : vector<1x1x8x8x1xf32> to vector<8x8x1xf32>
    %118 = vector.shape_cast %117 : vector<8x8x1xf32> to vector<64x1xf32>
    %119 = vector.extract_strided_slice %0 {offsets = [3, 0], sizes = [1, 32], strides = [1, 1]} : vector<9x32xf32> to vector<1x32xf32>
    %120 = vector.broadcast %118 : vector<64x1xf32> to vector<64x32xf32>
    %121 = vector.broadcast %119 : vector<1x32xf32> to vector<64x32xf32>
    %122 = arith.mulf %120, %121 : vector<64x32xf32>
    %123 = arith.addf %115, %122 : vector<64x32xf32>
    %c0_78 = arith.constant 0 : index
    %c2_79 = arith.constant 2 : index
    %c1_80 = arith.constant 1 : index
    %c1_81 = arith.constant 1 : index
    %c0_82 = arith.constant 0 : index
    %124 = vector.load %arg1[%c0_78, %c2_79, %c1_80, %c1_81, %c0_82] : memref<1x4x10x10x1xf32, #tpu.memory_space<vmem>>, vector<1x1x8x8x1xf32>
    %125 = vector.shape_cast %124 : vector<1x1x8x8x1xf32> to vector<8x8x1xf32>
    %126 = vector.shape_cast %125 : vector<8x8x1xf32> to vector<64x1xf32>
    %127 = vector.extract_strided_slice %0 {offsets = [4, 0], sizes = [1, 32], strides = [1, 1]} : vector<9x32xf32> to vector<1x32xf32>
    %128 = vector.broadcast %126 : vector<64x1xf32> to vector<64x32xf32>
    %129 = vector.broadcast %127 : vector<1x32xf32> to vector<64x32xf32>
    %130 = arith.mulf %128, %129 : vector<64x32xf32>
    %131 = arith.addf %123, %130 : vector<64x32xf32>
    %c0_83 = arith.constant 0 : index
    %c3_84 = arith.constant 3 : index
    %c1_85 = arith.constant 1 : index
    %c1_86 = arith.constant 1 : index
    %c0_87 = arith.constant 0 : index
    %132 = vector.load %arg1[%c0_83, %c3_84, %c1_85, %c1_86, %c0_87] : memref<1x4x10x10x1xf32, #tpu.memory_space<vmem>>, vector<1x1x8x8x1xf32>
    %133 = vector.shape_cast %132 : vector<1x1x8x8x1xf32> to vector<8x8x1xf32>
    %134 = vector.shape_cast %133 : vector<8x8x1xf32> to vector<64x1xf32>
    %135 = vector.extract_strided_slice %0 {offsets = [5, 0], sizes = [1, 32], strides = [1, 1]} : vector<9x32xf32> to vector<1x32xf32>
    %136 = vector.broadcast %134 : vector<64x1xf32> to vector<64x32xf32>
    %137 = vector.broadcast %135 : vector<1x32xf32> to vector<64x32xf32>
    %138 = arith.mulf %136, %137 : vector<64x32xf32>
    %139 = arith.addf %131, %138 : vector<64x32xf32>
    %c0_88 = arith.constant 0 : index
    %c1_89 = arith.constant 1 : index
    %c2_90 = arith.constant 2 : index
    %c0_91 = arith.constant 0 : index
    %c0_92 = arith.constant 0 : index
    %140 = vector.load %arg1[%c0_88, %c1_89, %c2_90, %c0_91, %c0_92] : memref<1x4x10x10x1xf32, #tpu.memory_space<vmem>>, vector<1x1x8x8x1xf32>
    %141 = vector.shape_cast %140 : vector<1x1x8x8x1xf32> to vector<8x8x1xf32>
    %142 = vector.shape_cast %141 : vector<8x8x1xf32> to vector<64x1xf32>
    %143 = vector.extract_strided_slice %0 {offsets = [6, 0], sizes = [1, 32], strides = [1, 1]} : vector<9x32xf32> to vector<1x32xf32>
    %144 = vector.broadcast %142 : vector<64x1xf32> to vector<64x32xf32>
    %145 = vector.broadcast %143 : vector<1x32xf32> to vector<64x32xf32>
    %146 = arith.mulf %144, %145 : vector<64x32xf32>
    %147 = arith.addf %139, %146 : vector<64x32xf32>
    %c0_93 = arith.constant 0 : index
    %c0_94 = arith.constant 0 : index
    %c2_95 = arith.constant 2 : index
    %c1_96 = arith.constant 1 : index
    %c0_97 = arith.constant 0 : index
    %148 = vector.load %arg1[%c0_93, %c0_94, %c2_95, %c1_96, %c0_97] : memref<1x4x10x10x1xf32, #tpu.memory_space<vmem>>, vector<1x1x8x8x1xf32>
    %149 = vector.shape_cast %148 : vector<1x1x8x8x1xf32> to vector<8x8x1xf32>
    %150 = vector.shape_cast %149 : vector<8x8x1xf32> to vector<64x1xf32>
    %151 = vector.extract_strided_slice %0 {offsets = [7, 0], sizes = [1, 32], strides = [1, 1]} : vector<9x32xf32> to vector<1x32xf32>
    %152 = vector.broadcast %150 : vector<64x1xf32> to vector<64x32xf32>
    %153 = vector.broadcast %151 : vector<1x32xf32> to vector<64x32xf32>
    %154 = arith.mulf %152, %153 : vector<64x32xf32>
    %155 = arith.addf %147, %154 : vector<64x32xf32>
    %c0_98 = arith.constant 0 : index
    %c1_99 = arith.constant 1 : index
    %c2_100 = arith.constant 2 : index
    %c1_101 = arith.constant 1 : index
    %c0_102 = arith.constant 0 : index
    %156 = vector.load %arg1[%c0_98, %c1_99, %c2_100, %c1_101, %c0_102] : memref<1x4x10x10x1xf32, #tpu.memory_space<vmem>>, vector<1x1x8x8x1xf32>
    %157 = vector.shape_cast %156 : vector<1x1x8x8x1xf32> to vector<8x8x1xf32>
    %158 = vector.shape_cast %157 : vector<8x8x1xf32> to vector<64x1xf32>
    %159 = vector.extract_strided_slice %0 {offsets = [8, 0], sizes = [1, 32], strides = [1, 1]} : vector<9x32xf32> to vector<1x32xf32>
    %160 = vector.broadcast %158 : vector<64x1xf32> to vector<64x32xf32>
    %161 = vector.broadcast %159 : vector<1x32xf32> to vector<64x32xf32>
    %162 = arith.mulf %160, %161 : vector<64x32xf32>
    %163 = arith.addf %155, %162 : vector<64x32xf32>
    %164 = vector.extract_strided_slice %1 {offsets = [0, 0], sizes = [1, 32], strides = [1, 1]} : vector<4x32xf32> to vector<1x32xf32>
    %165 = vector.broadcast %164 : vector<1x32xf32> to vector<64x32xf32>
    %166 = arith.addf %163, %165 : vector<64x32xf32>
    %167 = vector.extract_strided_slice %2 {offsets = [0, 0], sizes = [1, 32], strides = [1, 1]} : vector<3x32xf32> to vector<1x32xf32>
    %cst_103 = arith.constant 0.000000e+00 : f32
    %168 = vector.broadcast %cst_103 : f32 to vector<64x32xf32>
    %169 = arith.cmpf oge, %166, %168 : vector<64x32xf32>
    %170 = vector.broadcast %167 : vector<1x32xf32> to vector<64x32xf32>
    %171 = arith.mulf %166, %170 : vector<64x32xf32>
    %172 = arith.select %169, %166, %171 : vector<64x32xi1>, vector<64x32xf32>
    %173 = vector.shape_cast %172 : vector<64x32xf32> to vector<8x8x32xf32>
    %c1_104 = arith.constant 1 : index
    %c1_105 = arith.constant 1 : index
    %c0_106 = arith.constant 0 : index
    %c0_107 = arith.constant 0 : index
    %174 = vector.load %arg8[%c1_104, %c1_105, %c0_106, %c0_107] : memref<4x9x9x32xf32, #tpu.memory_space<vmem>>, vector<1x8x8x32xf32>
    %175 = vector.shape_cast %174 : vector<1x8x8x32xf32> to vector<8x8x32xf32>
    %176 = vector.shape_cast %173 : vector<8x8x32xf32> to vector<1x8x8x32xf32>
    tpu.vector_store %arg8[%c1_104, %c1_105, %c0_106, %c0_107], %176 {strides = array<i32>} : memref<4x9x9x32xf32, #tpu.memory_space<vmem>>, vector<1x8x8x32xf32>,
    %cst_108 = arith.constant 0.000000e+00 : f32
    %177 = vector.broadcast %cst_108 : f32 to vector<64x32xf32>
    %c0_109 = arith.constant 0 : index
    %c2_110 = arith.constant 2 : index
    %c0_111 = arith.constant 0 : index
    %c1_112 = arith.constant 1 : index
    %c0_113 = arith.constant 0 : index
    %178 = vector.load %arg1[%c0_109, %c2_110, %c0_111, %c1_112, %c0_113] : memref<1x4x10x10x1xf32, #tpu.memory_space<vmem>>, vector<1x1x8x8x1xf32>
    %179 = vector.shape_cast %178 : vector<1x1x8x8x1xf32> to vector<8x8x1xf32>
    %180 = vector.shape_cast %179 : vector<8x8x1xf32> to vector<64x1xf32>
    %181 = vector.extract_strided_slice %0 {offsets = [0, 0], sizes = [1, 32], strides = [1, 1]} : vector<9x32xf32> to vector<1x32xf32>
    %182 = vector.broadcast %180 : vector<64x1xf32> to vector<64x32xf32>
    %183 = vector.broadcast %181 : vector<1x32xf32> to vector<64x32xf32>
    %184 = arith.mulf %182, %183 : vector<64x32xf32>
    %185 = arith.addf %177, %184 : vector<64x32xf32>
    %c0_114 = arith.constant 0 : index
    %c3_115 = arith.constant 3 : index
    %c0_116 = arith.constant 0 : index
    %c1_117 = arith.constant 1 : index
    %c0_118 = arith.constant 0 : index
    %186 = vector.load %arg1[%c0_114, %c3_115, %c0_116, %c1_117, %c0_118] : memref<1x4x10x10x1xf32, #tpu.memory_space<vmem>>, vector<1x1x8x8x1xf32>
    %187 = vector.shape_cast %186 : vector<1x1x8x8x1xf32> to vector<8x8x1xf32>
    %188 = vector.shape_cast %187 : vector<8x8x1xf32> to vector<64x1xf32>
    %189 = vector.extract_strided_slice %0 {offsets = [1, 0], sizes = [1, 32], strides = [1, 1]} : vector<9x32xf32> to vector<1x32xf32>
    %190 = vector.broadcast %188 : vector<64x1xf32> to vector<64x32xf32>
    %191 = vector.broadcast %189 : vector<1x32xf32> to vector<64x32xf32>
    %192 = arith.mulf %190, %191 : vector<64x32xf32>
    %193 = arith.addf %185, %192 : vector<64x32xf32>
    %c0_119 = arith.constant 0 : index
    %c2_120 = arith.constant 2 : index
    %c0_121 = arith.constant 0 : index
    %c2_122 = arith.constant 2 : index
    %c0_123 = arith.constant 0 : index
    %194 = vector.load %arg1[%c0_119, %c2_120, %c0_121, %c2_122, %c0_123] : memref<1x4x10x10x1xf32, #tpu.memory_space<vmem>>, vector<1x1x8x8x1xf32>
    %195 = vector.shape_cast %194 : vector<1x1x8x8x1xf32> to vector<8x8x1xf32>
    %196 = vector.shape_cast %195 : vector<8x8x1xf32> to vector<64x1xf32>
    %197 = vector.extract_strided_slice %0 {offsets = [2, 0], sizes = [1, 32], strides = [1, 1]} : vector<9x32xf32> to vector<1x32xf32>
    %198 = vector.broadcast %196 : vector<64x1xf32> to vector<64x32xf32>
    %199 = vector.broadcast %197 : vector<1x32xf32> to vector<64x32xf32>
    %200 = arith.mulf %198, %199 : vector<64x32xf32>
    %201 = arith.addf %193, %200 : vector<64x32xf32>
    %c0_124 = arith.constant 0 : index
    %c0_125 = arith.constant 0 : index
    %c1_126 = arith.constant 1 : index
    %c1_127 = arith.constant 1 : index
    %c0_128 = arith.constant 0 : index
    %202 = vector.load %arg1[%c0_124, %c0_125, %c1_126, %c1_127, %c0_128] : memref<1x4x10x10x1xf32, #tpu.memory_space<vmem>>, vector<1x1x8x8x1xf32>
    %203 = vector.shape_cast %202 : vector<1x1x8x8x1xf32> to vector<8x8x1xf32>
    %204 = vector.shape_cast %203 : vector<8x8x1xf32> to vector<64x1xf32>
    %205 = vector.extract_strided_slice %0 {offsets = [3, 0], sizes = [1, 32], strides = [1, 1]} : vector<9x32xf32> to vector<1x32xf32>
    %206 = vector.broadcast %204 : vector<64x1xf32> to vector<64x32xf32>
    %207 = vector.broadcast %205 : vector<1x32xf32> to vector<64x32xf32>
    %208 = arith.mulf %206, %207 : vector<64x32xf32>
    %209 = arith.addf %201, %208 : vector<64x32xf32>
    %c0_129 = arith.constant 0 : index
    %c1_130 = arith.constant 1 : index
    %c1_131 = arith.constant 1 : index
    %c1_132 = arith.constant 1 : index
    %c0_133 = arith.constant 0 : index
    %210 = vector.load %arg1[%c0_129, %c1_130, %c1_131, %c1_132, %c0_133] : memref<1x4x10x10x1xf32, #tpu.memory_space<vmem>>, vector<1x1x8x8x1xf32>
    %211 = vector.shape_cast %210 : vector<1x1x8x8x1xf32> to vector<8x8x1xf32>
    %212 = vector.shape_cast %211 : vector<8x8x1xf32> to vector<64x1xf32>
    %213 = vector.extract_strided_slice %0 {offsets = [4, 0], sizes = [1, 32], strides = [1, 1]} : vector<9x32xf32> to vector<1x32xf32>
    %214 = vector.broadcast %212 : vector<64x1xf32> to vector<64x32xf32>
    %215 = vector.broadcast %213 : vector<1x32xf32> to vector<64x32xf32>
    %216 = arith.mulf %214, %215 : vector<64x32xf32>
    %217 = arith.addf %209, %216 : vector<64x32xf32>
    %c0_134 = arith.constant 0 : index
    %c0_135 = arith.constant 0 : index
    %c1_136 = arith.constant 1 : index
    %c2_137 = arith.constant 2 : index
    %c0_138 = arith.constant 0 : index
    %218 = vector.load %arg1[%c0_134, %c0_135, %c1_136, %c2_137, %c0_138] : memref<1x4x10x10x1xf32, #tpu.memory_space<vmem>>, vector<1x1x8x8x1xf32>
    %219 = vector.shape_cast %218 : vector<1x1x8x8x1xf32> to vector<8x8x1xf32>
    %220 = vector.shape_cast %219 : vector<8x8x1xf32> to vector<64x1xf32>
    %221 = vector.extract_strided_slice %0 {offsets = [5, 0], sizes = [1, 32], strides = [1, 1]} : vector<9x32xf32> to vector<1x32xf32>
    %222 = vector.broadcast %220 : vector<64x1xf32> to vector<64x32xf32>
    %223 = vector.broadcast %221 : vector<1x32xf32> to vector<64x32xf32>
    %224 = arith.mulf %222, %223 : vector<64x32xf32>
    %225 = arith.addf %217, %224 : vector<64x32xf32>
    %c0_139 = arith.constant 0 : index
    %c2_140 = arith.constant 2 : index
    %c1_141 = arith.constant 1 : index
    %c1_142 = arith.constant 1 : index
    %c0_143 = arith.constant 0 : index
    %226 = vector.load %arg1[%c0_139, %c2_140, %c1_141, %c1_142, %c0_143] : memref<1x4x10x10x1xf32, #tpu.memory_space<vmem>>, vector<1x1x8x8x1xf32>
    %227 = vector.shape_cast %226 : vector<1x1x8x8x1xf32> to vector<8x8x1xf32>
    %228 = vector.shape_cast %227 : vector<8x8x1xf32> to vector<64x1xf32>
    %229 = vector.extract_strided_slice %0 {offsets = [6, 0], sizes = [1, 32], strides = [1, 1]} : vector<9x32xf32> to vector<1x32xf32>
    %230 = vector.broadcast %228 : vector<64x1xf32> to vector<64x32xf32>
    %231 = vector.broadcast %229 : vector<1x32xf32> to vector<64x32xf32>
    %232 = arith.mulf %230, %231 : vector<64x32xf32>
    %233 = arith.addf %225, %232 : vector<64x32xf32>
    %c0_144 = arith.constant 0 : index
    %c3_145 = arith.constant 3 : index
    %c1_146 = arith.constant 1 : index
    %c1_147 = arith.constant 1 : index
    %c0_148 = arith.constant 0 : index
    %234 = vector.load %arg1[%c0_144, %c3_145, %c1_146, %c1_147, %c0_148] : memref<1x4x10x10x1xf32, #tpu.memory_space<vmem>>, vector<1x1x8x8x1xf32>
    %235 = vector.shape_cast %234 : vector<1x1x8x8x1xf32> to vector<8x8x1xf32>
    %236 = vector.shape_cast %235 : vector<8x8x1xf32> to vector<64x1xf32>
    %237 = vector.extract_strided_slice %0 {offsets = [7, 0], sizes = [1, 32], strides = [1, 1]} : vector<9x32xf32> to vector<1x32xf32>
    %238 = vector.broadcast %236 : vector<64x1xf32> to vector<64x32xf32>
    %239 = vector.broadcast %237 : vector<1x32xf32> to vector<64x32xf32>
    %240 = arith.mulf %238, %239 : vector<64x32xf32>
    %241 = arith.addf %233, %240 : vector<64x32xf32>
    %c0_149 = arith.constant 0 : index
    %c2_150 = arith.constant 2 : index
    %c1_151 = arith.constant 1 : index
    %c2_152 = arith.constant 2 : index
    %c0_153 = arith.constant 0 : index
    %242 = vector.load %arg1[%c0_149, %c2_150, %c1_151, %c2_152, %c0_153] : memref<1x4x10x10x1xf32, #tpu.memory_space<vmem>>, vector<1x1x8x8x1xf32>
    %243 = vector.shape_cast %242 : vector<1x1x8x8x1xf32> to vector<8x8x1xf32>
    %244 = vector.shape_cast %243 : vector<8x8x1xf32> to vector<64x1xf32>
    %245 = vector.extract_strided_slice %0 {offsets = [8, 0], sizes = [1, 32], strides = [1, 1]} : vector<9x32xf32> to vector<1x32xf32>
    %246 = vector.broadcast %244 : vector<64x1xf32> to vector<64x32xf32>
    %247 = vector.broadcast %245 : vector<1x32xf32> to vector<64x32xf32>
    %248 = arith.mulf %246, %247 : vector<64x32xf32>
    %249 = arith.addf %241, %248 : vector<64x32xf32>
    %250 = vector.extract_strided_slice %1 {offsets = [0, 0], sizes = [1, 32], strides = [1, 1]} : vector<4x32xf32> to vector<1x32xf32>
    %251 = vector.broadcast %250 : vector<1x32xf32> to vector<64x32xf32>
    %252 = arith.addf %249, %251 : vector<64x32xf32>
    %253 = vector.extract_strided_slice %2 {offsets = [0, 0], sizes = [1, 32], strides = [1, 1]} : vector<3x32xf32> to vector<1x32xf32>
    %cst_154 = arith.constant 0.000000e+00 : f32
    %254 = vector.broadcast %cst_154 : f32 to vector<64x32xf32>
    %255 = arith.cmpf oge, %252, %254 : vector<64x32xf32>
    %256 = vector.broadcast %253 : vector<1x32xf32> to vector<64x32xf32>
    %257 = arith.mulf %252, %256 : vector<64x32xf32>
    %258 = arith.select %255, %252, %257 : vector<64x32xi1>, vector<64x32xf32>
    %259 = vector.shape_cast %258 : vector<64x32xf32> to vector<8x8x32xf32>
    %c2_155 = arith.constant 2 : index
    %c0_156 = arith.constant 0 : index
    %c1_157 = arith.constant 1 : index
    %c0_158 = arith.constant 0 : index
    %260 = vector.load %arg8[%c2_155, %c0_156, %c1_157, %c0_158] : memref<4x9x9x32xf32, #tpu.memory_space<vmem>>, vector<1x8x8x32xf32>
    %261 = vector.shape_cast %260 : vector<1x8x8x32xf32> to vector<8x8x32xf32>
    %262 = vector.shape_cast %259 : vector<8x8x32xf32> to vector<1x8x8x32xf32>
    tpu.vector_store %arg8[%c2_155, %c0_156, %c1_157, %c0_158], %262 {strides = array<i32>} : memref<4x9x9x32xf32, #tpu.memory_space<vmem>>, vector<1x8x8x32xf32>,
    %cst_159 = arith.constant 0.000000e+00 : f32
    %263 = vector.broadcast %cst_159 : f32 to vector<64x32xf32>
    %c0_160 = arith.constant 0 : index
    %c3_161 = arith.constant 3 : index
    %c0_162 = arith.constant 0 : index
    %c0_163 = arith.constant 0 : index
    %c0_164 = arith.constant 0 : index
    %264 = vector.load %arg1[%c0_160, %c3_161, %c0_162, %c0_163, %c0_164] : memref<1x4x10x10x1xf32, #tpu.memory_space<vmem>>, vector<1x1x8x8x1xf32>
    %265 = vector.shape_cast %264 : vector<1x1x8x8x1xf32> to vector<8x8x1xf32>
    %266 = vector.shape_cast %265 : vector<8x8x1xf32> to vector<64x1xf32>
    %267 = vector.extract_strided_slice %0 {offsets = [0, 0], sizes = [1, 32], strides = [1, 1]} : vector<9x32xf32> to vector<1x32xf32>
    %268 = vector.broadcast %266 : vector<64x1xf32> to vector<64x32xf32>
    %269 = vector.broadcast %267 : vector<1x32xf32> to vector<64x32xf32>
    %270 = arith.mulf %268, %269 : vector<64x32xf32>
    %271 = arith.addf %263, %270 : vector<64x32xf32>
    %c0_165 = arith.constant 0 : index
    %c2_166 = arith.constant 2 : index
    %c0_167 = arith.constant 0 : index
    %c1_168 = arith.constant 1 : index
    %c0_169 = arith.constant 0 : index
    %272 = vector.load %arg1[%c0_165, %c2_166, %c0_167, %c1_168, %c0_169] : memref<1x4x10x10x1xf32, #tpu.memory_space<vmem>>, vector<1x1x8x8x1xf32>
    %273 = vector.shape_cast %272 : vector<1x1x8x8x1xf32> to vector<8x8x1xf32>
    %274 = vector.shape_cast %273 : vector<8x8x1xf32> to vector<64x1xf32>
    %275 = vector.extract_strided_slice %0 {offsets = [1, 0], sizes = [1, 32], strides = [1, 1]} : vector<9x32xf32> to vector<1x32xf32>
    %276 = vector.broadcast %274 : vector<64x1xf32> to vector<64x32xf32>
    %277 = vector.broadcast %275 : vector<1x32xf32> to vector<64x32xf32>
    %278 = arith.mulf %276, %277 : vector<64x32xf32>
    %279 = arith.addf %271, %278 : vector<64x32xf32>
    %c0_170 = arith.constant 0 : index
    %c3_171 = arith.constant 3 : index
    %c0_172 = arith.constant 0 : index
    %c1_173 = arith.constant 1 : index
    %c0_174 = arith.constant 0 : index
    %280 = vector.load %arg1[%c0_170, %c3_171, %c0_172, %c1_173, %c0_174] : memref<1x4x10x10x1xf32, #tpu.memory_space<vmem>>, vector<1x1x8x8x1xf32>
    %281 = vector.shape_cast %280 : vector<1x1x8x8x1xf32> to vector<8x8x1xf32>
    %282 = vector.shape_cast %281 : vector<8x8x1xf32> to vector<64x1xf32>
    %283 = vector.extract_strided_slice %0 {offsets = [2, 0], sizes = [1, 32], strides = [1, 1]} : vector<9x32xf32> to vector<1x32xf32>
    %284 = vector.broadcast %282 : vector<64x1xf32> to vector<64x32xf32>
    %285 = vector.broadcast %283 : vector<1x32xf32> to vector<64x32xf32>
    %286 = arith.mulf %284, %285 : vector<64x32xf32>
    %287 = arith.addf %279, %286 : vector<64x32xf32>
    %c0_175 = arith.constant 0 : index
    %c1_176 = arith.constant 1 : index
    %c1_177 = arith.constant 1 : index
    %c0_178 = arith.constant 0 : index
    %c0_179 = arith.constant 0 : index
    %288 = vector.load %arg1[%c0_175, %c1_176, %c1_177, %c0_178, %c0_179] : memref<1x4x10x10x1xf32, #tpu.memory_space<vmem>>, vector<1x1x8x8x1xf32>
    %289 = vector.shape_cast %288 : vector<1x1x8x8x1xf32> to vector<8x8x1xf32>
    %290 = vector.shape_cast %289 : vector<8x8x1xf32> to vector<64x1xf32>
    %291 = vector.extract_strided_slice %0 {offsets = [3, 0], sizes = [1, 32], strides = [1, 1]} : vector<9x32xf32> to vector<1x32xf32>
    %292 = vector.broadcast %290 : vector<64x1xf32> to vector<64x32xf32>
    %293 = vector.broadcast %291 : vector<1x32xf32> to vector<64x32xf32>
    %294 = arith.mulf %292, %293 : vector<64x32xf32>
    %295 = arith.addf %287, %294 : vector<64x32xf32>
    %c0_180 = arith.constant 0 : index
    %c0_181 = arith.constant 0 : index
    %c1_182 = arith.constant 1 : index
    %c1_183 = arith.constant 1 : index
    %c0_184 = arith.constant 0 : index
    %296 = vector.load %arg1[%c0_180, %c0_181, %c1_182, %c1_183, %c0_184] : memref<1x4x10x10x1xf32, #tpu.memory_space<vmem>>, vector<1x1x8x8x1xf32>
    %297 = vector.shape_cast %296 : vector<1x1x8x8x1xf32> to vector<8x8x1xf32>
    %298 = vector.shape_cast %297 : vector<8x8x1xf32> to vector<64x1xf32>
    %299 = vector.extract_strided_slice %0 {offsets = [4, 0], sizes = [1, 32], strides = [1, 1]} : vector<9x32xf32> to vector<1x32xf32>
    %300 = vector.broadcast %298 : vector<64x1xf32> to vector<64x32xf32>
    %301 = vector.broadcast %299 : vector<1x32xf32> to vector<64x32xf32>
    %302 = arith.mulf %300, %301 : vector<64x32xf32>
    %303 = arith.addf %295, %302 : vector<64x32xf32>
    %c0_185 = arith.constant 0 : index
    %c1_186 = arith.constant 1 : index
    %c1_187 = arith.constant 1 : index
    %c1_188 = arith.constant 1 : index
    %c0_189 = arith.constant 0 : index
    %304 = vector.load %arg1[%c0_185, %c1_186, %c1_187, %c1_188, %c0_189] : memref<1x4x10x10x1xf32, #tpu.memory_space<vmem>>, vector<1x1x8x8x1xf32>
    %305 = vector.shape_cast %304 : vector<1x1x8x8x1xf32> to vector<8x8x1xf32>
    %306 = vector.shape_cast %305 : vector<8x8x1xf32> to vector<64x1xf32>
    %307 = vector.extract_strided_slice %0 {offsets = [5, 0], sizes = [1, 32], strides = [1, 1]} : vector<9x32xf32> to vector<1x32xf32>
    %308 = vector.broadcast %306 : vector<64x1xf32> to vector<64x32xf32>
    %309 = vector.broadcast %307 : vector<1x32xf32> to vector<64x32xf32>
    %310 = arith.mulf %308, %309 : vector<64x32xf32>
    %311 = arith.addf %303, %310 : vector<64x32xf32>
    %c0_190 = arith.constant 0 : index
    %c3_191 = arith.constant 3 : index
    %c1_192 = arith.constant 1 : index
    %c0_193 = arith.constant 0 : index
    %c0_194 = arith.constant 0 : index
    %312 = vector.load %arg1[%c0_190, %c3_191, %c1_192, %c0_193, %c0_194] : memref<1x4x10x10x1xf32, #tpu.memory_space<vmem>>, vector<1x1x8x8x1xf32>
    %313 = vector.shape_cast %312 : vector<1x1x8x8x1xf32> to vector<8x8x1xf32>
    %314 = vector.shape_cast %313 : vector<8x8x1xf32> to vector<64x1xf32>
    %315 = vector.extract_strided_slice %0 {offsets = [6, 0], sizes = [1, 32], strides = [1, 1]} : vector<9x32xf32> to vector<1x32xf32>
    %316 = vector.broadcast %314 : vector<64x1xf32> to vector<64x32xf32>
    %317 = vector.broadcast %315 : vector<1x32xf32> to vector<64x32xf32>
    %318 = arith.mulf %316, %317 : vector<64x32xf32>
    %319 = arith.addf %311, %318 : vector<64x32xf32>
    %c0_195 = arith.constant 0 : index
    %c2_196 = arith.constant 2 : index
    %c1_197 = arith.constant 1 : index
    %c1_198 = arith.constant 1 : index
    %c0_199 = arith.constant 0 : index
    %320 = vector.load %arg1[%c0_195, %c2_196, %c1_197, %c1_198, %c0_199] : memref<1x4x10x10x1xf32, #tpu.memory_space<vmem>>, vector<1x1x8x8x1xf32>
    %321 = vector.shape_cast %320 : vector<1x1x8x8x1xf32> to vector<8x8x1xf32>
    %322 = vector.shape_cast %321 : vector<8x8x1xf32> to vector<64x1xf32>
    %323 = vector.extract_strided_slice %0 {offsets = [7, 0], sizes = [1, 32], strides = [1, 1]} : vector<9x32xf32> to vector<1x32xf32>
    %324 = vector.broadcast %322 : vector<64x1xf32> to vector<64x32xf32>
    %325 = vector.broadcast %323 : vector<1x32xf32> to vector<64x32xf32>
    %326 = arith.mulf %324, %325 : vector<64x32xf32>
    %327 = arith.addf %319, %326 : vector<64x32xf32>
    %c0_200 = arith.constant 0 : index
    %c3_201 = arith.constant 3 : index
    %c1_202 = arith.constant 1 : index
    %c1_203 = arith.constant 1 : index
    %c0_204 = arith.constant 0 : index
    %328 = vector.load %arg1[%c0_200, %c3_201, %c1_202, %c1_203, %c0_204] : memref<1x4x10x10x1xf32, #tpu.memory_space<vmem>>, vector<1x1x8x8x1xf32>
    %329 = vector.shape_cast %328 : vector<1x1x8x8x1xf32> to vector<8x8x1xf32>
    %330 = vector.shape_cast %329 : vector<8x8x1xf32> to vector<64x1xf32>
    %331 = vector.extract_strided_slice %0 {offsets = [8, 0], sizes = [1, 32], strides = [1, 1]} : vector<9x32xf32> to vector<1x32xf32>
    %332 = vector.broadcast %330 : vector<64x1xf32> to vector<64x32xf32>
    %333 = vector.broadcast %331 : vector<1x32xf32> to vector<64x32xf32>
    %334 = arith.mulf %332, %333 : vector<64x32xf32>
    %335 = arith.addf %327, %334 : vector<64x32xf32>
    %336 = vector.extract_strided_slice %1 {offsets = [0, 0], sizes = [1, 32], strides = [1, 1]} : vector<4x32xf32> to vector<1x32xf32>
    %337 = vector.broadcast %336 : vector<1x32xf32> to vector<64x32xf32>
    %338 = arith.addf %335, %337 : vector<64x32xf32>
    %339 = vector.extract_strided_slice %2 {offsets = [0, 0], sizes = [1, 32], strides = [1, 1]} : vector<3x32xf32> to vector<1x32xf32>
    %cst_205 = arith.constant 0.000000e+00 : f32
    %340 = vector.broadcast %cst_205 : f32 to vector<64x32xf32>
    %341 = arith.cmpf oge, %338, %340 : vector<64x32xf32>
    %342 = vector.broadcast %339 : vector<1x32xf32> to vector<64x32xf32>
    %343 = arith.mulf %338, %342 : vector<64x32xf32>
    %344 = arith.select %341, %338, %343 : vector<64x32xi1>, vector<64x32xf32>
    %345 = vector.shape_cast %344 : vector<64x32xf32> to vector<8x8x32xf32>
    %c3_206 = arith.constant 3 : index
    %c0_207 = arith.constant 0 : index
    %c0_208 = arith.constant 0 : index
    %c0_209 = arith.constant 0 : index
    %346 = vector.load %arg8[%c3_206, %c0_207, %c0_208, %c0_209] : memref<4x9x9x32xf32, #tpu.memory_space<vmem>>, vector<1x8x8x32xf32>
    %347 = vector.shape_cast %346 : vector<1x8x8x32xf32> to vector<8x8x32xf32>
    %348 = vector.shape_cast %345 : vector<8x8x32xf32> to vector<1x8x8x32xf32>
    tpu.vector_store %arg8[%c3_206, %c0_207, %c0_208, %c0_209], %348 {strides = array<i32>} : memref<4x9x9x32xf32, #tpu.memory_space<vmem>>, vector<1x8x8x32xf32>,
    %c0_210 = arith.constant 0 : index
    %c0_211 = arith.constant 0 : index
    %c0_212 = arith.constant 0 : index
    %c0_213 = arith.constant 0 : index
    %349 = vector.load %arg8[%c0_210, %c0_211, %c0_212, %c0_213] : memref<4x9x9x32xf32, #tpu.memory_space<vmem>>, vector<1x8x8x32xf32>
    %350 = vector.shape_cast %349 : vector<1x8x8x32xf32> to vector<8x8x32xf32>
    %351 = vector.shape_cast %350 : vector<8x8x32xf32> to vector<64x32xf32>
    %c0_214 = arith.constant 0 : index
    %c0_215 = arith.constant 0 : index
    %352 = vector.load %arg10[%c0_214, %c0_215] : memref<64x288xf32, #tpu.memory_space<vmem>>, vector<64x32xf32>
    tpu.vector_store %arg10[%c0_214, %c0_215], %351 {strides = array<i32>} : memref<64x288xf32, #tpu.memory_space<vmem>>, vector<64x32xf32>,
    %c1_216 = arith.constant 1 : index
    %c0_217 = arith.constant 0 : index
    %c0_218 = arith.constant 0 : index
    %c0_219 = arith.constant 0 : index
    %353 = vector.load %arg8[%c1_216, %c0_217, %c0_218, %c0_219] : memref<4x9x9x32xf32, #tpu.memory_space<vmem>>, vector<1x8x8x32xf32>
    %354 = vector.shape_cast %353 : vector<1x8x8x32xf32> to vector<8x8x32xf32>
    %355 = vector.shape_cast %354 : vector<8x8x32xf32> to vector<64x32xf32>
    %c0_220 = arith.constant 0 : index
    %c32 = arith.constant 32 : index
    %356 = vector.load %arg10[%c0_220, %c32] : memref<64x288xf32, #tpu.memory_space<vmem>>, vector<64x32xf32>
    tpu.vector_store %arg10[%c0_220, %c32], %355 {strides = array<i32>} : memref<64x288xf32, #tpu.memory_space<vmem>>, vector<64x32xf32>,
    %c0_221 = arith.constant 0 : index
    %c0_222 = arith.constant 0 : index
    %c1_223 = arith.constant 1 : index
    %c0_224 = arith.constant 0 : index
    %357 = vector.load %arg8[%c0_221, %c0_222, %c1_223, %c0_224] : memref<4x9x9x32xf32, #tpu.memory_space<vmem>>, vector<1x8x8x32xf32>
    %358 = vector.shape_cast %357 : vector<1x8x8x32xf32> to vector<8x8x32xf32>
    %359 = vector.shape_cast %358 : vector<8x8x32xf32> to vector<64x32xf32>
    %c0_225 = arith.constant 0 : index
    %c64 = arith.constant 64 : index
    %360 = vector.load %arg10[%c0_225, %c64] : memref<64x288xf32, #tpu.memory_space<vmem>>, vector<64x32xf32>
    tpu.vector_store %arg10[%c0_225, %c64], %359 {strides = array<i32>} : memref<64x288xf32, #tpu.memory_space<vmem>>, vector<64x32xf32>,
    %c2_226 = arith.constant 2 : index
    %c0_227 = arith.constant 0 : index
    %c0_228 = arith.constant 0 : index
    %c0_229 = arith.constant 0 : index
    %361 = vector.load %arg8[%c2_226, %c0_227, %c0_228, %c0_229] : memref<4x9x9x32xf32, #tpu.memory_space<vmem>>, vector<1x8x8x32xf32>
    %362 = vector.shape_cast %361 : vector<1x8x8x32xf32> to vector<8x8x32xf32>
    %363 = vector.shape_cast %362 : vector<8x8x32xf32> to vector<64x32xf32>
    %c0_230 = arith.constant 0 : index
    %c96 = arith.constant 96 : index
    %364 = vector.load %arg10[%c0_230, %c96] : memref<64x288xf32, #tpu.memory_space<vmem>>, vector<64x32xf32>
    tpu.vector_store %arg10[%c0_230, %c96], %363 {strides = array<i32>} : memref<64x288xf32, #tpu.memory_space<vmem>>, vector<64x32xf32>,
    %c3_231 = arith.constant 3 : index
    %c0_232 = arith.constant 0 : index
    %c0_233 = arith.constant 0 : index
    %c0_234 = arith.constant 0 : index
    %365 = vector.load %arg8[%c3_231, %c0_232, %c0_233, %c0_234] : memref<4x9x9x32xf32, #tpu.memory_space<vmem>>, vector<1x8x8x32xf32>
    %366 = vector.shape_cast %365 : vector<1x8x8x32xf32> to vector<8x8x32xf32>
    %367 = vector.shape_cast %366 : vector<8x8x32xf32> to vector<64x32xf32>
    %c0_235 = arith.constant 0 : index
    %c128 = arith.constant 128 : index
    %368 = vector.load %arg10[%c0_235, %c128] : memref<64x288xf32, #tpu.memory_space<vmem>>, vector<64x32xf32>
    tpu.vector_store %arg10[%c0_235, %c128], %367 {strides = array<i32>} : memref<64x288xf32, #tpu.memory_space<vmem>>, vector<64x32xf32>,
    %c2_236 = arith.constant 2 : index
    %c0_237 = arith.constant 0 : index
    %c1_238 = arith.constant 1 : index
    %c0_239 = arith.constant 0 : index
    %369 = vector.load %arg8[%c2_236, %c0_237, %c1_238, %c0_239] : memref<4x9x9x32xf32, #tpu.memory_space<vmem>>, vector<1x8x8x32xf32>
    %370 = vector.shape_cast %369 : vector<1x8x8x32xf32> to vector<8x8x32xf32>
    %371 = vector.shape_cast %370 : vector<8x8x32xf32> to vector<64x32xf32>
    %c0_240 = arith.constant 0 : index
    %c160 = arith.constant 160 : index
    %372 = vector.load %arg10[%c0_240, %c160] : memref<64x288xf32, #tpu.memory_space<vmem>>, vector<64x32xf32>
    tpu.vector_store %arg10[%c0_240, %c160], %371 {strides = array<i32>} : memref<64x288xf32, #tpu.memory_space<vmem>>, vector<64x32xf32>,
    %c0_241 = arith.constant 0 : index
    %c1_242 = arith.constant 1 : index
    %c0_243 = arith.constant 0 : index
    %c0_244 = arith.constant 0 : index
    %373 = vector.load %arg8[%c0_241, %c1_242, %c0_243, %c0_244] : memref<4x9x9x32xf32, #tpu.memory_space<vmem>>, vector<1x8x8x32xf32>
    %374 = vector.shape_cast %373 : vector<1x8x8x32xf32> to vector<8x8x32xf32>
    %375 = vector.shape_cast %374 : vector<8x8x32xf32> to vector<64x32xf32>
    %c0_245 = arith.constant 0 : index
    %c192 = arith.constant 192 : index
    %376 = vector.load %arg10[%c0_245, %c192] : memref<64x288xf32, #tpu.memory_space<vmem>>, vector<64x32xf32>
    tpu.vector_store %arg10[%c0_245, %c192], %375 {strides = array<i32>} : memref<64x288xf32, #tpu.memory_space<vmem>>, vector<64x32xf32>,
    %c1_246 = arith.constant 1 : index
    %c1_247 = arith.constant 1 : index
    %c0_248 = arith.constant 0 : index
    %c0_249 = arith.constant 0 : index
    %377 = vector.load %arg8[%c1_246, %c1_247, %c0_248, %c0_249] : memref<4x9x9x32xf32, #tpu.memory_space<vmem>>, vector<1x8x8x32xf32>
    %378 = vector.shape_cast %377 : vector<1x8x8x32xf32> to vector<8x8x32xf32>
    %379 = vector.shape_cast %378 : vector<8x8x32xf32> to vector<64x32xf32>
    %c0_250 = arith.constant 0 : index
    %c224 = arith.constant 224 : index
    %380 = vector.load %arg10[%c0_250, %c224] : memref<64x288xf32, #tpu.memory_space<vmem>>, vector<64x32xf32>
    tpu.vector_store %arg10[%c0_250, %c224], %379 {strides = array<i32>} : memref<64x288xf32, #tpu.memory_space<vmem>>, vector<64x32xf32>,
    %c0_251 = arith.constant 0 : index
    %c1_252 = arith.constant 1 : index
    %c1_253 = arith.constant 1 : index
    %c0_254 = arith.constant 0 : index
    %381 = vector.load %arg8[%c0_251, %c1_252, %c1_253, %c0_254] : memref<4x9x9x32xf32, #tpu.memory_space<vmem>>, vector<1x8x8x32xf32>
    %382 = vector.shape_cast %381 : vector<1x8x8x32xf32> to vector<8x8x32xf32>
    %383 = vector.shape_cast %382 : vector<8x8x32xf32> to vector<64x32xf32>
    %c0_255 = arith.constant 0 : index
    %c256 = arith.constant 256 : index
    %384 = vector.load %arg10[%c0_255, %c256] : memref<64x288xf32, #tpu.memory_space<vmem>>, vector<64x32xf32>
    tpu.vector_store %arg10[%c0_255, %c256], %383 {strides = array<i32>} : memref<64x288xf32, #tpu.memory_space<vmem>>, vector<64x32xf32>,
    %c0_256 = arith.constant 0 : index
    %c0_257 = arith.constant 0 : index
    %385 = vector.load %arg10[%c0_256, %c0_257] : memref<64x288xf32, #tpu.memory_space<vmem>>, vector<64x288xf32>
    %c2_258 = arith.constant 2 : index
    %c0_259 = arith.constant 0 : index
    %c0_260 = arith.constant 0 : index
    %386 = vector.load %arg3[%c2_258, %c0_259, %c0_260] : memref<3x288x32xf32, #tpu.memory_space<vmem>>, vector<1x288x32xf32>
    %387 = vector.shape_cast %386 : vector<1x288x32xf32> to vector<288x32xf32>
    %cst_261 = arith.constant dense<0.000000e+00> : vector<64x32xf32>
    %388 = tpu.matmul %385, %387, %cst_261 {dimension_numbers = #tpu.dot_dimension_numbers<[1], [0], [0], [1], [0, 0, 1, 1], [], []>} : vector<64x288xf32>, vector<288x32xf32>, vector<64x32xf32> -> vector<64x32xf32>
    %c2_262 = arith.constant 2 : index
    %c0_263 = arith.constant 0 : index
    %c0_264 = arith.constant 0 : index
    %389 = vector.load %arg4[%c2_262, %c0_263, %c0_264] : memref<3x32x32xf32, #tpu.memory_space<vmem>>, vector<1x32x32xf32>
    %390 = vector.shape_cast %389 : vector<1x32x32xf32> to vector<32x32xf32>
    %cst_265 = arith.constant dense<0.000000e+00> : vector<64x32xf32>
    %391 = tpu.matmul %388, %390, %cst_265 {dimension_numbers = #tpu.dot_dimension_numbers<[1], [0], [0], [1], [0, 0, 1, 1], [], []>} : vector<64x32xf32>, vector<32x32xf32>, vector<64x32xf32> -> vector<64x32xf32>
    %392 = vector.extract_strided_slice %1 {offsets = [3, 0], sizes = [1, 32], strides = [1, 1]} : vector<4x32xf32> to vector<1x32xf32>
    %393 = vector.broadcast %392 : vector<1x32xf32> to vector<64x32xf32>
    %394 = arith.addf %391, %393 : vector<64x32xf32>
    %c0_266 = arith.constant 0 : index
    %c0_267 = arith.constant 0 : index
    %c0_268 = arith.constant 0 : index
    %395 = vector.load %arg3[%c0_266, %c0_267, %c0_268] : memref<3x288x32xf32, #tpu.memory_space<vmem>>, vector<1x288x32xf32>
    %396 = vector.shape_cast %395 : vector<1x288x32xf32> to vector<288x32xf32>
    %cst_269 = arith.constant dense<0.000000e+00> : vector<64x32xf32>
    %397 = tpu.matmul %385, %396, %cst_269 {dimension_numbers = #tpu.dot_dimension_numbers<[1], [0], [0], [1], [0, 0, 1, 1], [], []>} : vector<64x288xf32>, vector<288x32xf32>, vector<64x32xf32> -> vector<64x32xf32>
    %c0_270 = arith.constant 0 : index
    %c0_271 = arith.constant 0 : index
    %c0_272 = arith.constant 0 : index
    %398 = vector.load %arg4[%c0_270, %c0_271, %c0_272] : memref<3x32x32xf32, #tpu.memory_space<vmem>>, vector<1x32x32xf32>
    %399 = vector.shape_cast %398 : vector<1x32x32xf32> to vector<32x32xf32>
    %cst_273 = arith.constant dense<0.000000e+00> : vector<64x32xf32>
    %400 = tpu.matmul %397, %399, %cst_273 {dimension_numbers = #tpu.dot_dimension_numbers<[1], [0], [0], [1], [0, 0, 1, 1], [], []>} : vector<64x32xf32>, vector<32x32xf32>, vector<64x32xf32> -> vector<64x32xf32>
    %401 = vector.extract_strided_slice %1 {offsets = [1, 0], sizes = [1, 32], strides = [1, 1]} : vector<4x32xf32> to vector<1x32xf32>
    %402 = vector.broadcast %401 : vector<1x32xf32> to vector<64x32xf32>
    %403 = arith.addf %400, %402 : vector<64x32xf32>
    %404 = vector.extract_strided_slice %2 {offsets = [1, 0], sizes = [1, 32], strides = [1, 1]} : vector<3x32xf32> to vector<1x32xf32>
    %cst_274 = arith.constant 0.000000e+00 : f32
    %405 = vector.broadcast %cst_274 : f32 to vector<64x32xf32>
    %406 = arith.cmpf oge, %403, %405 : vector<64x32xf32>
    %407 = vector.broadcast %404 : vector<1x32xf32> to vector<64x32xf32>
    %408 = arith.mulf %403, %407 : vector<64x32xf32>
    %409 = arith.select %406, %403, %408 : vector<64x32xi1>, vector<64x32xf32>
    %cst_275 = arith.constant 0.000000e+00 : f32
    %410 = vector.broadcast %cst_275 : f32 to vector<10x10x32xf32>
    %c0_276 = arith.constant 0 : index
    %c0_277 = arith.constant 0 : index
    %c0_278 = arith.constant 0 : index
    %411 = vector.load %arg9[%c0_276, %c0_277, %c0_278] : memref<10x10x32xf32, #tpu.memory_space<vmem>>, vector<10x10x32xf32>
    tpu.vector_store %arg9[%c0_276, %c0_277, %c0_278], %410 {strides = array<i32>} : memref<10x10x32xf32, #tpu.memory_space<vmem>>, vector<10x10x32xf32>,
    %412 = vector.shape_cast %409 : vector<64x32xf32> to vector<8x8x32xf32>
    %c1_279 = arith.constant 1 : index
    %c1_280 = arith.constant 1 : index
    %c0_281 = arith.constant 0 : index
    %413 = vector.load %arg9[%c1_279, %c1_280, %c0_281] : memref<10x10x32xf32, #tpu.memory_space<vmem>>, vector<8x8x32xf32>
    tpu.vector_store %arg9[%c1_279, %c1_280, %c0_281], %412 {strides = array<i32>} : memref<10x10x32xf32, #tpu.memory_space<vmem>>, vector<8x8x32xf32>,
    %c0_282 = arith.constant 0 : index
    %c0_283 = arith.constant 0 : index
    %c0_284 = arith.constant 0 : index
    %414 = vector.load %arg9[%c0_282, %c0_283, %c0_284] : memref<10x10x32xf32, #tpu.memory_space<vmem>>, vector<8x8x32xf32>
    %415 = vector.shape_cast %414 : vector<8x8x32xf32> to vector<64x32xf32>
    %c0_285 = arith.constant 0 : index
    %c0_286 = arith.constant 0 : index
    %416 = vector.load %arg10[%c0_285, %c0_286] : memref<64x288xf32, #tpu.memory_space<vmem>>, vector<64x32xf32>
    tpu.vector_store %arg10[%c0_285, %c0_286], %415 {strides = array<i32>} : memref<64x288xf32, #tpu.memory_space<vmem>>, vector<64x32xf32>,
    %c0_287 = arith.constant 0 : index
    %c1_288 = arith.constant 1 : index
    %c0_289 = arith.constant 0 : index
    %417 = vector.load %arg9[%c0_287, %c1_288, %c0_289] : memref<10x10x32xf32, #tpu.memory_space<vmem>>, vector<8x8x32xf32>
    %418 = vector.shape_cast %417 : vector<8x8x32xf32> to vector<64x32xf32>
    %c0_290 = arith.constant 0 : index
    %c32_291 = arith.constant 32 : index
    %419 = vector.load %arg10[%c0_290, %c32_291] : memref<64x288xf32, #tpu.memory_space<vmem>>, vector<64x32xf32>
    tpu.vector_store %arg10[%c0_290, %c32_291], %418 {strides = array<i32>} : memref<64x288xf32, #tpu.memory_space<vmem>>, vector<64x32xf32>,
    %c0_292 = arith.constant 0 : index
    %c2_293 = arith.constant 2 : index
    %c0_294 = arith.constant 0 : index
    %420 = vector.load %arg9[%c0_292, %c2_293, %c0_294] : memref<10x10x32xf32, #tpu.memory_space<vmem>>, vector<8x8x32xf32>
    %421 = vector.shape_cast %420 : vector<8x8x32xf32> to vector<64x32xf32>
    %c0_295 = arith.constant 0 : index
    %c64_296 = arith.constant 64 : index
    %422 = vector.load %arg10[%c0_295, %c64_296] : memref<64x288xf32, #tpu.memory_space<vmem>>, vector<64x32xf32>
    tpu.vector_store %arg10[%c0_295, %c64_296], %421 {strides = array<i32>} : memref<64x288xf32, #tpu.memory_space<vmem>>, vector<64x32xf32>,
    %c1_297 = arith.constant 1 : index
    %c0_298 = arith.constant 0 : index
    %c0_299 = arith.constant 0 : index
    %423 = vector.load %arg9[%c1_297, %c0_298, %c0_299] : memref<10x10x32xf32, #tpu.memory_space<vmem>>, vector<8x8x32xf32>
    %424 = vector.shape_cast %423 : vector<8x8x32xf32> to vector<64x32xf32>
    %c0_300 = arith.constant 0 : index
    %c96_301 = arith.constant 96 : index
    %425 = vector.load %arg10[%c0_300, %c96_301] : memref<64x288xf32, #tpu.memory_space<vmem>>, vector<64x32xf32>
    tpu.vector_store %arg10[%c0_300, %c96_301], %424 {strides = array<i32>} : memref<64x288xf32, #tpu.memory_space<vmem>>, vector<64x32xf32>,
    %c1_302 = arith.constant 1 : index
    %c1_303 = arith.constant 1 : index
    %c0_304 = arith.constant 0 : index
    %426 = vector.load %arg9[%c1_302, %c1_303, %c0_304] : memref<10x10x32xf32, #tpu.memory_space<vmem>>, vector<8x8x32xf32>
    %427 = vector.shape_cast %426 : vector<8x8x32xf32> to vector<64x32xf32>
    %c0_305 = arith.constant 0 : index
    %c128_306 = arith.constant 128 : index
    %428 = vector.load %arg10[%c0_305, %c128_306] : memref<64x288xf32, #tpu.memory_space<vmem>>, vector<64x32xf32>
    tpu.vector_store %arg10[%c0_305, %c128_306], %427 {strides = array<i32>} : memref<64x288xf32, #tpu.memory_space<vmem>>, vector<64x32xf32>,
    %c1_307 = arith.constant 1 : index
    %c2_308 = arith.constant 2 : index
    %c0_309 = arith.constant 0 : index
    %429 = vector.load %arg9[%c1_307, %c2_308, %c0_309] : memref<10x10x32xf32, #tpu.memory_space<vmem>>, vector<8x8x32xf32>
    %430 = vector.shape_cast %429 : vector<8x8x32xf32> to vector<64x32xf32>
    %c0_310 = arith.constant 0 : index
    %c160_311 = arith.constant 160 : index
    %431 = vector.load %arg10[%c0_310, %c160_311] : memref<64x288xf32, #tpu.memory_space<vmem>>, vector<64x32xf32>
    tpu.vector_store %arg10[%c0_310, %c160_311], %430 {strides = array<i32>} : memref<64x288xf32, #tpu.memory_space<vmem>>, vector<64x32xf32>,
    %c2_312 = arith.constant 2 : index
    %c0_313 = arith.constant 0 : index
    %c0_314 = arith.constant 0 : index
    %432 = vector.load %arg9[%c2_312, %c0_313, %c0_314] : memref<10x10x32xf32, #tpu.memory_space<vmem>>, vector<8x8x32xf32>
    %433 = vector.shape_cast %432 : vector<8x8x32xf32> to vector<64x32xf32>
    %c0_315 = arith.constant 0 : index
    %c192_316 = arith.constant 192 : index
    %434 = vector.load %arg10[%c0_315, %c192_316] : memref<64x288xf32, #tpu.memory_space<vmem>>, vector<64x32xf32>
    tpu.vector_store %arg10[%c0_315, %c192_316], %433 {strides = array<i32>} : memref<64x288xf32, #tpu.memory_space<vmem>>, vector<64x32xf32>,
    %c2_317 = arith.constant 2 : index
    %c1_318 = arith.constant 1 : index
    %c0_319 = arith.constant 0 : index
    %435 = vector.load %arg9[%c2_317, %c1_318, %c0_319] : memref<10x10x32xf32, #tpu.memory_space<vmem>>, vector<8x8x32xf32>
    %436 = vector.shape_cast %435 : vector<8x8x32xf32> to vector<64x32xf32>
    %c0_320 = arith.constant 0 : index
    %c224_321 = arith.constant 224 : index
    %437 = vector.load %arg10[%c0_320, %c224_321] : memref<64x288xf32, #tpu.memory_space<vmem>>, vector<64x32xf32>
    tpu.vector_store %arg10[%c0_320, %c224_321], %436 {strides = array<i32>} : memref<64x288xf32, #tpu.memory_space<vmem>>, vector<64x32xf32>,
    %c2_322 = arith.constant 2 : index
    %c2_323 = arith.constant 2 : index
    %c0_324 = arith.constant 0 : index
    %438 = vector.load %arg9[%c2_322, %c2_323, %c0_324] : memref<10x10x32xf32, #tpu.memory_space<vmem>>, vector<8x8x32xf32>
    %439 = vector.shape_cast %438 : vector<8x8x32xf32> to vector<64x32xf32>
    %c0_325 = arith.constant 0 : index
    %c256_326 = arith.constant 256 : index
    %440 = vector.load %arg10[%c0_325, %c256_326] : memref<64x288xf32, #tpu.memory_space<vmem>>, vector<64x32xf32>
    tpu.vector_store %arg10[%c0_325, %c256_326], %439 {strides = array<i32>} : memref<64x288xf32, #tpu.memory_space<vmem>>, vector<64x32xf32>,
    %c0_327 = arith.constant 0 : index
    %c0_328 = arith.constant 0 : index
    %441 = vector.load %arg10[%c0_327, %c0_328] : memref<64x288xf32, #tpu.memory_space<vmem>>, vector<64x288xf32>
    %c1_329 = arith.constant 1 : index
    %c0_330 = arith.constant 0 : index
    %c0_331 = arith.constant 0 : index
    %442 = vector.load %arg3[%c1_329, %c0_330, %c0_331] : memref<3x288x32xf32, #tpu.memory_space<vmem>>, vector<1x288x32xf32>
    %443 = vector.shape_cast %442 : vector<1x288x32xf32> to vector<288x32xf32>
    %cst_332 = arith.constant dense<0.000000e+00> : vector<64x32xf32>
    %444 = tpu.matmul %441, %443, %cst_332 {dimension_numbers = #tpu.dot_dimension_numbers<[1], [0], [0], [1], [0, 0, 1, 1], [], []>} : vector<64x288xf32>, vector<288x32xf32>, vector<64x32xf32> -> vector<64x32xf32>
    %c1_333 = arith.constant 1 : index
    %c0_334 = arith.constant 0 : index
    %c0_335 = arith.constant 0 : index
    %445 = vector.load %arg4[%c1_333, %c0_334, %c0_335] : memref<3x32x32xf32, #tpu.memory_space<vmem>>, vector<1x32x32xf32>
    %446 = vector.shape_cast %445 : vector<1x32x32xf32> to vector<32x32xf32>
    %cst_336 = arith.constant dense<0.000000e+00> : vector<64x32xf32>
    %447 = tpu.matmul %444, %446, %cst_336 {dimension_numbers = #tpu.dot_dimension_numbers<[1], [0], [0], [1], [0, 0, 1, 1], [], []>} : vector<64x32xf32>, vector<32x32xf32>, vector<64x32xf32> -> vector<64x32xf32>
    %448 = vector.extract_strided_slice %1 {offsets = [2, 0], sizes = [1, 32], strides = [1, 1]} : vector<4x32xf32> to vector<1x32xf32>
    %449 = vector.broadcast %448 : vector<1x32xf32> to vector<64x32xf32>
    %450 = arith.addf %447, %449 : vector<64x32xf32>
    %451 = arith.addf %450, %394 : vector<64x32xf32>
    %452 = vector.extract_strided_slice %2 {offsets = [2, 0], sizes = [1, 32], strides = [1, 1]} : vector<3x32xf32> to vector<1x32xf32>
    %cst_337 = arith.constant 0.000000e+00 : f32
    %453 = vector.broadcast %cst_337 : f32 to vector<64x32xf32>
    %454 = arith.cmpf oge, %451, %453 : vector<64x32xf32>
    %455 = vector.broadcast %452 : vector<1x32xf32> to vector<64x32xf32>
    %456 = arith.mulf %451, %455 : vector<64x32xf32>
    %457 = arith.select %454, %451, %456 : vector<64x32xi1>, vector<64x32xf32>
    %458 = vector.shape_cast %457 : vector<64x32xf32> to vector<8x8x32xf32>
    %c0_338 = arith.constant 0 : index
    %c0_339 = arith.constant 0 : index
    %c0_340 = arith.constant 0 : index
    %c0_341 = arith.constant 0 : index
    %459 = vector.load %arg7[%c0_338, %c0_339, %c0_340, %c0_341] : memref<1x8x8x32xf32, #tpu.memory_space<vmem>>, vector<1x8x8x32xf32>
    %460 = vector.shape_cast %459 : vector<1x8x8x32xf32> to vector<8x8x32xf32>
    %461 = vector.shape_cast %458 : vector<8x8x32xf32> to vector<1x8x8x32xf32>
    tpu.vector_store %arg7[%c0_338, %c0_339, %c0_340, %c0_341], %461 {strides = array<i32>} : memref<1x8x8x32xf32, #tpu.memory_space<vmem>>, vector<1x8x8x32xf32>,
    return
  }
  func.func @transform_0(%arg0: i32) -> (i32, i32, i32, i32, i32) {
    %c0_i32 = arith.constant 0 : i32
    %c0_i32_0 = arith.constant 0 : i32
    %c0_i32_1 = arith.constant 0 : i32
    %c0_i32_2 = arith.constant 0 : i32
    %c0_i32_3 = arith.constant 0 : i32
    return %arg0, %c0_i32, %c0_i32_0, %c0_i32_1, %c0_i32_2 : i32, i32, i32, i32, i32
  }
  func.func @transform_1(%arg0: i32) -> (i32, i32) {
    %c0_i32 = arith.constant 0 : i32
    %c0_i32_0 = arith.constant 0 : i32
    %c0_i32_1 = arith.constant 0 : i32
    return %c0_i32, %c0_i32_0 : i32, i32
  }
  func.func @transform_2(%arg0: i32) -> (i32, i32, i32) {
    %c0_i32 = arith.constant 0 : i32
    %c0_i32_0 = arith.constant 0 : i32
    %c0_i32_1 = arith.constant 0 : i32
    %c0_i32_2 = arith.constant 0 : i32
    return %c0_i32, %c0_i32_0, %c0_i32_1 : i32, i32, i32
  }
  func.func @transform_3(%arg0: i32) -> (i32, i32, i32) {
    %c0_i32 = arith.constant 0 : i32
    %c0_i32_0 = arith.constant 0 : i32
    %c0_i32_1 = arith.constant 0 : i32
    %c0_i32_2 = arith.constant 0 : i32
    return %c0_i32, %c0_i32_0, %c0_i32_1 : i32, i32, i32
  }
  func.func @transform_4(%arg0: i32) -> (i32, i32) {
    %c0_i32 = arith.constant 0 : i32
    %c0_i32_0 = arith.constant 0 : i32
    %c0_i32_1 = arith.constant 0 : i32
    return %c0_i32, %c0_i32_0 : i32, i32
  }
  func.func @transform_5(%arg0: i32) -> (i32, i32) {
    %c0_i32 = arith.constant 0 : i32
    %c0_i32_0 = arith.constant 0 : i32
    %c0_i32_1 = arith.constant 0 : i32
    return %c0_i32, %c0_i32_0 : i32, i32
  }
  func.func @transform_6(%arg0: i32) -> (i32, i32, i32, i32) {
    %c0_i32 = arith.constant 0 : i32
    %c0_i32_0 = arith.constant 0 : i32
    %c0_i32_1 = arith.constant 0 : i32
    %c0_i32_2 = arith.constant 0 : i32
    return %arg0, %c0_i32, %c0_i32_0, %c0_i32_1 : i32, i32, i32, i32
  }
}

</mosaic_0001>

<llo_original>
// kernel: head_block_pallas.1
$region0: #{head_block_pallas.1}
  #allocation0 [shape = 'u32[]', space=smem, size = 0x4, offset = 0x4, fixed_abs, tag = 'smem constant byte address 0x4 - core index']
  #allocation1 [shape = 'u32[144,128]{1,0:T(1,128)}', space=vmem, size = 0x12000, scoped, tag = 'internal scratch']
  #allocation2 [shape = 'f32[4,9,9,32]{3,2,1,0:T(8,128)}', space=vmem, size = 0x48000, scoped, tag = 'scratch operand']
  #allocation3 [shape = 'f32[10,10,32]{2,1,0:T(8,128)}', space=vmem, size = 0x14000, scoped, tag = 'scratch operand']
  #allocation4 [shape = 'f32[64,288]{1,0:T(8,128)}', space=vmem, size = 0x18000, scoped, tag = 'scratch operand']
  %s0 = inlined_call_operand.vmem [shape: f32[2,4,10,10,1], index: 0, kind: input, shape index: {}]
  %s1 = inlined_call_operand.vmem [shape: f32[9,32], index: 1, kind: input, shape index: {}]
  %s2 = inlined_call_operand.vmem [shape: f32[3,288,32], index: 2, kind: input, shape index: {}]
  %s3 = inlined_call_operand.vmem [shape: f32[3,32,32], index: 3, kind: input, shape index: {}]
  %s4 = inlined_call_operand.vmem [shape: f32[4,32], index: 4, kind: input, shape index: {}]
  %s5 = inlined_call_operand.vmem [shape: f32[3,32], index: 5, kind: input, shape index: {}]
  %s6 = inlined_call_operand.hbm [shape: f32[2,8,8,32], index: 6, kind: output, shape index: {}]
  %s7 = sld [smem:[#allocation0]]
  $region57: #{head_block_pallas.1} parent=0
    _
  %s9 = ssub.s32 1, %s7
  %s10 = scalar_select 0, %s9, %s7
  $region1: #{head_block_pallas.1} parent=0
    #allocation5 [shape = 'u8[65536]{0}', space=vmem, size = 0x10000, scoped, tag = 'output window, operand 0']
    #allocation6 [shape = 's32[2]{0}', space=sflag, size = 0x8, scoped, tag = 'scoped memory for head_block_pallas.1']
    %11 = vsyncpa [#allocation6], 0
    %s12 = scalar_lea.sflag [#allocation6], 1
    %13 = vsyncpa %s12, 0
    loop: start=0, step=1, limit=4
    $region2: #{head_block_pallas.1} parent=1 // loop_pre_header
      _
    $region3: #{head_block_pallas.1} parent=1 // loop_header
      %s15 = sphi 0, %s19
      %p16 = scmp.ge.s32.totalorder %s15, 4
      %s25 = sphi 0, %s27
      %s28 = sphi 0, %s25
      %s29 = sphi 0, %s28
      %s45 = sphi 0, %s29
      %s49 = sphi 0, %s49
      %s51 = sphi 0, %s49
      %s52 = sphi 0, %s51
      %s66 = sphi 0, %s52
      %s70 = sphi 0, %s70
      %s72 = sphi 0, %s70
      %s73 = sphi 0, %s72
      %s87 = sphi 0, %s73
      %s91 = sphi 0, %s91
      %s93 = sphi 0, %s91
      %s94 = sphi 0, %s93
      %s108 = sphi 0, %s94
      %s112 = sphi 0, %s112
      %s114 = sphi 0, %s112
      %s115 = sphi 0, %s114
      %s129 = sphi 0, %s115
      %s133 = sphi 0, %s133
      %s135 = sphi 0, %s133
      %s136 = sphi 0, %s135
      %s150 = sphi 0, %s136
      %s156 = sphi 0, %s158
      %s159 = sphi 0, %s156
      %s160 = sphi 0, %s159
      %s176 = sphi 0, %s160
    $region4: #{head_block_pallas.1} parent=1 // loop_header_branch
      %18 = sbr.rel (%p16) target = $region8
    $region5: #{head_block_pallas.1} parent=1 // loop_body
      %s20 = ssub.s32 %s15, 1
      %s21 = ssub.s32 %s15, 2
      %s22 = sadd.s32 %s15, 1
      %s23 = ssub.s32 %s15, %s22
      %p24 = scmp.eq.s32.totalorder %s23, 0
      %s26 = sadd.s32 %s25, 1
      %s27 = scalar_select %p24, %s25, %s26
      %p30 = pneg %p24
      %p31 = scmp.eq.s32.totalorder %s15, 1
      %p32 = por %p30, %p31
      %p33 = scmp.ne.s32.totalorder %s25, %s28
      %p34 = scmp.eq.s32.totalorder %s15, 0
      %p35 = por %p33, %p34
      %p36 = scmp.ne.s32.totalorder %s25, %s28
      %p37 = scmp.eq.s32.totalorder %s20, 1
      %p38 = por %p36, %p37
      %p39 = scmp.ne.s32.totalorder %s28, %s29
      %p40 = scmp.eq.s32.totalorder %s20, 0
      %p41 = por %p39, %p40
      %p42 = scmp.ne.s32.totalorder %s28, %s29
      %p43 = scmp.eq.s32.totalorder %s21, 1
      %p44 = por %p42, %p43
      %p46 = scmp.ne.s32.totalorder %s29, %s45
      %p47 = scmp.eq.s32.totalorder %s21, 0
      %p48 = por %p46, %p47
      %s50 = sadd.s32 %s49, 1
      %p53 = scmp.eq.s32.totalorder %s15, 1
      %p54 = scmp.ne.s32.totalorder %s49, %s51
      %p55 = scmp.eq.s32.totalorder %s15, 0
      %p56 = por %p54, %p55
      %p57 = scmp.ne.s32.totalorder %s49, %s51
      %p58 = scmp.eq.s32.totalorder %s20, 1
      %p59 = por %p57, %p58
      %p60 = scmp.ne.s32.totalorder %s51, %s52
      %p61 = scmp.eq.s32.totalorder %s20, 0
      %p62 = por %p60, %p61
      %p63 = scmp.ne.s32.totalorder %s51, %s52
      %p64 = scmp.eq.s32.totalorder %s21, 1
      %p65 = por %p63, %p64
      %p67 = scmp.ne.s32.totalorder %s52, %s66
      %p68 = scmp.eq.s32.totalorder %s21, 0
      %p69 = por %p67, %p68
      %s71 = sadd.s32 %s70, 1
      %p74 = scmp.eq.s32.totalorder %s15, 1
      %p75 = scmp.ne.s32.totalorder %s70, %s72
      %p76 = scmp.eq.s32.totalorder %s15, 0
      %p77 = por %p75, %p76
      %p78 = scmp.ne.s32.totalorder %s70, %s72
      %p79 = scmp.eq.s32.totalorder %s20, 1
      %p80 = por %p78, %p79
      %p81 = scmp.ne.s32.totalorder %s72, %s73
      %p82 = scmp.eq.s32.totalorder %s20, 0
      %p83 = por %p81, %p82
      %p84 = scmp.ne.s32.totalorder %s72, %s73
      %p85 = scmp.eq.s32.totalorder %s21, 1
      %p86 = por %p84, %p85
      %p88 = scmp.ne.s32.totalorder %s73, %s87
      %p89 = scmp.eq.s32.totalorder %s21, 0
      %p90 = por %p88, %p89
      %s92 = sadd.s32 %s91, 1
      %p95 = scmp.eq.s32.totalorder %s15, 1
      %p96 = scmp.ne.s32.totalorder %s91, %s93
      %p97 = scmp.eq.s32.totalorder %s15, 0
      %p98 = por %p96, %p97
      %p99 = scmp.ne.s32.totalorder %s91, %s93
      %p100 = scmp.eq.s32.totalorder %s20, 1
      %p101 = por %p99, %p100
      %p102 = scmp.ne.s32.totalorder %s93, %s94
      %p103 = scmp.eq.s32.totalorder %s20, 0
      %p104 = por %p102, %p103
      %p105 = scmp.ne.s32.totalorder %s93, %s94
      %p106 = scmp.eq.s32.totalorder %s21, 1
      %p107 = por %p105, %p106
      %p109 = scmp.ne.s32.totalorder %s94, %s108
      %p110 = scmp.eq.s32.totalorder %s21, 0
      %p111 = por %p109, %p110
      %s113 = sadd.s32 %s112, 1
      %p116 = scmp.eq.s32.totalorder %s15, 1
      %p117 = scmp.ne.s32.totalorder %s112, %s114
      %p118 = scmp.eq.s32.totalorder %s15, 0
      %p119 = por %p117, %p118
      %p120 = scmp.ne.s32.totalorder %s112, %s114
      %p121 = scmp.eq.s32.totalorder %s20, 1
      %p122 = por %p120, %p121
      %p123 = scmp.ne.s32.totalorder %s114, %s115
      %p124 = scmp.eq.s32.totalorder %s20, 0
      %p125 = por %p123, %p124
      %p126 = scmp.ne.s32.totalorder %s114, %s115
      %p127 = scmp.eq.s32.totalorder %s21, 1
      %p128 = por %p126, %p127
      %p130 = scmp.ne.s32.totalorder %s115, %s129
      %p131 = scmp.eq.s32.totalorder %s21, 0
      %p132 = por %p130, %p131
      %s134 = sadd.s32 %s133, 1
      %p137 = scmp.eq.s32.totalorder %s15, 1
      %p138 = scmp.ne.s32.totalorder %s133, %s135
      %p139 = scmp.eq.s32.totalorder %s15, 0
      %p140 = por %p138, %p139
      %p141 = scmp.ne.s32.totalorder %s133, %s135
      %p142 = scmp.eq.s32.totalorder %s20, 1
      %p143 = por %p141, %p142
      %p144 = scmp.ne.s32.totalorder %s135, %s136
      %p145 = scmp.eq.s32.totalorder %s20, 0
      %p146 = por %p144, %p145
      %p147 = scmp.ne.s32.totalorder %s135, %s136
      %p148 = scmp.eq.s32.totalorder %s21, 1
      %p149 = por %p147, %p148
      %p151 = scmp.ne.s32.totalorder %s136, %s150
      %p152 = scmp.eq.s32.totalorder %s21, 0
      %p153 = por %p151, %p152
      %s154 = ssub.s32 %s15, %s22
      %p155 = scmp.eq.s32.totalorder %s154, 0
      %s157 = sadd.s32 %s156, 1
      %s158 = scalar_select %p155, %s156, %s157
      %p161 = pneg %p155
      %p162 = scmp.eq.s32.totalorder %s15, 1
      %p163 = por %p161, %p162
      %p164 = scmp.ne.s32.totalorder %s156, %s159
      %p165 = scmp.eq.s32.totalorder %s15, 0
      %p166 = por %p164, %p165
      %p167 = scmp.ne.s32.totalorder %s156, %s159
      %p168 = scmp.eq.s32.totalorder %s20, 1
      %p169 = por %p167, %p168
      %p170 = scmp.ne.s32.totalorder %s159, %s160
      %p171 = scmp.eq.s32.totalorder %s20, 0
      %p172 = por %p170, %p171
      %p173 = scmp.ne.s32.totalorder %s159, %s160
      %p174 = scmp.eq.s32.totalorder %s21, 1
      %p175 = por %p173, %p174
      %p177 = scmp.ne.s32.totalorder %s160, %s176
      %p178 = scmp.eq.s32.totalorder %s21, 0
      %p179 = por %p177, %p178
      %p180 = scmp.le.s32.totalorder 1, %s15
      %p181 = scmp.lt.s32.totalorder %s15, 3
      %p182 = pnand %p180, %p181
      %p183 = pneg %p182
      // Predicated region
      $region9: #{head_block_pallas.1} parent=5 // pred_check
        _
      $region10: #{head_block_pallas.1} parent=5 // pred_check_branch
        %185 = sbr.rel (%p182) target = $region12
      $region11: #{head_block_pallas.1} parent=5 // pred_region
        %s186 = ssub.s32 %s15, 1
        // Predicated region
        $region13: #{head_block_pallas.1} parent=11 // pred_check
          %p187 = pneg %p62
        $region14: #{head_block_pallas.1} parent=11 // pred_check_branch
          %189 = sbr.rel (%p187) target = $region16
        $region15: #{head_block_pallas.1} parent=11 // pred_region
          _
        $region16: #{head_block_pallas.1} parent=11 // pred_fallthru
          _
        // Predicated region
        $region17: #{head_block_pallas.1} parent=11 // pred_check
          %p190 = pneg %p83
        $region18: #{head_block_pallas.1} parent=11 // pred_check_branch
          %192 = sbr.rel (%p190) target = $region20
        $region19: #{head_block_pallas.1} parent=11 // pred_region
          _
        $region20: #{head_block_pallas.1} parent=11 // pred_fallthru
          _
        // Predicated region
        $region21: #{head_block_pallas.1} parent=11 // pred_check
          %p193 = pneg %p104
        $region22: #{head_block_pallas.1} parent=11 // pred_check_branch
          %195 = sbr.rel (%p193) target = $region24
        $region23: #{head_block_pallas.1} parent=11 // pred_region
          _
        $region24: #{head_block_pallas.1} parent=11 // pred_fallthru
          _
        // Predicated region
        $region25: #{head_block_pallas.1} parent=11 // pred_check
          %p196 = pneg %p125
        $region26: #{head_block_pallas.1} parent=11 // pred_check_branch
          %198 = sbr.rel (%p196) target = $region28
        $region27: #{head_block_pallas.1} parent=11 // pred_region
          _
        $region28: #{head_block_pallas.1} parent=11 // pred_fallthru
          _
        // Predicated region
        $region29: #{head_block_pallas.1} parent=11 // pred_check
          %p199 = pneg %p146
        $region30: #{head_block_pallas.1} parent=11 // pred_check_branch
          %201 = sbr.rel (%p199) target = $region32
        $region31: #{head_block_pallas.1} parent=11 // pred_region
          _
        $region32: #{head_block_pallas.1} parent=11 // pred_fallthru
          _
      $region12: #{head_block_pallas.1} parent=5 // pred_fallthru
        _
      %p202 = scmp.lt.s32.totalorder %s15, 2
      // Predicated region
      $region33: #{head_block_pallas.1} parent=5 // pred_check
        %p203 = pneg %p202
      $region34: #{head_block_pallas.1} parent=5 // pred_check_branch
        %205 = sbr.rel (%p203) target = $region36
      $region35: #{head_block_pallas.1} parent=5 // pred_region
        // Predicated region
        $region37: #{head_block_pallas.1} parent=35 // pred_check
          %p206 = pneg %p35
        $region38: #{head_block_pallas.1} parent=35 // pred_check_branch
          %208 = sbr.rel (%p206) target = $region40
        $region39: #{head_block_pallas.1} parent=35 // pred_region
          %p209 = scmp.lt.s32.totalorder %s15, 1
          %s210 = scalar_select %p209, %s15, 1
          %s211 = smul.addr %s210, 80
          %s212 = smul.addr %s211, 8
          %s213 = scalar_lea.vmem %s0, %s212
        $region40: #{head_block_pallas.1} parent=35 // pred_fallthru
          _
      $region36: #{head_block_pallas.1} parent=5 // pred_fallthru
        _
      %p214 = scmp.le.s32.totalorder 1, %s15
      %p215 = scmp.lt.s32.totalorder %s15, 3
      %p216 = pnand %p214, %p215
      %p217 = pneg %p216
      // Predicated region
      $region41: #{head_block_pallas.1} parent=5 // pred_check
        _
      $region42: #{head_block_pallas.1} parent=5 // pred_check_branch
        %219 = sbr.rel (%p216) target = $region44
      $region43: #{head_block_pallas.1} parent=5 // pred_region
        %s220 = ssub.s32 %s15, 1
        %p221 = scmp.lt.s32.totalorder %s20, 1
        %s222 = scalar_select %p221, %s20, 1
        %s223 = smul.addr %s222, 80
        %s224 = smul.addr %s223, 8
        %s225 = scalar_lea.vmem %s0, %s224
        %p226 = pneg %p41
        %p227 = pneg %p38
        %p228 = pneg %p62
        %p229 = pneg %p59
        %p230 = pneg %p83
        %p231 = pneg %p80
        %p232 = pneg %p104
        %p233 = pneg %p101
        %p234 = pneg %p125
        %p235 = pneg %p122
        %p236 = pneg %p146
        %p237 = pneg %p143
        %p238 = pneg %p172
        %p239 = pneg %p169
        %s240 = sand.u32 %s159, 1
        %s241 = scalar_lea.sflag [#allocation6], %s240
        %s242 = sand.u32 %s159, 1
        %s243 = smul.addr %s242, 64
        %s244 = scalar_lea.vmem [#allocation5], %s243
        %p245 = scmp.lt.s32.totalorder %s20, 1
        %s246 = scalar_select %p245, %s20, 1
        %s247 = smul.addr %s246, 80
        %s248 = smul.addr %s247, 8
        %s249 = scalar_lea.vmem %s0, %s248
        %v250 = vld [vmem:[%s1] sm:$0xff]
        %v251 = vld [vmem:[%s1 + $0x8] sm:$0x1]
        %v252 = vld [vmem:[%s4] sm:$0xf]
        %v253 = vld [vmem:[%s5] sm:$0x7]
        %vm254 = vcmask 261120
        %255 = vst.msk [vmem:[#allocation2] sm:$0xff] %vm254, 0.0
        %vm256 = vcmask 253952
        %257 = vst.msk [vmem:[#allocation2 + $0x8] sm:$0x1] %vm256, 0.0
        %258 = vst.msk [vmem:[#allocation2 + $0x10] sm:$0xff] %vm254, 0.0
        %259 = vst.msk [vmem:[#allocation2 + $0x18] sm:$0x1] %vm256, 0.0
        %260 = vst.msk [vmem:[#allocation2 + $0x20] sm:$0xff] %vm254, 0.0
        %261 = vst.msk [vmem:[#allocation2 + $0x28] sm:$0x1] %vm256, 0.0
        %262 = vst.msk [vmem:[#allocation2 + $0x30] sm:$0xff] %vm254, 0.0
        %263 = vst.msk [vmem:[#allocation2 + $0x38] sm:$0x1] %vm256, 0.0
        %264 = vst.msk [vmem:[#allocation2 + $0x40] sm:$0xff] %vm254, 0.0
        %265 = vst.msk [vmem:[#allocation2 + $0x48] sm:$0x1] %vm256, 0.0
        %266 = vst.msk [vmem:[#allocation2 + $0x50] sm:$0xff] %vm254, 0.0
        %267 = vst.msk [vmem:[#allocation2 + $0x58] sm:$0x1] %vm256, 0.0
        %268 = vst.msk [vmem:[#allocation2 + $0x60] sm:$0xff] %vm254, 0.0
        %269 = vst.msk [vmem:[#allocation2 + $0x68] sm:$0x1] %vm256, 0.0
        %270 = vst.msk [vmem:[#allocation2 + $0x70] sm:$0xff] %vm254, 0.0
        %271 = vst.msk [vmem:[#allocation2 + $0x78] sm:$0x1] %vm256, 0.0
        %272 = vst.msk [vmem:[#allocation2 + $0x80] sm:$0xff] %vm254, 0.0
        %273 = vst.msk [vmem:[#allocation2 + $0x88] sm:$0x1] %vm256, 0.0
        %274 = vst.msk [vmem:[#allocation2 + $0x90] sm:$0xff] %vm254, 0.0
        %275 = vst.msk [vmem:[#allocation2 + $0x98] sm:$0x1] %vm256, 0.0
        %276 = vst.msk [vmem:[#allocation2 + $0xa0] sm:$0xff] %vm254, 0.0
        %277 = vst.msk [vmem:[#allocation2 + $0xa8] sm:$0x1] %vm256, 0.0
        %278 = vst.msk [vmem:[#allocation2 + $0xb0] sm:$0xff] %vm254, 0.0
        %279 = vst.msk [vmem:[#allocation2 + $0xb8] sm:$0x1] %vm256, 0.0
        %280 = vst.msk [vmem:[#allocation2 + $0xc0] sm:$0xff] %vm254, 0.0
        %281 = vst.msk [vmem:[#allocation2 + $0xc8] sm:$0x1] %vm256, 0.0
        %282 = vst.msk [vmem:[#allocation2 + $0xd0] sm:$0xff] %vm254, 0.0
        %283 = vst.msk [vmem:[#allocation2 + $0xd8] sm:$0x1] %vm256, 0.0
        %284 = vst.msk [vmem:[#allocation2 + $0xe0] sm:$0xff] %vm254, 0.0
        %285 = vst.msk [vmem:[#allocation2 + $0xe8] sm:$0x1] %vm256, 0.0
        %286 = vst.msk [vmem:[#allocation2 + $0xf0] sm:$0xff] %vm254, 0.0
        %287 = vst.msk [vmem:[#allocation2 + $0xf8] sm:$0x1] %vm256, 0.0
        %288 = vst.msk [vmem:[#allocation2 + $0x100] sm:$0xff] %vm254, 0.0
        %289 = vst.msk [vmem:[#allocation2 + $0x108] sm:$0x1] %vm256, 0.0
        %290 = vst.msk [vmem:[#allocation2 + $0x110] sm:$0xff] %vm254, 0.0
        %291 = vst.msk [vmem:[#allocation2 + $0x118] sm:$0x1] %vm256, 0.0
        %292 = vst.msk [vmem:[#allocation2 + $0x120] sm:$0xff] %vm254, 0.0
        %293 = vst.msk [vmem:[#allocation2 + $0x128] sm:$0x1] %vm256, 0.0
        %294 = vst.msk [vmem:[#allocation2 + $0x130] sm:$0xff] %vm254, 0.0
        %295 = vst.msk [vmem:[#allocation2 + $0x138] sm:$0x1] %vm256, 0.0
        %296 = vst.msk [vmem:[#allocation2 + $0x140] sm:$0xff] %vm254, 0.0
        %297 = vst.msk [vmem:[#allocation2 + $0x148] sm:$0x1] %vm256, 0.0
        %298 = vst.msk [vmem:[#allocation2 + $0x150] sm:$0xff] %vm254, 0.0
        %299 = vst.msk [vmem:[#allocation2 + $0x158] sm:$0x1] %vm256, 0.0
        %300 = vst.msk [vmem:[#allocation2 + $0x160] sm:$0xff] %vm254, 0.0
        %301 = vst.msk [vmem:[#allocation2 + $0x168] sm:$0x1] %vm256, 0.0
        %302 = vst.msk [vmem:[#allocation2 + $0x170] sm:$0xff] %vm254, 0.0
        %303 = vst.msk [vmem:[#allocation2 + $0x178] sm:$0x1] %vm256, 0.0
        %304 = vst.msk [vmem:[#allocation2 + $0x180] sm:$0xff] %vm254, 0.0
        %305 = vst.msk [vmem:[#allocation2 + $0x188] sm:$0x1] %vm256, 0.0
        %306 = vst.msk [vmem:[#allocation2 + $0x190] sm:$0xff] %vm254, 0.0
        %307 = vst.msk [vmem:[#allocation2 + $0x198] sm:$0x1] %vm256, 0.0
        %308 = vst.msk [vmem:[#allocation2 + $0x1a0] sm:$0xff] %vm254, 0.0
        %309 = vst.msk [vmem:[#allocation2 + $0x1a8] sm:$0x1] %vm256, 0.0
        %310 = vst.msk [vmem:[#allocation2 + $0x1b0] sm:$0xff] %vm254, 0.0
        %311 = vst.msk [vmem:[#allocation2 + $0x1b8] sm:$0x1] %vm256, 0.0
        %312 = vst.msk [vmem:[#allocation2 + $0x1c0] sm:$0xff] %vm254, 0.0
        %313 = vst.msk [vmem:[#allocation2 + $0x1c8] sm:$0x1] %vm256, 0.0
        %314 = vst.msk [vmem:[#allocation2 + $0x1d0] sm:$0xff] %vm254, 0.0
        %315 = vst.msk [vmem:[#allocation2 + $0x1d8] sm:$0x1] %vm256, 0.0
        %316 = vst.msk [vmem:[#allocation2 + $0x1e0] sm:$0xff] %vm254, 0.0
        %317 = vst.msk [vmem:[#allocation2 + $0x1e8] sm:$0x1] %vm256, 0.0
        %318 = vst.msk [vmem:[#allocation2 + $0x1f0] sm:$0xff] %vm254, 0.0
        %319 = vst.msk [vmem:[#allocation2 + $0x1f8] sm:$0x1] %vm256, 0.0
        %320 = vst.msk [vmem:[#allocation2 + $0x200] sm:$0xff] %vm254, 0.0
        %321 = vst.msk [vmem:[#allocation2 + $0x208] sm:$0x1] %vm256, 0.0
        %322 = vst.msk [vmem:[#allocation2 + $0x210] sm:$0xff] %vm254, 0.0
        %323 = vst.msk [vmem:[#allocation2 + $0x218] sm:$0x1] %vm256, 0.0
        %324 = vst.msk [vmem:[#allocation2 + $0x220] sm:$0xff] %vm254, 0.0
        %325 = vst.msk [vmem:[#allocation2 + $0x228] sm:$0x1] %vm256, 0.0
        %326 = vst.msk [vmem:[#allocation2 + $0x230] sm:$0xff] %vm254, 0.0
        %327 = vst.msk [vmem:[#allocation2 + $0x238] sm:$0x1] %vm256, 0.0
        %s328 = scalar_lea.vmem %s249, 16
        %v329 = vld [vmem:[%s328 + $0x1] sm:$0xff]
        %v330 = vld [vmem:[%s328 + $0x11] sm:$0xff]
        %v331 = vld [vmem:[%s328 + $0x21] sm:$0xff]
        %v332 = vld [vmem:[%s328 + $0x31] sm:$0xff]
        %v333 = vld [vmem:[%s328 + $0x41] sm:$0xff]
        %v334 = vld [vmem:[%s328 + $0x51] sm:$0xff]
        %v335 = vld [vmem:[%s328 + $0x61] sm:$0xff]
        %v336 = vld [vmem:[%s328 + $0x71] sm:$0xff]
        %338 = vset.pattern.permute.xlu0 0
        %339 = vperm.xlu0 %338, %v329
        %v340 = vpop.permute.xlu0 %339
        %343 = vset.pattern.permute.xlu0 0
        %344 = vperm.xlu0 %343, %v330
        %v345 = vpop.permute.xlu0 %344
        %348 = vset.pattern.permute.xlu0 0
        %349 = vperm.xlu0 %348, %v331
        %v350 = vpop.permute.xlu0 %349
        %353 = vset.pattern.permute.xlu0 0
        %354 = vperm.xlu0 %353, %v332
        %v355 = vpop.permute.xlu0 %354
        %358 = vset.pattern.permute.xlu0 0
        %359 = vperm.xlu0 %358, %v333
        %v360 = vpop.permute.xlu0 %359
        %363 = vset.pattern.permute.xlu0 0
        %364 = vperm.xlu0 %363, %v334
        %v365 = vpop.permute.xlu0 %364
        %368 = vset.pattern.permute.xlu0 0
        %369 = vperm.xlu0 %368, %v335
        %v370 = vpop.permute.xlu0 %369
        %373 = vset.pattern.permute.xlu0 0
        %374 = vperm.xlu0 %373, %v336
        %v375 = vpop.permute.xlu0 %374
        %v377 = vlaneseq
        %v378 = vshrl.u32 %v377, 7
        %v379 = vsub.s32 0, %v378
        %v380 = vrot.slane %v250, %v379
        %v381 = vmul.f32 %v340, %v380
        %v382 = vmul.f32 %v345, %v380
        %v383 = vmul.f32 %v350, %v380
        %v384 = vmul.f32 %v355, %v380
        %v385 = vmul.f32 %v360, %v380
        %v386 = vmul.f32 %v365, %v380
        %v387 = vmul.f32 %v370, %v380
        %v388 = vmul.f32 %v375, %v380
        %v389 = vadd.f32 %v381, 0.0
        %v390 = vadd.f32 %v382, 0.0
        %v391 = vadd.f32 %v383, 0.0
        %v392 = vadd.f32 %v384, 0.0
        %v393 = vadd.f32 %v385, 0.0
        %v394 = vadd.f32 %v386, 0.0
        %v395 = vadd.f32 %v387, 0.0
        %v396 = vadd.f32 %v388, 0.0
        %s397 = scalar_lea.vmem %s249, 176
        %v398 = vld [vmem:[%s397 + $0x1] sm:$0xff]
        %v399 = vld [vmem:[%s397 + $0x11] sm:$0xff]
        %v400 = vld [vmem:[%s397 + $0x21] sm:$0xff]
        %v401 = vld [vmem:[%s397 + $0x31] sm:$0xff]
        %v402 = vld [vmem:[%s397 + $0x41] sm:$0xff]
        %v403 = vld [vmem:[%s397 + $0x51] sm:$0xff]
        %v404 = vld [vmem:[%s397 + $0x61] sm:$0xff]
        %v405 = vld [vmem:[%s397 + $0x71] sm:$0xff]
        %407 = vset.pattern.permute.xlu0 0
        %408 = vperm.xlu0 %407, %v398
        %v409 = vpop.permute.xlu0 %408
        %412 = vset.pattern.permute.xlu0 0
        %413 = vperm.xlu0 %412, %v399
        %v414 = vpop.permute.xlu0 %413
        %417 = vset.pattern.permute.xlu0 0
        %418 = vperm.xlu0 %417, %v400
        %v419 = vpop.permute.xlu0 %418
        %422 = vset.pattern.permute.xlu0 0
        %423 = vperm.xlu0 %422, %v401
        %v424 = vpop.permute.xlu0 %423
        %427 = vset.pattern.permute.xlu0 0
        %428 = vperm.xlu0 %427, %v402
        %v429 = vpop.permute.xlu0 %428
        %432 = vset.pattern.permute.xlu0 0
        %433 = vperm.xlu0 %432, %v403
        %v434 = vpop.permute.xlu0 %433
        %437 = vset.pattern.permute.xlu0 0
        %438 = vperm.xlu0 %437, %v404
        %v439 = vpop.permute.xlu0 %438
        %442 = vset.pattern.permute.xlu0 0
        %443 = vperm.xlu0 %442, %v405
        %v444 = vpop.permute.xlu0 %443
        %v446 = vlaneseq
        %v447 = vshrl.u32 %v446, 7
        %v448 = vsub.s32 1, %v447
        %v449 = vrot.slane %v250, %v448
        %v450 = vmul.f32 %v409, %v449
        %v451 = vmul.f32 %v414, %v449
        %v452 = vmul.f32 %v419, %v449
        %v453 = vmul.f32 %v424, %v449
        %v454 = vmul.f32 %v429, %v449
        %v455 = vmul.f32 %v434, %v449
        %v456 = vmul.f32 %v439, %v449
        %v457 = vmul.f32 %v444, %v449
        %v458 = vadd.f32 %v389, %v450
        %v459 = vadd.f32 %v390, %v451
        %v460 = vadd.f32 %v391, %v452
        %v461 = vadd.f32 %v392, %v453
        %v462 = vadd.f32 %v393, %v454
        %v463 = vadd.f32 %v394, %v455
        %v464 = vadd.f32 %v395, %v456
        %v465 = vadd.f32 %v396, %v457
        %v466 = vld [vmem:[%s328 + $0x2] sm:$0xff]
        %v467 = vld [vmem:[%s328 + $0x12] sm:$0xff]
        %v468 = vld [vmem:[%s328 + $0x22] sm:$0xff]
        %v469 = vld [vmem:[%s328 + $0x32] sm:$0xff]
        %v470 = vld [vmem:[%s328 + $0x42] sm:$0xff]
        %v471 = vld [vmem:[%s328 + $0x52] sm:$0xff]
        %v472 = vld [vmem:[%s328 + $0x62] sm:$0xff]
        %v473 = vld [vmem:[%s328 + $0x72] sm:$0xff]
        %475 = vset.pattern.permute.xlu0 0
        %476 = vperm.xlu0 %475, %v466
        %v477 = vpop.permute.xlu0 %476
        %480 = vset.pattern.permute.xlu0 0
        %481 = vperm.xlu0 %480, %v467
        %v482 = vpop.permute.xlu0 %481
        %485 = vset.pattern.permute.xlu0 0
        %486 = vperm.xlu0 %485, %v468
        %v487 = vpop.permute.xlu0 %486
        %490 = vset.pattern.permute.xlu0 0
        %491 = vperm.xlu0 %490, %v469
        %v492 = vpop.permute.xlu0 %491
        %495 = vset.pattern.permute.xlu0 0
        %496 = vperm.xlu0 %495, %v470
        %v497 = vpop.permute.xlu0 %496
        %500 = vset.pattern.permute.xlu0 0
        %501 = vperm.xlu0 %500, %v471
        %v502 = vpop.permute.xlu0 %501
        %505 = vset.pattern.permute.xlu0 0
        %506 = vperm.xlu0 %505, %v472
        %v507 = vpop.permute.xlu0 %506
        %510 = vset.pattern.permute.xlu0 0
        %511 = vperm.xlu0 %510, %v473
        %v512 = vpop.permute.xlu0 %511
        %v514 = vlaneseq
        %v515 = vshrl.u32 %v514, 7
        %v516 = vsub.s32 2, %v515
        %v517 = vrot.slane %v250, %v516
        %v518 = vmul.f32 %v477, %v517
        %v519 = vmul.f32 %v482, %v517
        %v520 = vmul.f32 %v487, %v517
        %v521 = vmul.f32 %v492, %v517
        %v522 = vmul.f32 %v497, %v517
        %v523 = vmul.f32 %v502, %v517
        %v524 = vmul.f32 %v507, %v517
        %v525 = vmul.f32 %v512, %v517
        %v526 = vadd.f32 %v458, %v518
        %v527 = vadd.f32 %v459, %v519
        %v528 = vadd.f32 %v460, %v520
        %v529 = vadd.f32 %v461, %v521
        %v530 = vadd.f32 %v462, %v522
        %v531 = vadd.f32 %v463, %v523
        %v532 = vadd.f32 %v464, %v524
        %v533 = vadd.f32 %v465, %v525
        %s534 = scalar_lea.vmem %s249, 336
        %v535 = vld [vmem:[%s534 + $0x1] sm:$0xff]
        %v536 = vld [vmem:[%s534 + $0x11] sm:$0xff]
        %v537 = vld [vmem:[%s534 + $0x21] sm:$0xff]
        %v538 = vld [vmem:[%s534 + $0x31] sm:$0xff]
        %v539 = vld [vmem:[%s534 + $0x41] sm:$0xff]
        %v540 = vld [vmem:[%s534 + $0x51] sm:$0xff]
        %v541 = vld [vmem:[%s534 + $0x61] sm:$0xff]
        %v542 = vld [vmem:[%s534 + $0x71] sm:$0xff]
        %544 = vset.pattern.permute.xlu0 0
        %545 = vperm.xlu0 %544, %v535
        %v546 = vpop.permute.xlu0 %545
        %549 = vset.pattern.permute.xlu0 0
        %550 = vperm.xlu0 %549, %v536
        %v551 = vpop.permute.xlu0 %550
        %554 = vset.pattern.permute.xlu0 0
        %555 = vperm.xlu0 %554, %v537
        %v556 = vpop.permute.xlu0 %555
        %559 = vset.pattern.permute.xlu0 0
        %560 = vperm.xlu0 %559, %v538
        %v561 = vpop.permute.xlu0 %560
        %564 = vset.pattern.permute.xlu0 0
        %565 = vperm.xlu0 %564, %v539
        %v566 = vpop.permute.xlu0 %565
        %569 = vset.pattern.permute.xlu0 0
        %570 = vperm.xlu0 %569, %v540
        %v571 = vpop.permute.xlu0 %570
        %574 = vset.pattern.permute.xlu0 0
        %575 = vperm.xlu0 %574, %v541
        %v576 = vpop.permute.xlu0 %575
        %579 = vset.pattern.permute.xlu0 0
        %580 = vperm.xlu0 %579, %v542
        %v581 = vpop.permute.xlu0 %580
        %v583 = vlaneseq
        %v584 = vshrl.u32 %v583, 7
        %v585 = vsub.s32 3, %v584
        %v586 = vrot.slane %v250, %v585
        %v587 = vmul.f32 %v546, %v586
        %v588 = vmul.f32 %v551, %v586
        %v589 = vmul.f32 %v556, %v586
        %v590 = vmul.f32 %v561, %v586
        %v591 = vmul.f32 %v566, %v586
        %v592 = vmul.f32 %v571, %v586
        %v593 = vmul.f32 %v576, %v586
        %v594 = vmul.f32 %v581, %v586
        %v595 = vadd.f32 %v526, %v587
        %v596 = vadd.f32 %v527, %v588
        %v597 = vadd.f32 %v528, %v589
        %v598 = vadd.f32 %v529, %v590
        %v599 = vadd.f32 %v530, %v591
        %v600 = vadd.f32 %v531, %v592
        %v601 = vadd.f32 %v532, %v593
        %v602 = vadd.f32 %v533, %v594
        %s603 = scalar_lea.vmem %s249, 496
        %v604 = vld [vmem:[%s603 + $0x1] sm:$0xff]
        %v605 = vld [vmem:[%s603 + $0x11] sm:$0xff]
        %v606 = vld [vmem:[%s603 + $0x21] sm:$0xff]
        %v607 = vld [vmem:[%s603 + $0x31] sm:$0xff]
        %v608 = vld [vmem:[%s603 + $0x41] sm:$0xff]
        %v609 = vld [vmem:[%s603 + $0x51] sm:$0xff]
        %v610 = vld [vmem:[%s603 + $0x61] sm:$0xff]
        %v611 = vld [vmem:[%s603 + $0x71] sm:$0xff]
        %613 = vset.pattern.permute.xlu0 0
        %614 = vperm.xlu0 %613, %v604
        %v615 = vpop.permute.xlu0 %614
        %618 = vset.pattern.permute.xlu0 0
        %619 = vperm.xlu0 %618, %v605
        %v620 = vpop.permute.xlu0 %619
        %623 = vset.pattern.permute.xlu0 0
        %624 = vperm.xlu0 %623, %v606
        %v625 = vpop.permute.xlu0 %624
        %628 = vset.pattern.permute.xlu0 0
        %629 = vperm.xlu0 %628, %v607
        %v630 = vpop.permute.xlu0 %629
        %633 = vset.pattern.permute.xlu0 0
        %634 = vperm.xlu0 %633, %v608
        %v635 = vpop.permute.xlu0 %634
        %638 = vset.pattern.permute.xlu0 0
        %639 = vperm.xlu0 %638, %v609
        %v640 = vpop.permute.xlu0 %639
        %643 = vset.pattern.permute.xlu0 0
        %644 = vperm.xlu0 %643, %v610
        %v645 = vpop.permute.xlu0 %644
        %648 = vset.pattern.permute.xlu0 0
        %649 = vperm.xlu0 %648, %v611
        %v650 = vpop.permute.xlu0 %649
        %v652 = vlaneseq
        %v653 = vshrl.u32 %v652, 7
        %v654 = vsub.s32 4, %v653
        %v655 = vrot.slane %v250, %v654
        %v656 = vmul.f32 %v615, %v655
        %v657 = vmul.f32 %v620, %v655
        %v658 = vmul.f32 %v625, %v655
        %v659 = vmul.f32 %v630, %v655
        %v660 = vmul.f32 %v635, %v655
        %v661 = vmul.f32 %v640, %v655
        %v662 = vmul.f32 %v645, %v655
        %v663 = vmul.f32 %v650, %v655
        %v664 = vadd.f32 %v595, %v656
        %v665 = vadd.f32 %v596, %v657
        %v666 = vadd.f32 %v597, %v658
        %v667 = vadd.f32 %v598, %v659
        %v668 = vadd.f32 %v599, %v660
        %v669 = vadd.f32 %v600, %v661
        %v670 = vadd.f32 %v601, %v662
        %v671 = vadd.f32 %v602, %v663
        %v672 = vld [vmem:[%s534 + $0x2] sm:$0xff]
        %v673 = vld [vmem:[%s534 + $0x12] sm:$0xff]
        %v674 = vld [vmem:[%s534 + $0x22] sm:$0xff]
        %v675 = vld [vmem:[%s534 + $0x32] sm:$0xff]
        %v676 = vld [vmem:[%s534 + $0x42] sm:$0xff]
        %v677 = vld [vmem:[%s534 + $0x52] sm:$0xff]
        %v678 = vld [vmem:[%s534 + $0x62] sm:$0xff]
        %v679 = vld [vmem:[%s534 + $0x72] sm:$0xff]
        %681 = vset.pattern.permute.xlu0 0
        %682 = vperm.xlu0 %681, %v672
        %v683 = vpop.permute.xlu0 %682
        %686 = vset.pattern.permute.xlu0 0
        %687 = vperm.xlu0 %686, %v673
        %v688 = vpop.permute.xlu0 %687
        %691 = vset.pattern.permute.xlu0 0
        %692 = vperm.xlu0 %691, %v674
        %v693 = vpop.permute.xlu0 %692
        %696 = vset.pattern.permute.xlu0 0
        %697 = vperm.xlu0 %696, %v675
        %v698 = vpop.permute.xlu0 %697
        %701 = vset.pattern.permute.xlu0 0
        %702 = vperm.xlu0 %701, %v676
        %v703 = vpop.permute.xlu0 %702
        %706 = vset.pattern.permute.xlu0 0
        %707 = vperm.xlu0 %706, %v677
        %v708 = vpop.permute.xlu0 %707
        %711 = vset.pattern.permute.xlu0 0
        %712 = vperm.xlu0 %711, %v678
        %v713 = vpop.permute.xlu0 %712
        %716 = vset.pattern.permute.xlu0 0
        %717 = vperm.xlu0 %716, %v679
        %v718 = vpop.permute.xlu0 %717
        %v720 = vlaneseq
        %v721 = vshrl.u32 %v720, 7
        %v722 = vsub.s32 5, %v721
        %v723 = vrot.slane %v250, %v722
        %v724 = vmul.f32 %v683, %v723
        %v725 = vmul.f32 %v688, %v723
        %v726 = vmul.f32 %v693, %v723
        %v727 = vmul.f32 %v698, %v723
        %v728 = vmul.f32 %v703, %v723
        %v729 = vmul.f32 %v708, %v723
        %v730 = vmul.f32 %v713, %v723
        %v731 = vmul.f32 %v718, %v723
        %v732 = vadd.f32 %v664, %v724
        %v733 = vadd.f32 %v665, %v725
        %v734 = vadd.f32 %v666, %v726
        %v735 = vadd.f32 %v667, %v727
        %v736 = vadd.f32 %v668, %v728
        %v737 = vadd.f32 %v669, %v729
        %v738 = vadd.f32 %v670, %v730
        %v739 = vadd.f32 %v671, %v731
        %s740 = scalar_lea.vmem %s249, 32
        %v741 = vld [vmem:[%s740 + $0x1] sm:$0xff]
        %v742 = vld [vmem:[%s740 + $0x11] sm:$0xff]
        %v743 = vld [vmem:[%s740 + $0x21] sm:$0xff]
        %v744 = vld [vmem:[%s740 + $0x31] sm:$0xff]
        %v745 = vld [vmem:[%s740 + $0x41] sm:$0xff]
        %v746 = vld [vmem:[%s740 + $0x51] sm:$0xff]
        %v747 = vld [vmem:[%s740 + $0x61] sm:$0xff]
        %v748 = vld [vmem:[%s740 + $0x71] sm:$0xff]
        %750 = vset.pattern.permute.xlu0 0
        %751 = vperm.xlu0 %750, %v741
        %v752 = vpop.permute.xlu0 %751
        %755 = vset.pattern.permute.xlu0 0
        %756 = vperm.xlu0 %755, %v742
        %v757 = vpop.permute.xlu0 %756
        %760 = vset.pattern.permute.xlu0 0
        %761 = vperm.xlu0 %760, %v743
        %v762 = vpop.permute.xlu0 %761
        %765 = vset.pattern.permute.xlu0 0
        %766 = vperm.xlu0 %765, %v744
        %v767 = vpop.permute.xlu0 %766
        %770 = vset.pattern.permute.xlu0 0
        %771 = vperm.xlu0 %770, %v745
        %v772 = vpop.permute.xlu0 %771
        %775 = vset.pattern.permute.xlu0 0
        %776 = vperm.xlu0 %775, %v746
        %v777 = vpop.permute.xlu0 %776
        %780 = vset.pattern.permute.xlu0 0
        %781 = vperm.xlu0 %780, %v747
        %v782 = vpop.permute.xlu0 %781
        %785 = vset.pattern.permute.xlu0 0
        %786 = vperm.xlu0 %785, %v748
        %v787 = vpop.permute.xlu0 %786
        %v789 = vlaneseq
        %v790 = vshrl.u32 %v789, 7
        %v791 = vsub.s32 6, %v790
        %v792 = vrot.slane %v250, %v791
        %v793 = vmul.f32 %v752, %v792
        %v794 = vmul.f32 %v757, %v792
        %v795 = vmul.f32 %v762, %v792
        %v796 = vmul.f32 %v767, %v792
        %v797 = vmul.f32 %v772, %v792
        %v798 = vmul.f32 %v777, %v792
        %v799 = vmul.f32 %v782, %v792
        %v800 = vmul.f32 %v787, %v792
        %v801 = vadd.f32 %v732, %v793
        %v802 = vadd.f32 %v733, %v794
        %v803 = vadd.f32 %v734, %v795
        %v804 = vadd.f32 %v735, %v796
        %v805 = vadd.f32 %v736, %v797
        %v806 = vadd.f32 %v737, %v798
        %v807 = vadd.f32 %v738, %v799
        %v808 = vadd.f32 %v739, %v800
        %s809 = scalar_lea.vmem %s249, 192
        %v810 = vld [vmem:[%s809 + $0x1] sm:$0xff]
        %v811 = vld [vmem:[%s809 + $0x11] sm:$0xff]
        %v812 = vld [vmem:[%s809 + $0x21] sm:$0xff]
        %v813 = vld [vmem:[%s809 + $0x31] sm:$0xff]
        %v814 = vld [vmem:[%s809 + $0x41] sm:$0xff]
        %v815 = vld [vmem:[%s809 + $0x51] sm:$0xff]
        %v816 = vld [vmem:[%s809 + $0x61] sm:$0xff]
        %v817 = vld [vmem:[%s809 + $0x71] sm:$0xff]
        %819 = vset.pattern.permute.xlu0 0
        %820 = vperm.xlu0 %819, %v810
        %v821 = vpop.permute.xlu0 %820
        %824 = vset.pattern.permute.xlu0 0
        %825 = vperm.xlu0 %824, %v811
        %v826 = vpop.permute.xlu0 %825
        %829 = vset.pattern.permute.xlu0 0
        %830 = vperm.xlu0 %829, %v812
        %v831 = vpop.permute.xlu0 %830
        %834 = vset.pattern.permute.xlu0 0
        %835 = vperm.xlu0 %834, %v813
        %v836 = vpop.permute.xlu0 %835
        %839 = vset.pattern.permute.xlu0 0
        %840 = vperm.xlu0 %839, %v814
        %v841 = vpop.permute.xlu0 %840
        %844 = vset.pattern.permute.xlu0 0
        %845 = vperm.xlu0 %844, %v815
        %v846 = vpop.permute.xlu0 %845
        %849 = vset.pattern.permute.xlu0 0
        %850 = vperm.xlu0 %849, %v816
        %v851 = vpop.permute.xlu0 %850
        %854 = vset.pattern.permute.xlu0 0
        %855 = vperm.xlu0 %854, %v817
        %v856 = vpop.permute.xlu0 %855
        %v858 = vlaneseq
        %v859 = vshrl.u32 %v858, 7
        %v860 = vsub.s32 7, %v859
        %v861 = vrot.slane %v250, %v860
        %v862 = vmul.f32 %v821, %v861
        %v863 = vmul.f32 %v826, %v861
        %v864 = vmul.f32 %v831, %v861
        %v865 = vmul.f32 %v836, %v861
        %v866 = vmul.f32 %v841, %v861
        %v867 = vmul.f32 %v846, %v861
        %v868 = vmul.f32 %v851, %v861
        %v869 = vmul.f32 %v856, %v861
        %v870 = vadd.f32 %v801, %v862
        %v871 = vadd.f32 %v802, %v863
        %v872 = vadd.f32 %v803, %v864
        %v873 = vadd.f32 %v804, %v865
        %v874 = vadd.f32 %v805, %v866
        %v875 = vadd.f32 %v806, %v867
        %v876 = vadd.f32 %v807, %v868
        %v877 = vadd.f32 %v808, %v869
        %v878 = vld [vmem:[%s740 + $0x2] sm:$0xff]
        %v879 = vld [vmem:[%s740 + $0x12] sm:$0xff]
        %v880 = vld [vmem:[%s740 + $0x22] sm:$0xff]
        %v881 = vld [vmem:[%s740 + $0x32] sm:$0xff]
        %v882 = vld [vmem:[%s740 + $0x42] sm:$0xff]
        %v883 = vld [vmem:[%s740 + $0x52] sm:$0xff]
        %v884 = vld [vmem:[%s740 + $0x62] sm:$0xff]
        %v885 = vld [vmem:[%s740 + $0x72] sm:$0xff]
        %887 = vset.pattern.permute.xlu0 0
        %888 = vperm.xlu0 %887, %v878
        %v889 = vpop.permute.xlu0 %888
        %892 = vset.pattern.permute.xlu0 0
        %893 = vperm.xlu0 %892, %v879
        %v894 = vpop.permute.xlu0 %893
        %897 = vset.pattern.permute.xlu0 0
        %898 = vperm.xlu0 %897, %v880
        %v899 = vpop.permute.xlu0 %898
        %902 = vset.pattern.permute.xlu0 0
        %903 = vperm.xlu0 %902, %v881
        %v904 = vpop.permute.xlu0 %903
        %907 = vset.pattern.permute.xlu0 0
        %908 = vperm.xlu0 %907, %v882
        %v909 = vpop.permute.xlu0 %908
        %912 = vset.pattern.permute.xlu0 0
        %913 = vperm.xlu0 %912, %v883
        %v914 = vpop.permute.xlu0 %913
        %917 = vset.pattern.permute.xlu0 0
        %918 = vperm.xlu0 %917, %v884
        %v919 = vpop.permute.xlu0 %918
        %922 = vset.pattern.permute.xlu0 0
        %923 = vperm.xlu0 %922, %v885
        %v924 = vpop.permute.xlu0 %923
        %v926 = vlaneseq
        %v927 = vshrl.u32 %v926, 7
        %v928 = vsub.s32 0, %v927
        %v929 = vrot.slane %v251, %v928
        %v930 = vmul.f32 %v889, %v929
        %v931 = vmul.f32 %v894, %v929
        %v932 = vmul.f32 %v899, %v929
        %v933 = vmul.f32 %v904, %v929
        %v934 = vmul.f32 %v909, %v929
        %v935 = vmul.f32 %v914, %v929
        %v936 = vmul.f32 %v919, %v929
        %v937 = vmul.f32 %v924, %v929
        %v938 = vadd.f32 %v870, %v930
        %v939 = vadd.f32 %v871, %v931
        %v940 = vadd.f32 %v872, %v932
        %v941 = vadd.f32 %v873, %v933
        %v942 = vadd.f32 %v874, %v934
        %v943 = vadd.f32 %v875, %v935
        %v944 = vadd.f32 %v876, %v936
        %v945 = vadd.f32 %v877, %v937
        %v946 = vlaneseq
        %v947 = vshrl.u32 %v946, 7
        %v948 = vsub.s32 0, %v947
        %v949 = vrot.slane %v252, %v948
        %v950 = vadd.f32 %v938, %v949
        %v951 = vadd.f32 %v939, %v949
        %v952 = vadd.f32 %v940, %v949
        %v953 = vadd.f32 %v941, %v949
        %v954 = vadd.f32 %v942, %v949
        %v955 = vadd.f32 %v943, %v949
        %v956 = vadd.f32 %v944, %v949
        %v957 = vadd.f32 %v945, %v949
        %vm958 = vcmp.ge.f32.partialorder %v950, 0.0
        %vm959 = vcmp.ge.f32.partialorder %v951, 0.0
        %vm960 = vcmp.ge.f32.partialorder %v952, 0.0
        %vm961 = vcmp.ge.f32.partialorder %v953, 0.0
        %vm962 = vcmp.ge.f32.partialorder %v954, 0.0
        %vm963 = vcmp.ge.f32.partialorder %v955, 0.0
        %vm964 = vcmp.ge.f32.partialorder %v956, 0.0
        %vm965 = vcmp.ge.f32.partialorder %v957, 0.0
        %v966 = vlaneseq
        %v967 = vshrl.u32 %v966, 7
        %v968 = vsub.s32 0, %v967
        %v969 = vrot.slane %v253, %v968
        %v970 = vmul.f32 %v950, %v969
        %v971 = vmul.f32 %v951, %v969
        %v972 = vmul.f32 %v952, %v969
        %v973 = vmul.f32 %v953, %v969
        %v974 = vmul.f32 %v954, %v969
        %v975 = vmul.f32 %v955, %v969
        %v976 = vmul.f32 %v956, %v969
        %v977 = vmul.f32 %v957, %v969
        %v978 = vsel %vm958, %v950, %v970
        %v979 = vsel %vm959, %v951, %v971
        %v980 = vsel %vm960, %v952, %v972
        %v981 = vsel %vm961, %v953, %v973
        %v982 = vsel %vm962, %v954, %v974
        %v983 = vsel %vm963, %v955, %v975
        %v984 = vsel %vm964, %v956, %v976
        %v985 = vsel %vm965, %v957, %v977
        %s986 = scalar_lea.vmem [#allocation2], 16
        %987 = vst.msk [vmem:[%s986 + $0x1] sm:$0xff] %vm254, %v978
        %988 = vst.msk [vmem:[%s986 + $0x11] sm:$0xff] %vm254, %v979
        %989 = vst.msk [vmem:[%s986 + $0x21] sm:$0xff] %vm254, %v980
        %990 = vst.msk [vmem:[%s986 + $0x31] sm:$0xff] %vm254, %v981
        %991 = vst.msk [vmem:[%s986 + $0x41] sm:$0xff] %vm254, %v982
        %992 = vst.msk [vmem:[%s986 + $0x51] sm:$0xff] %vm254, %v983
        %993 = vst.msk [vmem:[%s986 + $0x61] sm:$0xff] %vm254, %v984
        %994 = vst.msk [vmem:[%s986 + $0x71] sm:$0xff] %vm254, %v985
        %v995 = vld [vmem:[%s397] sm:$0xff]
        %v996 = vld [vmem:[%s397 + $0x10] sm:$0xff]
        %v997 = vld [vmem:[%s397 + $0x20] sm:$0xff]
        %v998 = vld [vmem:[%s397 + $0x30] sm:$0xff]
        %v999 = vld [vmem:[%s397 + $0x40] sm:$0xff]
        %v1000 = vld [vmem:[%s397 + $0x50] sm:$0xff]
        %v1001 = vld [vmem:[%s397 + $0x60] sm:$0xff]
        %v1002 = vld [vmem:[%s397 + $0x70] sm:$0xff]
        %1004 = vset.pattern.permute.xlu0 0
        %1005 = vperm.xlu0 %1004, %v995
        %v1006 = vpop.permute.xlu0 %1005
        %1009 = vset.pattern.permute.xlu0 0
        %1010 = vperm.xlu0 %1009, %v996
        %v1011 = vpop.permute.xlu0 %1010
        %1014 = vset.pattern.permute.xlu0 0
        %1015 = vperm.xlu0 %1014, %v997
        %v1016 = vpop.permute.xlu0 %1015
        %1019 = vset.pattern.permute.xlu0 0
        %1020 = vperm.xlu0 %1019, %v998
        %v1021 = vpop.permute.xlu0 %1020
        %1024 = vset.pattern.permute.xlu0 0
        %1025 = vperm.xlu0 %1024, %v999
        %v1026 = vpop.permute.xlu0 %1025
        %1029 = vset.pattern.permute.xlu0 0
        %1030 = vperm.xlu0 %1029, %v1000
        %v1031 = vpop.permute.xlu0 %1030
        %1034 = vset.pattern.permute.xlu0 0
        %1035 = vperm.xlu0 %1034, %v1001
        %v1036 = vpop.permute.xlu0 %1035
        %1039 = vset.pattern.permute.xlu0 0
        %1040 = vperm.xlu0 %1039, %v1002
        %v1041 = vpop.permute.xlu0 %1040
        %v1043 = vmul.f32 %v1006, %v380
        %v1044 = vmul.f32 %v1011, %v380
        %v1045 = vmul.f32 %v1016, %v380
        %v1046 = vmul.f32 %v1021, %v380
        %v1047 = vmul.f32 %v1026, %v380
        %v1048 = vmul.f32 %v1031, %v380
        %v1049 = vmul.f32 %v1036, %v380
        %v1050 = vmul.f32 %v1041, %v380
        %v1051 = vadd.f32 %v1043, 0.0
        %v1052 = vadd.f32 %v1044, 0.0
        %v1053 = vadd.f32 %v1045, 0.0
        %v1054 = vadd.f32 %v1046, 0.0
        %v1055 = vadd.f32 %v1047, 0.0
        %v1056 = vadd.f32 %v1048, 0.0
        %v1057 = vadd.f32 %v1049, 0.0
        %v1058 = vadd.f32 %v1050, 0.0
        %v1059 = vld [vmem:[%s328 + $0x1] sm:$0xff]
        %v1060 = vld [vmem:[%s328 + $0x11] sm:$0xff]
        %v1061 = vld [vmem:[%s328 + $0x21] sm:$0xff]
        %v1062 = vld [vmem:[%s328 + $0x31] sm:$0xff]
        %v1063 = vld [vmem:[%s328 + $0x41] sm:$0xff]
        %v1064 = vld [vmem:[%s328 + $0x51] sm:$0xff]
        %v1065 = vld [vmem:[%s328 + $0x61] sm:$0xff]
        %v1066 = vld [vmem:[%s328 + $0x71] sm:$0xff]
        %1068 = vset.pattern.permute.xlu0 0
        %1069 = vperm.xlu0 %1068, %v1059
        %v1070 = vpop.permute.xlu0 %1069
        %1073 = vset.pattern.permute.xlu0 0
        %1074 = vperm.xlu0 %1073, %v1060
        %v1075 = vpop.permute.xlu0 %1074
        %1078 = vset.pattern.permute.xlu0 0
        %1079 = vperm.xlu0 %1078, %v1061
        %v1080 = vpop.permute.xlu0 %1079
        %1083 = vset.pattern.permute.xlu0 0
        %1084 = vperm.xlu0 %1083, %v1062
        %v1085 = vpop.permute.xlu0 %1084
        %1088 = vset.pattern.permute.xlu0 0
        %1089 = vperm.xlu0 %1088, %v1063
        %v1090 = vpop.permute.xlu0 %1089
        %1093 = vset.pattern.permute.xlu0 0
        %1094 = vperm.xlu0 %1093, %v1064
        %v1095 = vpop.permute.xlu0 %1094
        %1098 = vset.pattern.permute.xlu0 0
        %1099 = vperm.xlu0 %1098, %v1065
        %v1100 = vpop.permute.xlu0 %1099
        %1103 = vset.pattern.permute.xlu0 0
        %1104 = vperm.xlu0 %1103, %v1066
        %v1105 = vpop.permute.xlu0 %1104
        %v1107 = vmul.f32 %v1070, %v449
        %v1108 = vmul.f32 %v1075, %v449
        %v1109 = vmul.f32 %v1080, %v449
        %v1110 = vmul.f32 %v1085, %v449
        %v1111 = vmul.f32 %v1090, %v449
        %v1112 = vmul.f32 %v1095, %v449
        %v1113 = vmul.f32 %v1100, %v449
        %v1114 = vmul.f32 %v1105, %v449
        %v1115 = vadd.f32 %v1051, %v1107
        %v1116 = vadd.f32 %v1052, %v1108
        %v1117 = vadd.f32 %v1053, %v1109
        %v1118 = vadd.f32 %v1054, %v1110
        %v1119 = vadd.f32 %v1055, %v1111
        %v1120 = vadd.f32 %v1056, %v1112
        %v1121 = vadd.f32 %v1057, %v1113
        %v1122 = vadd.f32 %v1058, %v1114
        %v1123 = vld [vmem:[%s397 + $0x1] sm:$0xff]
        %v1124 = vld [vmem:[%s397 + $0x11] sm:$0xff]
        %v1125 = vld [vmem:[%s397 + $0x21] sm:$0xff]
        %v1126 = vld [vmem:[%s397 + $0x31] sm:$0xff]
        %v1127 = vld [vmem:[%s397 + $0x41] sm:$0xff]
        %v1128 = vld [vmem:[%s397 + $0x51] sm:$0xff]
        %v1129 = vld [vmem:[%s397 + $0x61] sm:$0xff]
        %v1130 = vld [vmem:[%s397 + $0x71] sm:$0xff]
        %1132 = vset.pattern.permute.xlu0 0
        %1133 = vperm.xlu0 %1132, %v1123
        %v1134 = vpop.permute.xlu0 %1133
        %1137 = vset.pattern.permute.xlu0 0
        %1138 = vperm.xlu0 %1137, %v1124
        %v1139 = vpop.permute.xlu0 %1138
        %1142 = vset.pattern.permute.xlu0 0
        %1143 = vperm.xlu0 %1142, %v1125
        %v1144 = vpop.permute.xlu0 %1143
        %1147 = vset.pattern.permute.xlu0 0
        %1148 = vperm.xlu0 %1147, %v1126
        %v1149 = vpop.permute.xlu0 %1148
        %1152 = vset.pattern.permute.xlu0 0
        %1153 = vperm.xlu0 %1152, %v1127
        %v1154 = vpop.permute.xlu0 %1153
        %1157 = vset.pattern.permute.xlu0 0
        %1158 = vperm.xlu0 %1157, %v1128
        %v1159 = vpop.permute.xlu0 %1158
        %1162 = vset.pattern.permute.xlu0 0
        %1163 = vperm.xlu0 %1162, %v1129
        %v1164 = vpop.permute.xlu0 %1163
        %1167 = vset.pattern.permute.xlu0 0
        %1168 = vperm.xlu0 %1167, %v1130
        %v1169 = vpop.permute.xlu0 %1168
        %v1171 = vmul.f32 %v1134, %v517
        %v1172 = vmul.f32 %v1139, %v517
        %v1173 = vmul.f32 %v1144, %v517
        %v1174 = vmul.f32 %v1149, %v517
        %v1175 = vmul.f32 %v1154, %v517
        %v1176 = vmul.f32 %v1159, %v517
        %v1177 = vmul.f32 %v1164, %v517
        %v1178 = vmul.f32 %v1169, %v517
        %v1179 = vadd.f32 %v1115, %v1171
        %v1180 = vadd.f32 %v1116, %v1172
        %v1181 = vadd.f32 %v1117, %v1173
        %v1182 = vadd.f32 %v1118, %v1174
        %v1183 = vadd.f32 %v1119, %v1175
        %v1184 = vadd.f32 %v1120, %v1176
        %v1185 = vadd.f32 %v1121, %v1177
        %v1186 = vadd.f32 %v1122, %v1178
        %v1187 = vld [vmem:[%s603] sm:$0xff]
        %v1188 = vld [vmem:[%s603 + $0x10] sm:$0xff]
        %v1189 = vld [vmem:[%s603 + $0x20] sm:$0xff]
        %v1190 = vld [vmem:[%s603 + $0x30] sm:$0xff]
        %v1191 = vld [vmem:[%s603 + $0x40] sm:$0xff]
        %v1192 = vld [vmem:[%s603 + $0x50] sm:$0xff]
        %v1193 = vld [vmem:[%s603 + $0x60] sm:$0xff]
        %v1194 = vld [vmem:[%s603 + $0x70] sm:$0xff]
        %1196 = vset.pattern.permute.xlu0 0
        %1197 = vperm.xlu0 %1196, %v1187
        %v1198 = vpop.permute.xlu0 %1197
        %1201 = vset.pattern.permute.xlu0 0
        %1202 = vperm.xlu0 %1201, %v1188
        %v1203 = vpop.permute.xlu0 %1202
        %1206 = vset.pattern.permute.xlu0 0
        %1207 = vperm.xlu0 %1206, %v1189
        %v1208 = vpop.permute.xlu0 %1207
        %1211 = vset.pattern.permute.xlu0 0
        %1212 = vperm.xlu0 %1211, %v1190
        %v1213 = vpop.permute.xlu0 %1212
        %1216 = vset.pattern.permute.xlu0 0
        %1217 = vperm.xlu0 %1216, %v1191
        %v1218 = vpop.permute.xlu0 %1217
        %1221 = vset.pattern.permute.xlu0 0
        %1222 = vperm.xlu0 %1221, %v1192
        %v1223 = vpop.permute.xlu0 %1222
        %1226 = vset.pattern.permute.xlu0 0
        %1227 = vperm.xlu0 %1226, %v1193
        %v1228 = vpop.permute.xlu0 %1227
        %1231 = vset.pattern.permute.xlu0 0
        %1232 = vperm.xlu0 %1231, %v1194
        %v1233 = vpop.permute.xlu0 %1232
        %v1235 = vmul.f32 %v1198, %v586
        %v1236 = vmul.f32 %v1203, %v586
        %v1237 = vmul.f32 %v1208, %v586
        %v1238 = vmul.f32 %v1213, %v586
        %v1239 = vmul.f32 %v1218, %v586
        %v1240 = vmul.f32 %v1223, %v586
        %v1241 = vmul.f32 %v1228, %v586
        %v1242 = vmul.f32 %v1233, %v586
        %v1243 = vadd.f32 %v1179, %v1235
        %v1244 = vadd.f32 %v1180, %v1236
        %v1245 = vadd.f32 %v1181, %v1237
        %v1246 = vadd.f32 %v1182, %v1238
        %v1247 = vadd.f32 %v1183, %v1239
        %v1248 = vadd.f32 %v1184, %v1240
        %v1249 = vadd.f32 %v1185, %v1241
        %v1250 = vadd.f32 %v1186, %v1242
        %v1251 = vld [vmem:[%s534 + $0x1] sm:$0xff]
        %v1252 = vld [vmem:[%s534 + $0x11] sm:$0xff]
        %v1253 = vld [vmem:[%s534 + $0x21] sm:$0xff]
        %v1254 = vld [vmem:[%s534 + $0x31] sm:$0xff]
        %v1255 = vld [vmem:[%s534 + $0x41] sm:$0xff]
        %v1256 = vld [vmem:[%s534 + $0x51] sm:$0xff]
        %v1257 = vld [vmem:[%s534 + $0x61] sm:$0xff]
        %v1258 = vld [vmem:[%s534 + $0x71] sm:$0xff]
        %1260 = vset.pattern.permute.xlu0 0
        %1261 = vperm.xlu0 %1260, %v1251
        %v1262 = vpop.permute.xlu0 %1261
        %1265 = vset.pattern.permute.xlu0 0
        %1266 = vperm.xlu0 %1265, %v1252
        %v1267 = vpop.permute.xlu0 %1266
        %1270 = vset.pattern.permute.xlu0 0
        %1271 = vperm.xlu0 %1270, %v1253
        %v1272 = vpop.permute.xlu0 %1271
        %1275 = vset.pattern.permute.xlu0 0
        %1276 = vperm.xlu0 %1275, %v1254
        %v1277 = vpop.permute.xlu0 %1276
        %1280 = vset.pattern.permute.xlu0 0
        %1281 = vperm.xlu0 %1280, %v1255
        %v1282 = vpop.permute.xlu0 %1281
        %1285 = vset.pattern.permute.xlu0 0
        %1286 = vperm.xlu0 %1285, %v1256
        %v1287 = vpop.permute.xlu0 %1286
        %1290 = vset.pattern.permute.xlu0 0
        %1291 = vperm.xlu0 %1290, %v1257
        %v1292 = vpop.permute.xlu0 %1291
        %1295 = vset.pattern.permute.xlu0 0
        %1296 = vperm.xlu0 %1295, %v1258
        %v1297 = vpop.permute.xlu0 %1296
        %v1299 = vmul.f32 %v1262, %v655
        %v1300 = vmul.f32 %v1267, %v655
        %v1301 = vmul.f32 %v1272, %v655
        %v1302 = vmul.f32 %v1277, %v655
        %v1303 = vmul.f32 %v1282, %v655
        %v1304 = vmul.f32 %v1287, %v655
        %v1305 = vmul.f32 %v1292, %v655
        %v1306 = vmul.f32 %v1297, %v655
        %v1307 = vadd.f32 %v1243, %v1299
        %v1308 = vadd.f32 %v1244, %v1300
        %v1309 = vadd.f32 %v1245, %v1301
        %v1310 = vadd.f32 %v1246, %v1302
        %v1311 = vadd.f32 %v1247, %v1303
        %v1312 = vadd.f32 %v1248, %v1304
        %v1313 = vadd.f32 %v1249, %v1305
        %v1314 = vadd.f32 %v1250, %v1306
        %v1315 = vld [vmem:[%s603 + $0x1] sm:$0xff]
        %v1316 = vld [vmem:[%s603 + $0x11] sm:$0xff]
        %v1317 = vld [vmem:[%s603 + $0x21] sm:$0xff]
        %v1318 = vld [vmem:[%s603 + $0x31] sm:$0xff]
        %v1319 = vld [vmem:[%s603 + $0x41] sm:$0xff]
        %v1320 = vld [vmem:[%s603 + $0x51] sm:$0xff]
        %v1321 = vld [vmem:[%s603 + $0x61] sm:$0xff]
        %v1322 = vld [vmem:[%s603 + $0x71] sm:$0xff]
        %1324 = vset.pattern.permute.xlu0 0
        %1325 = vperm.xlu0 %1324, %v1315
        %v1326 = vpop.permute.xlu0 %1325
        %1329 = vset.pattern.permute.xlu0 0
        %1330 = vperm.xlu0 %1329, %v1316
        %v1331 = vpop.permute.xlu0 %1330
        %1334 = vset.pattern.permute.xlu0 0
        %1335 = vperm.xlu0 %1334, %v1317
        %v1336 = vpop.permute.xlu0 %1335
        %1339 = vset.pattern.permute.xlu0 0
        %1340 = vperm.xlu0 %1339, %v1318
        %v1341 = vpop.permute.xlu0 %1340
        %1344 = vset.pattern.permute.xlu0 0
        %1345 = vperm.xlu0 %1344, %v1319
        %v1346 = vpop.permute.xlu0 %1345
        %1349 = vset.pattern.permute.xlu0 0
        %1350 = vperm.xlu0 %1349, %v1320
        %v1351 = vpop.permute.xlu0 %1350
        %1354 = vset.pattern.permute.xlu0 0
        %1355 = vperm.xlu0 %1354, %v1321
        %v1356 = vpop.permute.xlu0 %1355
        %1359 = vset.pattern.permute.xlu0 0
        %1360 = vperm.xlu0 %1359, %v1322
        %v1361 = vpop.permute.xlu0 %1360
        %v1363 = vmul.f32 %v1326, %v723
        %v1364 = vmul.f32 %v1331, %v723
        %v1365 = vmul.f32 %v1336, %v723
        %v1366 = vmul.f32 %v1341, %v723
        %v1367 = vmul.f32 %v1346, %v723
        %v1368 = vmul.f32 %v1351, %v723
        %v1369 = vmul.f32 %v1356, %v723
        %v1370 = vmul.f32 %v1361, %v723
        %v1371 = vadd.f32 %v1307, %v1363
        %v1372 = vadd.f32 %v1308, %v1364
        %v1373 = vadd.f32 %v1309, %v1365
        %v1374 = vadd.f32 %v1310, %v1366
        %v1375 = vadd.f32 %v1311, %v1367
        %v1376 = vadd.f32 %v1312, %v1368
        %v1377 = vadd.f32 %v1313, %v1369
        %v1378 = vadd.f32 %v1314, %v1370
        %v1379 = vld [vmem:[%s809] sm:$0xff]
        %v1380 = vld [vmem:[%s809 + $0x10] sm:$0xff]
        %v1381 = vld [vmem:[%s809 + $0x20] sm:$0xff]
        %v1382 = vld [vmem:[%s809 + $0x30] sm:$0xff]
        %v1383 = vld [vmem:[%s809 + $0x40] sm:$0xff]
        %v1384 = vld [vmem:[%s809 + $0x50] sm:$0xff]
        %v1385 = vld [vmem:[%s809 + $0x60] sm:$0xff]
        %v1386 = vld [vmem:[%s809 + $0x70] sm:$0xff]
        %1388 = vset.pattern.permute.xlu0 0
        %1389 = vperm.xlu0 %1388, %v1379
        %v1390 = vpop.permute.xlu0 %1389
        %1393 = vset.pattern.permute.xlu0 0
        %1394 = vperm.xlu0 %1393, %v1380
        %v1395 = vpop.permute.xlu0 %1394
        %1398 = vset.pattern.permute.xlu0 0
        %1399 = vperm.xlu0 %1398, %v1381
        %v1400 = vpop.permute.xlu0 %1399
        %1403 = vset.pattern.permute.xlu0 0
        %1404 = vperm.xlu0 %1403, %v1382
        %v1405 = vpop.permute.xlu0 %1404
        %1408 = vset.pattern.permute.xlu0 0
        %1409 = vperm.xlu0 %1408, %v1383
        %v1410 = vpop.permute.xlu0 %1409
        %1413 = vset.pattern.permute.xlu0 0
        %1414 = vperm.xlu0 %1413, %v1384
        %v1415 = vpop.permute.xlu0 %1414
        %1418 = vset.pattern.permute.xlu0 0
        %1419 = vperm.xlu0 %1418, %v1385
        %v1420 = vpop.permute.xlu0 %1419
        %1423 = vset.pattern.permute.xlu0 0
        %1424 = vperm.xlu0 %1423, %v1386
        %v1425 = vpop.permute.xlu0 %1424
        %v1427 = vmul.f32 %v1390, %v792
        %v1428 = vmul.f32 %v1395, %v792
        %v1429 = vmul.f32 %v1400, %v792
        %v1430 = vmul.f32 %v1405, %v792
        %v1431 = vmul.f32 %v1410, %v792
        %v1432 = vmul.f32 %v1415, %v792
        %v1433 = vmul.f32 %v1420, %v792
        %v1434 = vmul.f32 %v1425, %v792
        %v1435 = vadd.f32 %v1371, %v1427
        %v1436 = vadd.f32 %v1372, %v1428
        %v1437 = vadd.f32 %v1373, %v1429
        %v1438 = vadd.f32 %v1374, %v1430
        %v1439 = vadd.f32 %v1375, %v1431
        %v1440 = vadd.f32 %v1376, %v1432
        %v1441 = vadd.f32 %v1377, %v1433
        %v1442 = vadd.f32 %v1378, %v1434
        %v1443 = vld [vmem:[%s740 + $0x1] sm:$0xff]
        %v1444 = vld [vmem:[%s740 + $0x11] sm:$0xff]
        %v1445 = vld [vmem:[%s740 + $0x21] sm:$0xff]
        %v1446 = vld [vmem:[%s740 + $0x31] sm:$0xff]
        %v1447 = vld [vmem:[%s740 + $0x41] sm:$0xff]
        %v1448 = vld [vmem:[%s740 + $0x51] sm:$0xff]
        %v1449 = vld [vmem:[%s740 + $0x61] sm:$0xff]
        %v1450 = vld [vmem:[%s740 + $0x71] sm:$0xff]
        %1452 = vset.pattern.permute.xlu0 0
        %1453 = vperm.xlu0 %1452, %v1443
        %v1454 = vpop.permute.xlu0 %1453
        %1457 = vset.pattern.permute.xlu0 0
        %1458 = vperm.xlu0 %1457, %v1444
        %v1459 = vpop.permute.xlu0 %1458
        %1462 = vset.pattern.permute.xlu0 0
        %1463 = vperm.xlu0 %1462, %v1445
        %v1464 = vpop.permute.xlu0 %1463
        %1467 = vset.pattern.permute.xlu0 0
        %1468 = vperm.xlu0 %1467, %v1446
        %v1469 = vpop.permute.xlu0 %1468
        %1472 = vset.pattern.permute.xlu0 0
        %1473 = vperm.xlu0 %1472, %v1447
        %v1474 = vpop.permute.xlu0 %1473
        %1477 = vset.pattern.permute.xlu0 0
        %1478 = vperm.xlu0 %1477, %v1448
        %v1479 = vpop.permute.xlu0 %1478
        %1482 = vset.pattern.permute.xlu0 0
        %1483 = vperm.xlu0 %1482, %v1449
        %v1484 = vpop.permute.xlu0 %1483
        %1487 = vset.pattern.permute.xlu0 0
        %1488 = vperm.xlu0 %1487, %v1450
        %v1489 = vpop.permute.xlu0 %1488
        %v1491 = vmul.f32 %v1454, %v861
        %v1492 = vmul.f32 %v1459, %v861
        %v1493 = vmul.f32 %v1464, %v861
        %v1494 = vmul.f32 %v1469, %v861
        %v1495 = vmul.f32 %v1474, %v861
        %v1496 = vmul.f32 %v1479, %v861
        %v1497 = vmul.f32 %v1484, %v861
        %v1498 = vmul.f32 %v1489, %v861
        %v1499 = vadd.f32 %v1435, %v1491
        %v1500 = vadd.f32 %v1436, %v1492
        %v1501 = vadd.f32 %v1437, %v1493
        %v1502 = vadd.f32 %v1438, %v1494
        %v1503 = vadd.f32 %v1439, %v1495
        %v1504 = vadd.f32 %v1440, %v1496
        %v1505 = vadd.f32 %v1441, %v1497
        %v1506 = vadd.f32 %v1442, %v1498
        %v1507 = vld [vmem:[%s809 + $0x1] sm:$0xff]
        %v1508 = vld [vmem:[%s809 + $0x11] sm:$0xff]
        %v1509 = vld [vmem:[%s809 + $0x21] sm:$0xff]
        %v1510 = vld [vmem:[%s809 + $0x31] sm:$0xff]
        %v1511 = vld [vmem:[%s809 + $0x41] sm:$0xff]
        %v1512 = vld [vmem:[%s809 + $0x51] sm:$0xff]
        %v1513 = vld [vmem:[%s809 + $0x61] sm:$0xff]
        %v1514 = vld [vmem:[%s809 + $0x71] sm:$0xff]
        %1516 = vset.pattern.permute.xlu0 0
        %1517 = vperm.xlu0 %1516, %v1507
        %v1518 = vpop.permute.xlu0 %1517
        %1521 = vset.pattern.permute.xlu0 0
        %1522 = vperm.xlu0 %1521, %v1508
        %v1523 = vpop.permute.xlu0 %1522
        %1526 = vset.pattern.permute.xlu0 0
        %1527 = vperm.xlu0 %1526, %v1509
        %v1528 = vpop.permute.xlu0 %1527
        %1531 = vset.pattern.permute.xlu0 0
        %1532 = vperm.xlu0 %1531, %v1510
        %v1533 = vpop.permute.xlu0 %1532
        %1536 = vset.pattern.permute.xlu0 0
        %1537 = vperm.xlu0 %1536, %v1511
        %v1538 = vpop.permute.xlu0 %1537
        %1541 = vset.pattern.permute.xlu0 0
        %1542 = vperm.xlu0 %1541, %v1512
        %v1543 = vpop.permute.xlu0 %1542
        %1546 = vset.pattern.permute.xlu0 0
        %1547 = vperm.xlu0 %1546, %v1513
        %v1548 = vpop.permute.xlu0 %1547
        %1551 = vset.pattern.permute.xlu0 0
        %1552 = vperm.xlu0 %1551, %v1514
        %v1553 = vpop.permute.xlu0 %1552
        %v1555 = vmul.f32 %v1518, %v929
        %v1556 = vmul.f32 %v1523, %v929
        %v1557 = vmul.f32 %v1528, %v929
        %v1558 = vmul.f32 %v1533, %v929
        %v1559 = vmul.f32 %v1538, %v929
        %v1560 = vmul.f32 %v1543, %v929
        %v1561 = vmul.f32 %v1548, %v929
        %v1562 = vmul.f32 %v1553, %v929
        %v1563 = vadd.f32 %v1499, %v1555
        %v1564 = vadd.f32 %v1500, %v1556
        %v1565 = vadd.f32 %v1501, %v1557
        %v1566 = vadd.f32 %v1502, %v1558
        %v1567 = vadd.f32 %v1503, %v1559
        %v1568 = vadd.f32 %v1504, %v1560
        %v1569 = vadd.f32 %v1505, %v1561
        %v1570 = vadd.f32 %v1506, %v1562
        %v1571 = vadd.f32 %v1563, %v949
        %v1572 = vadd.f32 %v1564, %v949
        %v1573 = vadd.f32 %v1565, %v949
        %v1574 = vadd.f32 %v1566, %v949
        %v1575 = vadd.f32 %v1567, %v949
        %v1576 = vadd.f32 %v1568, %v949
        %v1577 = vadd.f32 %v1569, %v949
        %v1578 = vadd.f32 %v1570, %v949
        %vm1579 = vcmp.ge.f32.partialorder %v1571, 0.0
        %vm1580 = vcmp.ge.f32.partialorder %v1572, 0.0
        %vm1581 = vcmp.ge.f32.partialorder %v1573, 0.0
        %vm1582 = vcmp.ge.f32.partialorder %v1574, 0.0
        %vm1583 = vcmp.ge.f32.partialorder %v1575, 0.0
        %vm1584 = vcmp.ge.f32.partialorder %v1576, 0.0
        %vm1585 = vcmp.ge.f32.partialorder %v1577, 0.0
        %vm1586 = vcmp.ge.f32.partialorder %v1578, 0.0
        %v1587 = vmul.f32 %v1571, %v969
        %v1588 = vmul.f32 %v1572, %v969
        %v1589 = vmul.f32 %v1573, %v969
        %v1590 = vmul.f32 %v1574, %v969
        %v1591 = vmul.f32 %v1575, %v969
        %v1592 = vmul.f32 %v1576, %v969
        %v1593 = vmul.f32 %v1577, %v969
        %v1594 = vmul.f32 %v1578, %v969
        %v1595 = vsel %vm1579, %v1571, %v1587
        %v1596 = vsel %vm1580, %v1572, %v1588
        %v1597 = vsel %vm1581, %v1573, %v1589
        %v1598 = vsel %vm1582, %v1574, %v1590
        %v1599 = vsel %vm1583, %v1575, %v1591
        %v1600 = vsel %vm1584, %v1576, %v1592
        %v1601 = vsel %vm1585, %v1577, %v1593
        %v1602 = vsel %vm1586, %v1578, %v1594
        %s1603 = scalar_lea.vmem [#allocation2], 160
        %1604 = vst.msk [vmem:[%s1603] sm:$0xff] %vm254, %v1595
        %1605 = vst.msk [vmem:[%s1603 + $0x10] sm:$0xff] %vm254, %v1596
        %1606 = vst.msk [vmem:[%s1603 + $0x20] sm:$0xff] %vm254, %v1597
        %1607 = vst.msk [vmem:[%s1603 + $0x30] sm:$0xff] %vm254, %v1598
        %1608 = vst.msk [vmem:[%s1603 + $0x40] sm:$0xff] %vm254, %v1599
        %1609 = vst.msk [vmem:[%s1603 + $0x50] sm:$0xff] %vm254, %v1600
        %1610 = vst.msk [vmem:[%s1603 + $0x60] sm:$0xff] %vm254, %v1601
        %1611 = vst.msk [vmem:[%s1603 + $0x70] sm:$0xff] %vm254, %v1602
        %s1612 = scalar_lea.vmem %s249, 320
        %v1613 = vld [vmem:[%s1612 + $0x1] sm:$0xff]
        %v1614 = vld [vmem:[%s1612 + $0x11] sm:$0xff]
        %v1615 = vld [vmem:[%s1612 + $0x21] sm:$0xff]
        %v1616 = vld [vmem:[%s1612 + $0x31] sm:$0xff]
        %v1617 = vld [vmem:[%s1612 + $0x41] sm:$0xff]
        %v1618 = vld [vmem:[%s1612 + $0x51] sm:$0xff]
        %v1619 = vld [vmem:[%s1612 + $0x61] sm:$0xff]
        %v1620 = vld [vmem:[%s1612 + $0x71] sm:$0xff]
        %1622 = vset.pattern.permute.xlu0 0
        %1623 = vperm.xlu0 %1622, %v1613
        %v1624 = vpop.permute.xlu0 %1623
        %1627 = vset.pattern.permute.xlu0 0
        %1628 = vperm.xlu0 %1627, %v1614
        %v1629 = vpop.permute.xlu0 %1628
        %1632 = vset.pattern.permute.xlu0 0
        %1633 = vperm.xlu0 %1632, %v1615
        %v1634 = vpop.permute.xlu0 %1633
        %1637 = vset.pattern.permute.xlu0 0
        %1638 = vperm.xlu0 %1637, %v1616
        %v1639 = vpop.permute.xlu0 %1638
        %1642 = vset.pattern.permute.xlu0 0
        %1643 = vperm.xlu0 %1642, %v1617
        %v1644 = vpop.permute.xlu0 %1643
        %1647 = vset.pattern.permute.xlu0 0
        %1648 = vperm.xlu0 %1647, %v1618
        %v1649 = vpop.permute.xlu0 %1648
        %1652 = vset.pattern.permute.xlu0 0
        %1653 = vperm.xlu0 %1652, %v1619
        %v1654 = vpop.permute.xlu0 %1653
        %1657 = vset.pattern.permute.xlu0 0
        %1658 = vperm.xlu0 %1657, %v1620
        %v1659 = vpop.permute.xlu0 %1658
        %v1661 = vmul.f32 %v1624, %v380
        %v1662 = vmul.f32 %v1629, %v380
        %v1663 = vmul.f32 %v1634, %v380
        %v1664 = vmul.f32 %v1639, %v380
        %v1665 = vmul.f32 %v1644, %v380
        %v1666 = vmul.f32 %v1649, %v380
        %v1667 = vmul.f32 %v1654, %v380
        %v1668 = vmul.f32 %v1659, %v380
        %v1669 = vadd.f32 %v1661, 0.0
        %v1670 = vadd.f32 %v1662, 0.0
        %v1671 = vadd.f32 %v1663, 0.0
        %v1672 = vadd.f32 %v1664, 0.0
        %v1673 = vadd.f32 %v1665, 0.0
        %v1674 = vadd.f32 %v1666, 0.0
        %v1675 = vadd.f32 %v1667, 0.0
        %v1676 = vadd.f32 %v1668, 0.0
        %s1677 = scalar_lea.vmem %s249, 480
        %v1678 = vld [vmem:[%s1677 + $0x1] sm:$0xff]
        %v1679 = vld [vmem:[%s1677 + $0x11] sm:$0xff]
        %v1680 = vld [vmem:[%s1677 + $0x21] sm:$0xff]
        %v1681 = vld [vmem:[%s1677 + $0x31] sm:$0xff]
        %v1682 = vld [vmem:[%s1677 + $0x41] sm:$0xff]
        %v1683 = vld [vmem:[%s1677 + $0x51] sm:$0xff]
        %v1684 = vld [vmem:[%s1677 + $0x61] sm:$0xff]
        %v1685 = vld [vmem:[%s1677 + $0x71] sm:$0xff]
        %1687 = vset.pattern.permute.xlu0 0
        %1688 = vperm.xlu0 %1687, %v1678
        %v1689 = vpop.permute.xlu0 %1688
        %1692 = vset.pattern.permute.xlu0 0
        %1693 = vperm.xlu0 %1692, %v1679
        %v1694 = vpop.permute.xlu0 %1693
        %1697 = vset.pattern.permute.xlu0 0
        %1698 = vperm.xlu0 %1697, %v1680
        %v1699 = vpop.permute.xlu0 %1698
        %1702 = vset.pattern.permute.xlu0 0
        %1703 = vperm.xlu0 %1702, %v1681
        %v1704 = vpop.permute.xlu0 %1703
        %1707 = vset.pattern.permute.xlu0 0
        %1708 = vperm.xlu0 %1707, %v1682
        %v1709 = vpop.permute.xlu0 %1708
        %1712 = vset.pattern.permute.xlu0 0
        %1713 = vperm.xlu0 %1712, %v1683
        %v1714 = vpop.permute.xlu0 %1713
        %1717 = vset.pattern.permute.xlu0 0
        %1718 = vperm.xlu0 %1717, %v1684
        %v1719 = vpop.permute.xlu0 %1718
        %1722 = vset.pattern.permute.xlu0 0
        %1723 = vperm.xlu0 %1722, %v1685
        %v1724 = vpop.permute.xlu0 %1723
        %v1726 = vmul.f32 %v1689, %v449
        %v1727 = vmul.f32 %v1694, %v449
        %v1728 = vmul.f32 %v1699, %v449
        %v1729 = vmul.f32 %v1704, %v449
        %v1730 = vmul.f32 %v1709, %v449
        %v1731 = vmul.f32 %v1714, %v449
        %v1732 = vmul.f32 %v1719, %v449
        %v1733 = vmul.f32 %v1724, %v449
        %v1734 = vadd.f32 %v1669, %v1726
        %v1735 = vadd.f32 %v1670, %v1727
        %v1736 = vadd.f32 %v1671, %v1728
        %v1737 = vadd.f32 %v1672, %v1729
        %v1738 = vadd.f32 %v1673, %v1730
        %v1739 = vadd.f32 %v1674, %v1731
        %v1740 = vadd.f32 %v1675, %v1732
        %v1741 = vadd.f32 %v1676, %v1733
        %v1742 = vld [vmem:[%s1612 + $0x2] sm:$0xff]
        %v1743 = vld [vmem:[%s1612 + $0x12] sm:$0xff]
        %v1744 = vld [vmem:[%s1612 + $0x22] sm:$0xff]
        %v1745 = vld [vmem:[%s1612 + $0x32] sm:$0xff]
        %v1746 = vld [vmem:[%s1612 + $0x42] sm:$0xff]
        %v1747 = vld [vmem:[%s1612 + $0x52] sm:$0xff]
        %v1748 = vld [vmem:[%s1612 + $0x62] sm:$0xff]
        %v1749 = vld [vmem:[%s1612 + $0x72] sm:$0xff]
        %1751 = vset.pattern.permute.xlu0 0
        %1752 = vperm.xlu0 %1751, %v1742
        %v1753 = vpop.permute.xlu0 %1752
        %1756 = vset.pattern.permute.xlu0 0
        %1757 = vperm.xlu0 %1756, %v1743
        %v1758 = vpop.permute.xlu0 %1757
        %1761 = vset.pattern.permute.xlu0 0
        %1762 = vperm.xlu0 %1761, %v1744
        %v1763 = vpop.permute.xlu0 %1762
        %1766 = vset.pattern.permute.xlu0 0
        %1767 = vperm.xlu0 %1766, %v1745
        %v1768 = vpop.permute.xlu0 %1767
        %1771 = vset.pattern.permute.xlu0 0
        %1772 = vperm.xlu0 %1771, %v1746
        %v1773 = vpop.permute.xlu0 %1772
        %1776 = vset.pattern.permute.xlu0 0
        %1777 = vperm.xlu0 %1776, %v1747
        %v1778 = vpop.permute.xlu0 %1777
        %1781 = vset.pattern.permute.xlu0 0
        %1782 = vperm.xlu0 %1781, %v1748
        %v1783 = vpop.permute.xlu0 %1782
        %1786 = vset.pattern.permute.xlu0 0
        %1787 = vperm.xlu0 %1786, %v1749
        %v1788 = vpop.permute.xlu0 %1787
        %v1790 = vmul.f32 %v1753, %v517
        %v1791 = vmul.f32 %v1758, %v517
        %v1792 = vmul.f32 %v1763, %v517
        %v1793 = vmul.f32 %v1768, %v517
        %v1794 = vmul.f32 %v1773, %v517
        %v1795 = vmul.f32 %v1778, %v517
        %v1796 = vmul.f32 %v1783, %v517
        %v1797 = vmul.f32 %v1788, %v517
        %v1798 = vadd.f32 %v1734, %v1790
        %v1799 = vadd.f32 %v1735, %v1791
        %v1800 = vadd.f32 %v1736, %v1792
        %v1801 = vadd.f32 %v1737, %v1793
        %v1802 = vadd.f32 %v1738, %v1794
        %v1803 = vadd.f32 %v1739, %v1795
        %v1804 = vadd.f32 %v1740, %v1796
        %v1805 = vadd.f32 %v1741, %v1797
        %v1806 = vld [vmem:[%s328 + $0x1] sm:$0xff]
        %v1807 = vld [vmem:[%s328 + $0x11] sm:$0xff]
        %v1808 = vld [vmem:[%s328 + $0x21] sm:$0xff]
        %v1809 = vld [vmem:[%s328 + $0x31] sm:$0xff]
        %v1810 = vld [vmem:[%s328 + $0x41] sm:$0xff]
        %v1811 = vld [vmem:[%s328 + $0x51] sm:$0xff]
        %v1812 = vld [vmem:[%s328 + $0x61] sm:$0xff]
        %v1813 = vld [vmem:[%s328 + $0x71] sm:$0xff]
        %1815 = vset.pattern.permute.xlu0 0
        %1816 = vperm.xlu0 %1815, %v1806
        %v1817 = vpop.permute.xlu0 %1816
        %1820 = vset.pattern.permute.xlu0 0
        %1821 = vperm.xlu0 %1820, %v1807
        %v1822 = vpop.permute.xlu0 %1821
        %1825 = vset.pattern.permute.xlu0 0
        %1826 = vperm.xlu0 %1825, %v1808
        %v1827 = vpop.permute.xlu0 %1826
        %1830 = vset.pattern.permute.xlu0 0
        %1831 = vperm.xlu0 %1830, %v1809
        %v1832 = vpop.permute.xlu0 %1831
        %1835 = vset.pattern.permute.xlu0 0
        %1836 = vperm.xlu0 %1835, %v1810
        %v1837 = vpop.permute.xlu0 %1836
        %1840 = vset.pattern.permute.xlu0 0
        %1841 = vperm.xlu0 %1840, %v1811
        %v1842 = vpop.permute.xlu0 %1841
        %1845 = vset.pattern.permute.xlu0 0
        %1846 = vperm.xlu0 %1845, %v1812
        %v1847 = vpop.permute.xlu0 %1846
        %1850 = vset.pattern.permute.xlu0 0
        %1851 = vperm.xlu0 %1850, %v1813
        %v1852 = vpop.permute.xlu0 %1851
        %v1854 = vmul.f32 %v1817, %v586
        %v1855 = vmul.f32 %v1822, %v586
        %v1856 = vmul.f32 %v1827, %v586
        %v1857 = vmul.f32 %v1832, %v586
        %v1858 = vmul.f32 %v1837, %v586
        %v1859 = vmul.f32 %v1842, %v586
        %v1860 = vmul.f32 %v1847, %v586
        %v1861 = vmul.f32 %v1852, %v586
        %v1862 = vadd.f32 %v1798, %v1854
        %v1863 = vadd.f32 %v1799, %v1855
        %v1864 = vadd.f32 %v1800, %v1856
        %v1865 = vadd.f32 %v1801, %v1857
        %v1866 = vadd.f32 %v1802, %v1858
        %v1867 = vadd.f32 %v1803, %v1859
        %v1868 = vadd.f32 %v1804, %v1860
        %v1869 = vadd.f32 %v1805, %v1861
        %v1870 = vld [vmem:[%s397 + $0x1] sm:$0xff]
        %v1871 = vld [vmem:[%s397 + $0x11] sm:$0xff]
        %v1872 = vld [vmem:[%s397 + $0x21] sm:$0xff]
        %v1873 = vld [vmem:[%s397 + $0x31] sm:$0xff]
        %v1874 = vld [vmem:[%s397 + $0x41] sm:$0xff]
        %v1875 = vld [vmem:[%s397 + $0x51] sm:$0xff]
        %v1876 = vld [vmem:[%s397 + $0x61] sm:$0xff]
        %v1877 = vld [vmem:[%s397 + $0x71] sm:$0xff]
        %1879 = vset.pattern.permute.xlu0 0
        %1880 = vperm.xlu0 %1879, %v1870
        %v1881 = vpop.permute.xlu0 %1880
        %1884 = vset.pattern.permute.xlu0 0
        %1885 = vperm.xlu0 %1884, %v1871
        %v1886 = vpop.permute.xlu0 %1885
        %1889 = vset.pattern.permute.xlu0 0
        %1890 = vperm.xlu0 %1889, %v1872
        %v1891 = vpop.permute.xlu0 %1890
        %1894 = vset.pattern.permute.xlu0 0
        %1895 = vperm.xlu0 %1894, %v1873
        %v1896 = vpop.permute.xlu0 %1895
        %1899 = vset.pattern.permute.xlu0 0
        %1900 = vperm.xlu0 %1899, %v1874
        %v1901 = vpop.permute.xlu0 %1900
        %1904 = vset.pattern.permute.xlu0 0
        %1905 = vperm.xlu0 %1904, %v1875
        %v1906 = vpop.permute.xlu0 %1905
        %1909 = vset.pattern.permute.xlu0 0
        %1910 = vperm.xlu0 %1909, %v1876
        %v1911 = vpop.permute.xlu0 %1910
        %1914 = vset.pattern.permute.xlu0 0
        %1915 = vperm.xlu0 %1914, %v1877
        %v1916 = vpop.permute.xlu0 %1915
        %v1918 = vmul.f32 %v1881, %v655
        %v1919 = vmul.f32 %v1886, %v655
        %v1920 = vmul.f32 %v1891, %v655
        %v1921 = vmul.f32 %v1896, %v655
        %v1922 = vmul.f32 %v1901, %v655
        %v1923 = vmul.f32 %v1906, %v655
        %v1924 = vmul.f32 %v1911, %v655
        %v1925 = vmul.f32 %v1916, %v655
        %v1926 = vadd.f32 %v1862, %v1918
        %v1927 = vadd.f32 %v1863, %v1919
        %v1928 = vadd.f32 %v1864, %v1920
        %v1929 = vadd.f32 %v1865, %v1921
        %v1930 = vadd.f32 %v1866, %v1922
        %v1931 = vadd.f32 %v1867, %v1923
        %v1932 = vadd.f32 %v1868, %v1924
        %v1933 = vadd.f32 %v1869, %v1925
        %v1934 = vld [vmem:[%s328 + $0x2] sm:$0xff]
        %v1935 = vld [vmem:[%s328 + $0x12] sm:$0xff]
        %v1936 = vld [vmem:[%s328 + $0x22] sm:$0xff]
        %v1937 = vld [vmem:[%s328 + $0x32] sm:$0xff]
        %v1938 = vld [vmem:[%s328 + $0x42] sm:$0xff]
        %v1939 = vld [vmem:[%s328 + $0x52] sm:$0xff]
        %v1940 = vld [vmem:[%s328 + $0x62] sm:$0xff]
        %v1941 = vld [vmem:[%s328 + $0x72] sm:$0xff]
        %1943 = vset.pattern.permute.xlu0 0
        %1944 = vperm.xlu0 %1943, %v1934
        %v1945 = vpop.permute.xlu0 %1944
        %1948 = vset.pattern.permute.xlu0 0
        %1949 = vperm.xlu0 %1948, %v1935
        %v1950 = vpop.permute.xlu0 %1949
        %1953 = vset.pattern.permute.xlu0 0
        %1954 = vperm.xlu0 %1953, %v1936
        %v1955 = vpop.permute.xlu0 %1954
        %1958 = vset.pattern.permute.xlu0 0
        %1959 = vperm.xlu0 %1958, %v1937
        %v1960 = vpop.permute.xlu0 %1959
        %1963 = vset.pattern.permute.xlu0 0
        %1964 = vperm.xlu0 %1963, %v1938
        %v1965 = vpop.permute.xlu0 %1964
        %1968 = vset.pattern.permute.xlu0 0
        %1969 = vperm.xlu0 %1968, %v1939
        %v1970 = vpop.permute.xlu0 %1969
        %1973 = vset.pattern.permute.xlu0 0
        %1974 = vperm.xlu0 %1973, %v1940
        %v1975 = vpop.permute.xlu0 %1974
        %1978 = vset.pattern.permute.xlu0 0
        %1979 = vperm.xlu0 %1978, %v1941
        %v1980 = vpop.permute.xlu0 %1979
        %v1982 = vmul.f32 %v1945, %v723
        %v1983 = vmul.f32 %v1950, %v723
        %v1984 = vmul.f32 %v1955, %v723
        %v1985 = vmul.f32 %v1960, %v723
        %v1986 = vmul.f32 %v1965, %v723
        %v1987 = vmul.f32 %v1970, %v723
        %v1988 = vmul.f32 %v1975, %v723
        %v1989 = vmul.f32 %v1980, %v723
        %v1990 = vadd.f32 %v1926, %v1982
        %v1991 = vadd.f32 %v1927, %v1983
        %v1992 = vadd.f32 %v1928, %v1984
        %v1993 = vadd.f32 %v1929, %v1985
        %v1994 = vadd.f32 %v1930, %v1986
        %v1995 = vadd.f32 %v1931, %v1987
        %v1996 = vadd.f32 %v1932, %v1988
        %v1997 = vadd.f32 %v1933, %v1989
        %v1998 = vld [vmem:[%s534 + $0x1] sm:$0xff]
        %v1999 = vld [vmem:[%s534 + $0x11] sm:$0xff]
        %v2000 = vld [vmem:[%s534 + $0x21] sm:$0xff]
        %v2001 = vld [vmem:[%s534 + $0x31] sm:$0xff]
        %v2002 = vld [vmem:[%s534 + $0x41] sm:$0xff]
        %v2003 = vld [vmem:[%s534 + $0x51] sm:$0xff]
        %v2004 = vld [vmem:[%s534 + $0x61] sm:$0xff]
        %v2005 = vld [vmem:[%s534 + $0x71] sm:$0xff]
        %2007 = vset.pattern.permute.xlu0 0
        %2008 = vperm.xlu0 %2007, %v1998
        %v2009 = vpop.permute.xlu0 %2008
        %2012 = vset.pattern.permute.xlu0 0
        %2013 = vperm.xlu0 %2012, %v1999
        %v2014 = vpop.permute.xlu0 %2013
        %2017 = vset.pattern.permute.xlu0 0
        %2018 = vperm.xlu0 %2017, %v2000
        %v2019 = vpop.permute.xlu0 %2018
        %2022 = vset.pattern.permute.xlu0 0
        %2023 = vperm.xlu0 %2022, %v2001
        %v2024 = vpop.permute.xlu0 %2023
        %2027 = vset.pattern.permute.xlu0 0
        %2028 = vperm.xlu0 %2027, %v2002
        %v2029 = vpop.permute.xlu0 %2028
        %2032 = vset.pattern.permute.xlu0 0
        %2033 = vperm.xlu0 %2032, %v2003
        %v2034 = vpop.permute.xlu0 %2033
        %2037 = vset.pattern.permute.xlu0 0
        %2038 = vperm.xlu0 %2037, %v2004
        %v2039 = vpop.permute.xlu0 %2038
        %2042 = vset.pattern.permute.xlu0 0
        %2043 = vperm.xlu0 %2042, %v2005
        %v2044 = vpop.permute.xlu0 %2043
        %v2046 = vmul.f32 %v2009, %v792
        %v2047 = vmul.f32 %v2014, %v792
        %v2048 = vmul.f32 %v2019, %v792
        %v2049 = vmul.f32 %v2024, %v792
        %v2050 = vmul.f32 %v2029, %v792
        %v2051 = vmul.f32 %v2034, %v792
        %v2052 = vmul.f32 %v2039, %v792
        %v2053 = vmul.f32 %v2044, %v792
        %v2054 = vadd.f32 %v1990, %v2046
        %v2055 = vadd.f32 %v1991, %v2047
        %v2056 = vadd.f32 %v1992, %v2048
        %v2057 = vadd.f32 %v1993, %v2049
        %v2058 = vadd.f32 %v1994, %v2050
        %v2059 = vadd.f32 %v1995, %v2051
        %v2060 = vadd.f32 %v1996, %v2052
        %v2061 = vadd.f32 %v1997, %v2053
        %v2062 = vld [vmem:[%s603 + $0x1] sm:$0xff]
        %v2063 = vld [vmem:[%s603 + $0x11] sm:$0xff]
        %v2064 = vld [vmem:[%s603 + $0x21] sm:$0xff]
        %v2065 = vld [vmem:[%s603 + $0x31] sm:$0xff]
        %v2066 = vld [vmem:[%s603 + $0x41] sm:$0xff]
        %v2067 = vld [vmem:[%s603 + $0x51] sm:$0xff]
        %v2068 = vld [vmem:[%s603 + $0x61] sm:$0xff]
        %v2069 = vld [vmem:[%s603 + $0x71] sm:$0xff]
        %2071 = vset.pattern.permute.xlu0 0
        %2072 = vperm.xlu0 %2071, %v2062
        %v2073 = vpop.permute.xlu0 %2072
        %2076 = vset.pattern.permute.xlu0 0
        %2077 = vperm.xlu0 %2076, %v2063
        %v2078 = vpop.permute.xlu0 %2077
        %2081 = vset.pattern.permute.xlu0 0
        %2082 = vperm.xlu0 %2081, %v2064
        %v2083 = vpop.permute.xlu0 %2082
        %2086 = vset.pattern.permute.xlu0 0
        %2087 = vperm.xlu0 %2086, %v2065
        %v2088 = vpop.permute.xlu0 %2087
        %2091 = vset.pattern.permute.xlu0 0
        %2092 = vperm.xlu0 %2091, %v2066
        %v2093 = vpop.permute.xlu0 %2092
        %2096 = vset.pattern.permute.xlu0 0
        %2097 = vperm.xlu0 %2096, %v2067
        %v2098 = vpop.permute.xlu0 %2097
        %2101 = vset.pattern.permute.xlu0 0
        %2102 = vperm.xlu0 %2101, %v2068
        %v2103 = vpop.permute.xlu0 %2102
        %2106 = vset.pattern.permute.xlu0 0
        %2107 = vperm.xlu0 %2106, %v2069
        %v2108 = vpop.permute.xlu0 %2107
        %v2110 = vmul.f32 %v2073, %v861
        %v2111 = vmul.f32 %v2078, %v861
        %v2112 = vmul.f32 %v2083, %v861
        %v2113 = vmul.f32 %v2088, %v861
        %v2114 = vmul.f32 %v2093, %v861
        %v2115 = vmul.f32 %v2098, %v861
        %v2116 = vmul.f32 %v2103, %v861
        %v2117 = vmul.f32 %v2108, %v861
        %v2118 = vadd.f32 %v2054, %v2110
        %v2119 = vadd.f32 %v2055, %v2111
        %v2120 = vadd.f32 %v2056, %v2112
        %v2121 = vadd.f32 %v2057, %v2113
        %v2122 = vadd.f32 %v2058, %v2114
        %v2123 = vadd.f32 %v2059, %v2115
        %v2124 = vadd.f32 %v2060, %v2116
        %v2125 = vadd.f32 %v2061, %v2117
        %v2126 = vld [vmem:[%s534 + $0x2] sm:$0xff]
        %v2127 = vld [vmem:[%s534 + $0x12] sm:$0xff]
        %v2128 = vld [vmem:[%s534 + $0x22] sm:$0xff]
        %v2129 = vld [vmem:[%s534 + $0x32] sm:$0xff]
        %v2130 = vld [vmem:[%s534 + $0x42] sm:$0xff]
        %v2131 = vld [vmem:[%s534 + $0x52] sm:$0xff]
        %v2132 = vld [vmem:[%s534 + $0x62] sm:$0xff]
        %v2133 = vld [vmem:[%s534 + $0x72] sm:$0xff]
        %2135 = vset.pattern.permute.xlu0 0
        %2136 = vperm.xlu0 %2135, %v2126
        %v2137 = vpop.permute.xlu0 %2136
        %2140 = vset.pattern.permute.xlu0 0
        %2141 = vperm.xlu0 %2140, %v2127
        %v2142 = vpop.permute.xlu0 %2141
        %2145 = vset.pattern.permute.xlu0 0
        %2146 = vperm.xlu0 %2145, %v2128
        %v2147 = vpop.permute.xlu0 %2146
        %2150 = vset.pattern.permute.xlu0 0
        %2151 = vperm.xlu0 %2150, %v2129
        %v2152 = vpop.permute.xlu0 %2151
        %2155 = vset.pattern.permute.xlu0 0
        %2156 = vperm.xlu0 %2155, %v2130
        %v2157 = vpop.permute.xlu0 %2156
        %2160 = vset.pattern.permute.xlu0 0
        %2161 = vperm.xlu0 %2160, %v2131
        %v2162 = vpop.permute.xlu0 %2161
        %2165 = vset.pattern.permute.xlu0 0
        %2166 = vperm.xlu0 %2165, %v2132
        %v2167 = vpop.permute.xlu0 %2166
        %2170 = vset.pattern.permute.xlu0 0
        %2171 = vperm.xlu0 %2170, %v2133
        %v2172 = vpop.permute.xlu0 %2171
        %v2174 = vmul.f32 %v2137, %v929
        %v2175 = vmul.f32 %v2142, %v929
        %v2176 = vmul.f32 %v2147, %v929
        %v2177 = vmul.f32 %v2152, %v929
        %v2178 = vmul.f32 %v2157, %v929
        %v2179 = vmul.f32 %v2162, %v929
        %v2180 = vmul.f32 %v2167, %v929
        %v2181 = vmul.f32 %v2172, %v929
        %v2182 = vadd.f32 %v2118, %v2174
        %v2183 = vadd.f32 %v2119, %v2175
        %v2184 = vadd.f32 %v2120, %v2176
        %v2185 = vadd.f32 %v2121, %v2177
        %v2186 = vadd.f32 %v2122, %v2178
        %v2187 = vadd.f32 %v2123, %v2179
        %v2188 = vadd.f32 %v2124, %v2180
        %v2189 = vadd.f32 %v2125, %v2181
        %v2190 = vadd.f32 %v2182, %v949
        %v2191 = vadd.f32 %v2183, %v949
        %v2192 = vadd.f32 %v2184, %v949
        %v2193 = vadd.f32 %v2185, %v949
        %v2194 = vadd.f32 %v2186, %v949
        %v2195 = vadd.f32 %v2187, %v949
        %v2196 = vadd.f32 %v2188, %v949
        %v2197 = vadd.f32 %v2189, %v949
        %vm2198 = vcmp.ge.f32.partialorder %v2190, 0.0
        %vm2199 = vcmp.ge.f32.partialorder %v2191, 0.0
        %vm2200 = vcmp.ge.f32.partialorder %v2192, 0.0
        %vm2201 = vcmp.ge.f32.partialorder %v2193, 0.0
        %vm2202 = vcmp.ge.f32.partialorder %v2194, 0.0
        %vm2203 = vcmp.ge.f32.partialorder %v2195, 0.0
        %vm2204 = vcmp.ge.f32.partialorder %v2196, 0.0
        %vm2205 = vcmp.ge.f32.partialorder %v2197, 0.0
        %v2206 = vmul.f32 %v2190, %v969
        %v2207 = vmul.f32 %v2191, %v969
        %v2208 = vmul.f32 %v2192, %v969
        %v2209 = vmul.f32 %v2193, %v969
        %v2210 = vmul.f32 %v2194, %v969
        %v2211 = vmul.f32 %v2195, %v969
        %v2212 = vmul.f32 %v2196, %v969
        %v2213 = vmul.f32 %v2197, %v969
        %v2214 = vsel %vm2198, %v2190, %v2206
        %v2215 = vsel %vm2199, %v2191, %v2207
        %v2216 = vsel %vm2200, %v2192, %v2208
        %v2217 = vsel %vm2201, %v2193, %v2209
        %v2218 = vsel %vm2202, %v2194, %v2210
        %v2219 = vsel %vm2203, %v2195, %v2211
        %v2220 = vsel %vm2204, %v2196, %v2212
        %v2221 = vsel %vm2205, %v2197, %v2213
        %s2222 = scalar_lea.vmem [#allocation2], 288
        %2223 = vst.msk [vmem:[%s2222 + $0x1] sm:$0xff] %vm254, %v2214
        %2224 = vst.msk [vmem:[%s2222 + $0x11] sm:$0xff] %vm254, %v2215
        %2225 = vst.msk [vmem:[%s2222 + $0x21] sm:$0xff] %vm254, %v2216
        %2226 = vst.msk [vmem:[%s2222 + $0x31] sm:$0xff] %vm254, %v2217
        %2227 = vst.msk [vmem:[%s2222 + $0x41] sm:$0xff] %vm254, %v2218
        %2228 = vst.msk [vmem:[%s2222 + $0x51] sm:$0xff] %vm254, %v2219
        %2229 = vst.msk [vmem:[%s2222 + $0x61] sm:$0xff] %vm254, %v2220
        %2230 = vst.msk [vmem:[%s2222 + $0x71] sm:$0xff] %vm254, %v2221
        %v2231 = vld [vmem:[%s1677] sm:$0xff]
        %v2232 = vld [vmem:[%s1677 + $0x10] sm:$0xff]
        %v2233 = vld [vmem:[%s1677 + $0x20] sm:$0xff]
        %v2234 = vld [vmem:[%s1677 + $0x30] sm:$0xff]
        %v2235 = vld [vmem:[%s1677 + $0x40] sm:$0xff]
        %v2236 = vld [vmem:[%s1677 + $0x50] sm:$0xff]
        %v2237 = vld [vmem:[%s1677 + $0x60] sm:$0xff]
        %v2238 = vld [vmem:[%s1677 + $0x70] sm:$0xff]
        %2240 = vset.pattern.permute.xlu0 0
        %2241 = vperm.xlu0 %2240, %v2231
        %v2242 = vpop.permute.xlu0 %2241
        %2245 = vset.pattern.permute.xlu0 0
        %2246 = vperm.xlu0 %2245, %v2232
        %v2247 = vpop.permute.xlu0 %2246
        %2250 = vset.pattern.permute.xlu0 0
        %2251 = vperm.xlu0 %2250, %v2233
        %v2252 = vpop.permute.xlu0 %2251
        %2255 = vset.pattern.permute.xlu0 0
        %2256 = vperm.xlu0 %2255, %v2234
        %v2257 = vpop.permute.xlu0 %2256
        %2260 = vset.pattern.permute.xlu0 0
        %2261 = vperm.xlu0 %2260, %v2235
        %v2262 = vpop.permute.xlu0 %2261
        %2265 = vset.pattern.permute.xlu0 0
        %2266 = vperm.xlu0 %2265, %v2236
        %v2267 = vpop.permute.xlu0 %2266
        %2270 = vset.pattern.permute.xlu0 0
        %2271 = vperm.xlu0 %2270, %v2237
        %v2272 = vpop.permute.xlu0 %2271
        %2275 = vset.pattern.permute.xlu0 0
        %2276 = vperm.xlu0 %2275, %v2238
        %v2277 = vpop.permute.xlu0 %2276
        %v2279 = vmul.f32 %v2242, %v380
        %v2280 = vmul.f32 %v2247, %v380
        %v2281 = vmul.f32 %v2252, %v380
        %v2282 = vmul.f32 %v2257, %v380
        %v2283 = vmul.f32 %v2262, %v380
        %v2284 = vmul.f32 %v2267, %v380
        %v2285 = vmul.f32 %v2272, %v380
        %v2286 = vmul.f32 %v2277, %v380
        %v2287 = vadd.f32 %v2279, 0.0
        %v2288 = vadd.f32 %v2280, 0.0
        %v2289 = vadd.f32 %v2281, 0.0
        %v2290 = vadd.f32 %v2282, 0.0
        %v2291 = vadd.f32 %v2283, 0.0
        %v2292 = vadd.f32 %v2284, 0.0
        %v2293 = vadd.f32 %v2285, 0.0
        %v2294 = vadd.f32 %v2286, 0.0
        %v2295 = vld [vmem:[%s1612 + $0x1] sm:$0xff]
        %v2296 = vld [vmem:[%s1612 + $0x11] sm:$0xff]
        %v2297 = vld [vmem:[%s1612 + $0x21] sm:$0xff]
        %v2298 = vld [vmem:[%s1612 + $0x31] sm:$0xff]
        %v2299 = vld [vmem:[%s1612 + $0x41] sm:$0xff]
        %v2300 = vld [vmem:[%s1612 + $0x51] sm:$0xff]
        %v2301 = vld [vmem:[%s1612 + $0x61] sm:$0xff]
        %v2302 = vld [vmem:[%s1612 + $0x71] sm:$0xff]
        %2304 = vset.pattern.permute.xlu0 0
        %2305 = vperm.xlu0 %2304, %v2295
        %v2306 = vpop.permute.xlu0 %2305
        %2309 = vset.pattern.permute.xlu0 0
        %2310 = vperm.xlu0 %2309, %v2296
        %v2311 = vpop.permute.xlu0 %2310
        %2314 = vset.pattern.permute.xlu0 0
        %2315 = vperm.xlu0 %2314, %v2297
        %v2316 = vpop.permute.xlu0 %2315
        %2319 = vset.pattern.permute.xlu0 0
        %2320 = vperm.xlu0 %2319, %v2298
        %v2321 = vpop.permute.xlu0 %2320
        %2324 = vset.pattern.permute.xlu0 0
        %2325 = vperm.xlu0 %2324, %v2299
        %v2326 = vpop.permute.xlu0 %2325
        %2329 = vset.pattern.permute.xlu0 0
        %2330 = vperm.xlu0 %2329, %v2300
        %v2331 = vpop.permute.xlu0 %2330
        %2334 = vset.pattern.permute.xlu0 0
        %2335 = vperm.xlu0 %2334, %v2301
        %v2336 = vpop.permute.xlu0 %2335
        %2339 = vset.pattern.permute.xlu0 0
        %2340 = vperm.xlu0 %2339, %v2302
        %v2341 = vpop.permute.xlu0 %2340
        %v2343 = vmul.f32 %v2306, %v449
        %v2344 = vmul.f32 %v2311, %v449
        %v2345 = vmul.f32 %v2316, %v449
        %v2346 = vmul.f32 %v2321, %v449
        %v2347 = vmul.f32 %v2326, %v449
        %v2348 = vmul.f32 %v2331, %v449
        %v2349 = vmul.f32 %v2336, %v449
        %v2350 = vmul.f32 %v2341, %v449
        %v2351 = vadd.f32 %v2287, %v2343
        %v2352 = vadd.f32 %v2288, %v2344
        %v2353 = vadd.f32 %v2289, %v2345
        %v2354 = vadd.f32 %v2290, %v2346
        %v2355 = vadd.f32 %v2291, %v2347
        %v2356 = vadd.f32 %v2292, %v2348
        %v2357 = vadd.f32 %v2293, %v2349
        %v2358 = vadd.f32 %v2294, %v2350
        %v2359 = vld [vmem:[%s1677 + $0x1] sm:$0xff]
        %v2360 = vld [vmem:[%s1677 + $0x11] sm:$0xff]
        %v2361 = vld [vmem:[%s1677 + $0x21] sm:$0xff]
        %v2362 = vld [vmem:[%s1677 + $0x31] sm:$0xff]
        %v2363 = vld [vmem:[%s1677 + $0x41] sm:$0xff]
        %v2364 = vld [vmem:[%s1677 + $0x51] sm:$0xff]
        %v2365 = vld [vmem:[%s1677 + $0x61] sm:$0xff]
        %v2366 = vld [vmem:[%s1677 + $0x71] sm:$0xff]
        %2368 = vset.pattern.permute.xlu0 0
        %2369 = vperm.xlu0 %2368, %v2359
        %v2370 = vpop.permute.xlu0 %2369
        %2373 = vset.pattern.permute.xlu0 0
        %2374 = vperm.xlu0 %2373, %v2360
        %v2375 = vpop.permute.xlu0 %2374
        %2378 = vset.pattern.permute.xlu0 0
        %2379 = vperm.xlu0 %2378, %v2361
        %v2380 = vpop.permute.xlu0 %2379
        %2383 = vset.pattern.permute.xlu0 0
        %2384 = vperm.xlu0 %2383, %v2362
        %v2385 = vpop.permute.xlu0 %2384
        %2388 = vset.pattern.permute.xlu0 0
        %2389 = vperm.xlu0 %2388, %v2363
        %v2390 = vpop.permute.xlu0 %2389
        %2393 = vset.pattern.permute.xlu0 0
        %2394 = vperm.xlu0 %2393, %v2364
        %v2395 = vpop.permute.xlu0 %2394
        %2398 = vset.pattern.permute.xlu0 0
        %2399 = vperm.xlu0 %2398, %v2365
        %v2400 = vpop.permute.xlu0 %2399
        %2403 = vset.pattern.permute.xlu0 0
        %2404 = vperm.xlu0 %2403, %v2366
        %v2405 = vpop.permute.xlu0 %2404
        %v2407 = vmul.f32 %v2370, %v517
        %v2408 = vmul.f32 %v2375, %v517
        %v2409 = vmul.f32 %v2380, %v517
        %v2410 = vmul.f32 %v2385, %v517
        %v2411 = vmul.f32 %v2390, %v517
        %v2412 = vmul.f32 %v2395, %v517
        %v2413 = vmul.f32 %v2400, %v517
        %v2414 = vmul.f32 %v2405, %v517
        %v2415 = vadd.f32 %v2351, %v2407
        %v2416 = vadd.f32 %v2352, %v2408
        %v2417 = vadd.f32 %v2353, %v2409
        %v2418 = vadd.f32 %v2354, %v2410
        %v2419 = vadd.f32 %v2355, %v2411
        %v2420 = vadd.f32 %v2356, %v2412
        %v2421 = vadd.f32 %v2357, %v2413
        %v2422 = vadd.f32 %v2358, %v2414
        %v2423 = vld [vmem:[%s397] sm:$0xff]
        %v2424 = vld [vmem:[%s397 + $0x10] sm:$0xff]
        %v2425 = vld [vmem:[%s397 + $0x20] sm:$0xff]
        %v2426 = vld [vmem:[%s397 + $0x30] sm:$0xff]
        %v2427 = vld [vmem:[%s397 + $0x40] sm:$0xff]
        %v2428 = vld [vmem:[%s397 + $0x50] sm:$0xff]
        %v2429 = vld [vmem:[%s397 + $0x60] sm:$0xff]
        %v2430 = vld [vmem:[%s397 + $0x70] sm:$0xff]
        %2432 = vset.pattern.permute.xlu0 0
        %2433 = vperm.xlu0 %2432, %v2423
        %v2434 = vpop.permute.xlu0 %2433
        %2437 = vset.pattern.permute.xlu0 0
        %2438 = vperm.xlu0 %2437, %v2424
        %v2439 = vpop.permute.xlu0 %2438
        %2442 = vset.pattern.permute.xlu0 0
        %2443 = vperm.xlu0 %2442, %v2425
        %v2444 = vpop.permute.xlu0 %2443
        %2447 = vset.pattern.permute.xlu0 0
        %2448 = vperm.xlu0 %2447, %v2426
        %v2449 = vpop.permute.xlu0 %2448
        %2452 = vset.pattern.permute.xlu0 0
        %2453 = vperm.xlu0 %2452, %v2427
        %v2454 = vpop.permute.xlu0 %2453
        %2457 = vset.pattern.permute.xlu0 0
        %2458 = vperm.xlu0 %2457, %v2428
        %v2459 = vpop.permute.xlu0 %2458
        %2462 = vset.pattern.permute.xlu0 0
        %2463 = vperm.xlu0 %2462, %v2429
        %v2464 = vpop.permute.xlu0 %2463
        %2467 = vset.pattern.permute.xlu0 0
        %2468 = vperm.xlu0 %2467, %v2430
        %v2469 = vpop.permute.xlu0 %2468
        %v2471 = vmul.f32 %v2434, %v586
        %v2472 = vmul.f32 %v2439, %v586
        %v2473 = vmul.f32 %v2444, %v586
        %v2474 = vmul.f32 %v2449, %v586
        %v2475 = vmul.f32 %v2454, %v586
        %v2476 = vmul.f32 %v2459, %v586
        %v2477 = vmul.f32 %v2464, %v586
        %v2478 = vmul.f32 %v2469, %v586
        %v2479 = vadd.f32 %v2415, %v2471
        %v2480 = vadd.f32 %v2416, %v2472
        %v2481 = vadd.f32 %v2417, %v2473
        %v2482 = vadd.f32 %v2418, %v2474
        %v2483 = vadd.f32 %v2419, %v2475
        %v2484 = vadd.f32 %v2420, %v2476
        %v2485 = vadd.f32 %v2421, %v2477
        %v2486 = vadd.f32 %v2422, %v2478
        %v2487 = vld [vmem:[%s328 + $0x1] sm:$0xff]
        %v2488 = vld [vmem:[%s328 + $0x11] sm:$0xff]
        %v2489 = vld [vmem:[%s328 + $0x21] sm:$0xff]
        %v2490 = vld [vmem:[%s328 + $0x31] sm:$0xff]
        %v2491 = vld [vmem:[%s328 + $0x41] sm:$0xff]
        %v2492 = vld [vmem:[%s328 + $0x51] sm:$0xff]
        %v2493 = vld [vmem:[%s328 + $0x61] sm:$0xff]
        %v2494 = vld [vmem:[%s328 + $0x71] sm:$0xff]
        %2496 = vset.pattern.permute.xlu0 0
        %2497 = vperm.xlu0 %2496, %v2487
        %v2498 = vpop.permute.xlu0 %2497
        %2501 = vset.pattern.permute.xlu0 0
        %2502 = vperm.xlu0 %2501, %v2488
        %v2503 = vpop.permute.xlu0 %2502
        %2506 = vset.pattern.permute.xlu0 0
        %2507 = vperm.xlu0 %2506, %v2489
        %v2508 = vpop.permute.xlu0 %2507
        %2511 = vset.pattern.permute.xlu0 0
        %2512 = vperm.xlu0 %2511, %v2490
        %v2513 = vpop.permute.xlu0 %2512
        %2516 = vset.pattern.permute.xlu0 0
        %2517 = vperm.xlu0 %2516, %v2491
        %v2518 = vpop.permute.xlu0 %2517
        %2521 = vset.pattern.permute.xlu0 0
        %2522 = vperm.xlu0 %2521, %v2492
        %v2523 = vpop.permute.xlu0 %2522
        %2526 = vset.pattern.permute.xlu0 0
        %2527 = vperm.xlu0 %2526, %v2493
        %v2528 = vpop.permute.xlu0 %2527
        %2531 = vset.pattern.permute.xlu0 0
        %2532 = vperm.xlu0 %2531, %v2494
        %v2533 = vpop.permute.xlu0 %2532
        %v2535 = vmul.f32 %v2498, %v655
        %v2536 = vmul.f32 %v2503, %v655
        %v2537 = vmul.f32 %v2508, %v655
        %v2538 = vmul.f32 %v2513, %v655
        %v2539 = vmul.f32 %v2518, %v655
        %v2540 = vmul.f32 %v2523, %v655
        %v2541 = vmul.f32 %v2528, %v655
        %v2542 = vmul.f32 %v2533, %v655
        %v2543 = vadd.f32 %v2479, %v2535
        %v2544 = vadd.f32 %v2480, %v2536
        %v2545 = vadd.f32 %v2481, %v2537
        %v2546 = vadd.f32 %v2482, %v2538
        %v2547 = vadd.f32 %v2483, %v2539
        %v2548 = vadd.f32 %v2484, %v2540
        %v2549 = vadd.f32 %v2485, %v2541
        %v2550 = vadd.f32 %v2486, %v2542
        %v2551 = vld [vmem:[%s397 + $0x1] sm:$0xff]
        %v2552 = vld [vmem:[%s397 + $0x11] sm:$0xff]
        %v2553 = vld [vmem:[%s397 + $0x21] sm:$0xff]
        %v2554 = vld [vmem:[%s397 + $0x31] sm:$0xff]
        %v2555 = vld [vmem:[%s397 + $0x41] sm:$0xff]
        %v2556 = vld [vmem:[%s397 + $0x51] sm:$0xff]
        %v2557 = vld [vmem:[%s397 + $0x61] sm:$0xff]
        %v2558 = vld [vmem:[%s397 + $0x71] sm:$0xff]
        %2560 = vset.pattern.permute.xlu0 0
        %2561 = vperm.xlu0 %2560, %v2551
        %v2562 = vpop.permute.xlu0 %2561
        %2565 = vset.pattern.permute.xlu0 0
        %2566 = vperm.xlu0 %2565, %v2552
        %v2567 = vpop.permute.xlu0 %2566
        %2570 = vset.pattern.permute.xlu0 0
        %2571 = vperm.xlu0 %2570, %v2553
        %v2572 = vpop.permute.xlu0 %2571
        %2575 = vset.pattern.permute.xlu0 0
        %2576 = vperm.xlu0 %2575, %v2554
        %v2577 = vpop.permute.xlu0 %2576
        %2580 = vset.pattern.permute.xlu0 0
        %2581 = vperm.xlu0 %2580, %v2555
        %v2582 = vpop.permute.xlu0 %2581
        %2585 = vset.pattern.permute.xlu0 0
        %2586 = vperm.xlu0 %2585, %v2556
        %v2587 = vpop.permute.xlu0 %2586
        %2590 = vset.pattern.permute.xlu0 0
        %2591 = vperm.xlu0 %2590, %v2557
        %v2592 = vpop.permute.xlu0 %2591
        %2595 = vset.pattern.permute.xlu0 0
        %2596 = vperm.xlu0 %2595, %v2558
        %v2597 = vpop.permute.xlu0 %2596
        %v2599 = vmul.f32 %v2562, %v723
        %v2600 = vmul.f32 %v2567, %v723
        %v2601 = vmul.f32 %v2572, %v723
        %v2602 = vmul.f32 %v2577, %v723
        %v2603 = vmul.f32 %v2582, %v723
        %v2604 = vmul.f32 %v2587, %v723
        %v2605 = vmul.f32 %v2592, %v723
        %v2606 = vmul.f32 %v2597, %v723
        %v2607 = vadd.f32 %v2543, %v2599
        %v2608 = vadd.f32 %v2544, %v2600
        %v2609 = vadd.f32 %v2545, %v2601
        %v2610 = vadd.f32 %v2546, %v2602
        %v2611 = vadd.f32 %v2547, %v2603
        %v2612 = vadd.f32 %v2548, %v2604
        %v2613 = vadd.f32 %v2549, %v2605
        %v2614 = vadd.f32 %v2550, %v2606
        %v2615 = vld [vmem:[%s603] sm:$0xff]
        %v2616 = vld [vmem:[%s603 + $0x10] sm:$0xff]
        %v2617 = vld [vmem:[%s603 + $0x20] sm:$0xff]
        %v2618 = vld [vmem:[%s603 + $0x30] sm:$0xff]
        %v2619 = vld [vmem:[%s603 + $0x40] sm:$0xff]
        %v2620 = vld [vmem:[%s603 + $0x50] sm:$0xff]
        %v2621 = vld [vmem:[%s603 + $0x60] sm:$0xff]
        %v2622 = vld [vmem:[%s603 + $0x70] sm:$0xff]
        %2624 = vset.pattern.permute.xlu0 0
        %2625 = vperm.xlu0 %2624, %v2615
        %v2626 = vpop.permute.xlu0 %2625
        %2629 = vset.pattern.permute.xlu0 0
        %2630 = vperm.xlu0 %2629, %v2616
        %v2631 = vpop.permute.xlu0 %2630
        %2634 = vset.pattern.permute.xlu0 0
        %2635 = vperm.xlu0 %2634, %v2617
        %v2636 = vpop.permute.xlu0 %2635
        %2639 = vset.pattern.permute.xlu0 0
        %2640 = vperm.xlu0 %2639, %v2618
        %v2641 = vpop.permute.xlu0 %2640
        %2644 = vset.pattern.permute.xlu0 0
        %2645 = vperm.xlu0 %2644, %v2619
        %v2646 = vpop.permute.xlu0 %2645
        %2649 = vset.pattern.permute.xlu0 0
        %2650 = vperm.xlu0 %2649, %v2620
        %v2651 = vpop.permute.xlu0 %2650
        %2654 = vset.pattern.permute.xlu0 0
        %2655 = vperm.xlu0 %2654, %v2621
        %v2656 = vpop.permute.xlu0 %2655
        %2659 = vset.pattern.permute.xlu0 0
        %2660 = vperm.xlu0 %2659, %v2622
        %v2661 = vpop.permute.xlu0 %2660
        %v2663 = vmul.f32 %v2626, %v792
        %v2664 = vmul.f32 %v2631, %v792
        %v2665 = vmul.f32 %v2636, %v792
        %v2666 = vmul.f32 %v2641, %v792
        %v2667 = vmul.f32 %v2646, %v792
        %v2668 = vmul.f32 %v2651, %v792
        %v2669 = vmul.f32 %v2656, %v792
        %v2670 = vmul.f32 %v2661, %v792
        %v2671 = vadd.f32 %v2607, %v2663
        %v2672 = vadd.f32 %v2608, %v2664
        %v2673 = vadd.f32 %v2609, %v2665
        %v2674 = vadd.f32 %v2610, %v2666
        %v2675 = vadd.f32 %v2611, %v2667
        %v2676 = vadd.f32 %v2612, %v2668
        %v2677 = vadd.f32 %v2613, %v2669
        %v2678 = vadd.f32 %v2614, %v2670
        %v2679 = vld [vmem:[%s534 + $0x1] sm:$0xff]
        %v2680 = vld [vmem:[%s534 + $0x11] sm:$0xff]
        %v2681 = vld [vmem:[%s534 + $0x21] sm:$0xff]
        %v2682 = vld [vmem:[%s534 + $0x31] sm:$0xff]
        %v2683 = vld [vmem:[%s534 + $0x41] sm:$0xff]
        %v2684 = vld [vmem:[%s534 + $0x51] sm:$0xff]
        %v2685 = vld [vmem:[%s534 + $0x61] sm:$0xff]
        %v2686 = vld [vmem:[%s534 + $0x71] sm:$0xff]
        %2688 = vset.pattern.permute.xlu0 0
        %2689 = vperm.xlu0 %2688, %v2679
        %v2690 = vpop.permute.xlu0 %2689
        %2693 = vset.pattern.permute.xlu0 0
        %2694 = vperm.xlu0 %2693, %v2680
        %v2695 = vpop.permute.xlu0 %2694
        %2698 = vset.pattern.permute.xlu0 0
        %2699 = vperm.xlu0 %2698, %v2681
        %v2700 = vpop.permute.xlu0 %2699
        %2703 = vset.pattern.permute.xlu0 0
        %2704 = vperm.xlu0 %2703, %v2682
        %v2705 = vpop.permute.xlu0 %2704
        %2708 = vset.pattern.permute.xlu0 0
        %2709 = vperm.xlu0 %2708, %v2683
        %v2710 = vpop.permute.xlu0 %2709
        %2713 = vset.pattern.permute.xlu0 0
        %2714 = vperm.xlu0 %2713, %v2684
        %v2715 = vpop.permute.xlu0 %2714
        %2718 = vset.pattern.permute.xlu0 0
        %2719 = vperm.xlu0 %2718, %v2685
        %v2720 = vpop.permute.xlu0 %2719
        %2723 = vset.pattern.permute.xlu0 0
        %2724 = vperm.xlu0 %2723, %v2686
        %v2725 = vpop.permute.xlu0 %2724
        %v2727 = vmul.f32 %v2690, %v861
        %v2728 = vmul.f32 %v2695, %v861
        %v2729 = vmul.f32 %v2700, %v861
        %v2730 = vmul.f32 %v2705, %v861
        %v2731 = vmul.f32 %v2710, %v861
        %v2732 = vmul.f32 %v2715, %v861
        %v2733 = vmul.f32 %v2720, %v861
        %v2734 = vmul.f32 %v2725, %v861
        %v2735 = vadd.f32 %v2671, %v2727
        %v2736 = vadd.f32 %v2672, %v2728
        %v2737 = vadd.f32 %v2673, %v2729
        %v2738 = vadd.f32 %v2674, %v2730
        %v2739 = vadd.f32 %v2675, %v2731
        %v2740 = vadd.f32 %v2676, %v2732
        %v2741 = vadd.f32 %v2677, %v2733
        %v2742 = vadd.f32 %v2678, %v2734
        %v2743 = vld [vmem:[%s603 + $0x1] sm:$0xff]
        %v2744 = vld [vmem:[%s603 + $0x11] sm:$0xff]
        %v2745 = vld [vmem:[%s603 + $0x21] sm:$0xff]
        %v2746 = vld [vmem:[%s603 + $0x31] sm:$0xff]
        %v2747 = vld [vmem:[%s603 + $0x41] sm:$0xff]
        %v2748 = vld [vmem:[%s603 + $0x51] sm:$0xff]
        %v2749 = vld [vmem:[%s603 + $0x61] sm:$0xff]
        %v2750 = vld [vmem:[%s603 + $0x71] sm:$0xff]
        %2752 = vset.pattern.permute.xlu0 0
        %2753 = vperm.xlu0 %2752, %v2743
        %v2754 = vpop.permute.xlu0 %2753
        %2757 = vset.pattern.permute.xlu0 0
        %2758 = vperm.xlu0 %2757, %v2744
        %v2759 = vpop.permute.xlu0 %2758
        %2762 = vset.pattern.permute.xlu0 0
        %2763 = vperm.xlu0 %2762, %v2745
        %v2764 = vpop.permute.xlu0 %2763
        %2767 = vset.pattern.permute.xlu0 0
        %2768 = vperm.xlu0 %2767, %v2746
        %v2769 = vpop.permute.xlu0 %2768
        %2772 = vset.pattern.permute.xlu0 0
        %2773 = vperm.xlu0 %2772, %v2747
        %v2774 = vpop.permute.xlu0 %2773
        %2777 = vset.pattern.permute.xlu0 0
        %2778 = vperm.xlu0 %2777, %v2748
        %v2779 = vpop.permute.xlu0 %2778
        %2782 = vset.pattern.permute.xlu0 0
        %2783 = vperm.xlu0 %2782, %v2749
        %v2784 = vpop.permute.xlu0 %2783
        %2787 = vset.pattern.permute.xlu0 0
        %2788 = vperm.xlu0 %2787, %v2750
        %v2789 = vpop.permute.xlu0 %2788
        %v2791 = vmul.f32 %v2754, %v929
        %v2792 = vmul.f32 %v2759, %v929
        %v2793 = vmul.f32 %v2764, %v929
        %v2794 = vmul.f32 %v2769, %v929
        %v2795 = vmul.f32 %v2774, %v929
        %v2796 = vmul.f32 %v2779, %v929
        %v2797 = vmul.f32 %v2784, %v929
        %v2798 = vmul.f32 %v2789, %v929
        %v2799 = vadd.f32 %v2735, %v2791
        %v2800 = vadd.f32 %v2736, %v2792
        %v2801 = vadd.f32 %v2737, %v2793
        %v2802 = vadd.f32 %v2738, %v2794
        %v2803 = vadd.f32 %v2739, %v2795
        %v2804 = vadd.f32 %v2740, %v2796
        %v2805 = vadd.f32 %v2741, %v2797
        %v2806 = vadd.f32 %v2742, %v2798
        %v2807 = vadd.f32 %v2799, %v949
        %v2808 = vadd.f32 %v2800, %v949
        %v2809 = vadd.f32 %v2801, %v949
        %v2810 = vadd.f32 %v2802, %v949
        %v2811 = vadd.f32 %v2803, %v949
        %v2812 = vadd.f32 %v2804, %v949
        %v2813 = vadd.f32 %v2805, %v949
        %v2814 = vadd.f32 %v2806, %v949
        %vm2815 = vcmp.ge.f32.partialorder %v2807, 0.0
        %vm2816 = vcmp.ge.f32.partialorder %v2808, 0.0
        %vm2817 = vcmp.ge.f32.partialorder %v2809, 0.0
        %vm2818 = vcmp.ge.f32.partialorder %v2810, 0.0
        %vm2819 = vcmp.ge.f32.partialorder %v2811, 0.0
        %vm2820 = vcmp.ge.f32.partialorder %v2812, 0.0
        %vm2821 = vcmp.ge.f32.partialorder %v2813, 0.0
        %vm2822 = vcmp.ge.f32.partialorder %v2814, 0.0
        %v2823 = vmul.f32 %v2807, %v969
        %v2824 = vmul.f32 %v2808, %v969
        %v2825 = vmul.f32 %v2809, %v969
        %v2826 = vmul.f32 %v2810, %v969
        %v2827 = vmul.f32 %v2811, %v969
        %v2828 = vmul.f32 %v2812, %v969
        %v2829 = vmul.f32 %v2813, %v969
        %v2830 = vmul.f32 %v2814, %v969
        %v2831 = vsel %vm2815, %v2807, %v2823
        %v2832 = vsel %vm2816, %v2808, %v2824
        %v2833 = vsel %vm2817, %v2809, %v2825
        %v2834 = vsel %vm2818, %v2810, %v2826
        %v2835 = vsel %vm2819, %v2811, %v2827
        %v2836 = vsel %vm2820, %v2812, %v2828
        %v2837 = vsel %vm2821, %v2813, %v2829
        %v2838 = vsel %vm2822, %v2814, %v2830
        %s2839 = scalar_lea.vmem [#allocation2], 432
        %2840 = vst.msk [vmem:[%s2839] sm:$0xff] %vm254, %v2831
        %2841 = vst.msk [vmem:[%s2839 + $0x10] sm:$0xff] %vm254, %v2832
        %2842 = vst.msk [vmem:[%s2839 + $0x20] sm:$0xff] %vm254, %v2833
        %2843 = vst.msk [vmem:[%s2839 + $0x30] sm:$0xff] %vm254, %v2834
        %2844 = vst.msk [vmem:[%s2839 + $0x40] sm:$0xff] %vm254, %v2835
        %2845 = vst.msk [vmem:[%s2839 + $0x50] sm:$0xff] %vm254, %v2836
        %2846 = vst.msk [vmem:[%s2839 + $0x60] sm:$0xff] %vm254, %v2837
        %2847 = vst.msk [vmem:[%s2839 + $0x70] sm:$0xff] %vm254, %v2838
        %v2848 = vld [vmem:[#allocation2] sm:$0xff]
        %v2849 = vld [vmem:[#allocation2 + $0x10] sm:$0xff]
        %v2850 = vld [vmem:[#allocation2 + $0x20] sm:$0xff]
        %v2851 = vld [vmem:[#allocation2 + $0x30] sm:$0xff]
        %v2852 = vld [vmem:[#allocation2 + $0x40] sm:$0xff]
        %v2853 = vld [vmem:[#allocation2 + $0x50] sm:$0xff]
        %v2854 = vld [vmem:[#allocation2 + $0x60] sm:$0xff]
        %v2855 = vld [vmem:[#allocation2 + $0x70] sm:$0xff]
        %2856 = vst.msk [vmem:[#allocation4] sm:$0xff] %vm254, %v2848
        %2857 = vst.msk [vmem:[#allocation4 + $0x18] sm:$0xff] %vm254, %v2849
        %2858 = vst.msk [vmem:[#allocation4 + $0x30] sm:$0xff] %vm254, %v2850
        %2859 = vst.msk [vmem:[#allocation4 + $0x48] sm:$0xff] %vm254, %v2851
        %2860 = vst.msk [vmem:[#allocation4 + $0x60] sm:$0xff] %vm254, %v2852
        %2861 = vst.msk [vmem:[#allocation4 + $0x78] sm:$0xff] %vm254, %v2853
        %2862 = vst.msk [vmem:[#allocation4 + $0x90] sm:$0xff] %vm254, %v2854
        %2863 = vst.msk [vmem:[#allocation4 + $0xa8] sm:$0xff] %vm254, %v2855
        %s2864 = scalar_lea.vmem [#allocation2], 144
        %v2865 = vld [vmem:[%s2864] sm:$0xff]
        %v2866 = vld [vmem:[%s2864 + $0x10] sm:$0xff]
        %v2867 = vld [vmem:[%s2864 + $0x20] sm:$0xff]
        %v2868 = vld [vmem:[%s2864 + $0x30] sm:$0xff]
        %v2869 = vld [vmem:[%s2864 + $0x40] sm:$0xff]
        %v2870 = vld [vmem:[%s2864 + $0x50] sm:$0xff]
        %v2871 = vld [vmem:[%s2864 + $0x60] sm:$0xff]
        %v2872 = vld [vmem:[%s2864 + $0x70] sm:$0xff]
        %2881 = vrot.lane.b32.xlu0 %v2865, 32
        %v2882 = vpop.permute.xlu0 %2881
        %2883 = vrot.lane.b32.xlu0 %v2866, 32
        %v2884 = vpop.permute.xlu0 %2883
        %2885 = vrot.lane.b32.xlu0 %v2867, 32
        %v2886 = vpop.permute.xlu0 %2885
        %2887 = vrot.lane.b32.xlu0 %v2868, 32
        %v2888 = vpop.permute.xlu0 %2887
        %2889 = vrot.lane.b32.xlu0 %v2869, 32
        %v2890 = vpop.permute.xlu0 %2889
        %2891 = vrot.lane.b32.xlu0 %v2870, 32
        %v2892 = vpop.permute.xlu0 %2891
        %2893 = vrot.lane.b32.xlu0 %v2871, 32
        %v2894 = vpop.permute.xlu0 %2893
        %2895 = vrot.lane.b32.xlu0 %v2872, 32
        %v2896 = vpop.permute.xlu0 %2895
        %vm2905 = vcmask 523520
        %2906 = vst.msk [vmem:[#allocation4] sm:$0xff] %vm2905, %v2882
        %2907 = vst.msk [vmem:[#allocation4 + $0x18] sm:$0xff] %vm2905, %v2884
        %2908 = vst.msk [vmem:[#allocation4 + $0x30] sm:$0xff] %vm2905, %v2886
        %2909 = vst.msk [vmem:[#allocation4 + $0x48] sm:$0xff] %vm2905, %v2888
        %2910 = vst.msk [vmem:[#allocation4 + $0x60] sm:$0xff] %vm2905, %v2890
        %2911 = vst.msk [vmem:[#allocation4 + $0x78] sm:$0xff] %vm2905, %v2892
        %2912 = vst.msk [vmem:[#allocation4 + $0x90] sm:$0xff] %vm2905, %v2894
        %2913 = vst.msk [vmem:[#allocation4 + $0xa8] sm:$0xff] %vm2905, %v2896
        %v2914 = vld [vmem:[#allocation2 + $0x1] sm:$0xff]
        %v2915 = vld [vmem:[#allocation2 + $0x11] sm:$0xff]
        %v2916 = vld [vmem:[#allocation2 + $0x21] sm:$0xff]
        %v2917 = vld [vmem:[#allocation2 + $0x31] sm:$0xff]
        %v2918 = vld [vmem:[#allocation2 + $0x41] sm:$0xff]
        %v2919 = vld [vmem:[#allocation2 + $0x51] sm:$0xff]
        %v2920 = vld [vmem:[#allocation2 + $0x61] sm:$0xff]
        %v2921 = vld [vmem:[#allocation2 + $0x71] sm:$0xff]
        %2930 = vrot.lane.b32.xlu0 %v2914, 64
        %v2931 = vpop.permute.xlu0 %2930
        %2932 = vrot.lane.b32.xlu0 %v2915, 64
        %v2933 = vpop.permute.xlu0 %2932
        %2934 = vrot.lane.b32.xlu0 %v2916, 64
        %v2935 = vpop.permute.xlu0 %2934
        %2936 = vrot.lane.b32.xlu0 %v2917, 64
        %v2937 = vpop.permute.xlu0 %2936
        %2938 = vrot.lane.b32.xlu0 %v2918, 64
        %v2939 = vpop.permute.xlu0 %2938
        %2940 = vrot.lane.b32.xlu0 %v2919, 64
        %v2941 = vpop.permute.xlu0 %2940
        %2942 = vrot.lane.b32.xlu0 %v2920, 64
        %v2943 = vpop.permute.xlu0 %2942
        %2944 = vrot.lane.b32.xlu0 %v2921, 64
        %v2945 = vpop.permute.xlu0 %2944
        %vm2954 = vcmask 785920
        %2955 = vst.msk [vmem:[#allocation4] sm:$0xff] %vm2954, %v2931
        %2956 = vst.msk [vmem:[#allocation4 + $0x18] sm:$0xff] %vm2954, %v2933
        %2957 = vst.msk [vmem:[#allocation4 + $0x30] sm:$0xff] %vm2954, %v2935
        %2958 = vst.msk [vmem:[#allocation4 + $0x48] sm:$0xff] %vm2954, %v2937
        %2959 = vst.msk [vmem:[#allocation4 + $0x60] sm:$0xff] %vm2954, %v2939
        %2960 = vst.msk [vmem:[#allocation4 + $0x78] sm:$0xff] %vm2954, %v2941
        %2961 = vst.msk [vmem:[#allocation4 + $0x90] sm:$0xff] %vm2954, %v2943
        %2962 = vst.msk [vmem:[#allocation4 + $0xa8] sm:$0xff] %vm2954, %v2945
        %v2963 = vld [vmem:[%s2222] sm:$0xff]
        %v2964 = vld [vmem:[%s2222 + $0x10] sm:$0xff]
        %v2965 = vld [vmem:[%s2222 + $0x20] sm:$0xff]
        %v2966 = vld [vmem:[%s2222 + $0x30] sm:$0xff]
        %v2967 = vld [vmem:[%s2222 + $0x40] sm:$0xff]
        %v2968 = vld [vmem:[%s2222 + $0x50] sm:$0xff]
        %v2969 = vld [vmem:[%s2222 + $0x60] sm:$0xff]
        %v2970 = vld [vmem:[%s2222 + $0x70] sm:$0xff]
        %2979 = vrot.lane.b32.xlu0 %v2963, 96
        %v2980 = vpop.permute.xlu0 %2979
        %2981 = vrot.lane.b32.xlu0 %v2964, 96
        %v2982 = vpop.permute.xlu0 %2981
        %2983 = vrot.lane.b32.xlu0 %v2965, 96
        %v2984 = vpop.permute.xlu0 %2983
        %2985 = vrot.lane.b32.xlu0 %v2966, 96
        %v2986 = vpop.permute.xlu0 %2985
        %2987 = vrot.lane.b32.xlu0 %v2967, 96
        %v2988 = vpop.permute.xlu0 %2987
        %2989 = vrot.lane.b32.xlu0 %v2968, 96
        %v2990 = vpop.permute.xlu0 %2989
        %2991 = vrot.lane.b32.xlu0 %v2969, 96
        %v2992 = vpop.permute.xlu0 %2991
        %2993 = vrot.lane.b32.xlu0 %v2970, 96
        %v2994 = vpop.permute.xlu0 %2993
        %vm3003 = vcmask 1048320
        %3004 = vst.msk [vmem:[#allocation4] sm:$0xff] %vm3003, %v2980
        %3005 = vst.msk [vmem:[#allocation4 + $0x18] sm:$0xff] %vm3003, %v2982
        %3006 = vst.msk [vmem:[#allocation4 + $0x30] sm:$0xff] %vm3003, %v2984
        %3007 = vst.msk [vmem:[#allocation4 + $0x48] sm:$0xff] %vm3003, %v2986
        %3008 = vst.msk [vmem:[#allocation4 + $0x60] sm:$0xff] %vm3003, %v2988
        %3009 = vst.msk [vmem:[#allocation4 + $0x78] sm:$0xff] %vm3003, %v2990
        %3010 = vst.msk [vmem:[#allocation4 + $0x90] sm:$0xff] %vm3003, %v2992
        %3011 = vst.msk [vmem:[#allocation4 + $0xa8] sm:$0xff] %vm3003, %v2994
        %v3012 = vld [vmem:[%s2839] sm:$0xff]
        %v3013 = vld [vmem:[%s2839 + $0x10] sm:$0xff]
        %v3014 = vld [vmem:[%s2839 + $0x20] sm:$0xff]
        %v3015 = vld [vmem:[%s2839 + $0x30] sm:$0xff]
        %v3016 = vld [vmem:[%s2839 + $0x40] sm:$0xff]
        %v3017 = vld [vmem:[%s2839 + $0x50] sm:$0xff]
        %v3018 = vld [vmem:[%s2839 + $0x60] sm:$0xff]
        %v3019 = vld [vmem:[%s2839 + $0x70] sm:$0xff]
        %3020 = vst.msk [vmem:[#allocation4 + $0x8] sm:$0xff] %vm254, %v3012
        %3021 = vst.msk [vmem:[#allocation4 + $0x20] sm:$0xff] %vm254, %v3013
        %3022 = vst.msk [vmem:[#allocation4 + $0x38] sm:$0xff] %vm254, %v3014
        %3023 = vst.msk [vmem:[#allocation4 + $0x50] sm:$0xff] %vm254, %v3015
        %3024 = vst.msk [vmem:[#allocation4 + $0x68] sm:$0xff] %vm254, %v3016
        %3025 = vst.msk [vmem:[#allocation4 + $0x80] sm:$0xff] %vm254, %v3017
        %3026 = vst.msk [vmem:[#allocation4 + $0x98] sm:$0xff] %vm254, %v3018
        %3027 = vst.msk [vmem:[#allocation4 + $0xb0] sm:$0xff] %vm254, %v3019
        %v3028 = vld [vmem:[%s2222 + $0x1] sm:$0xff]
        %v3029 = vld [vmem:[%s2222 + $0x11] sm:$0xff]
        %v3030 = vld [vmem:[%s2222 + $0x21] sm:$0xff]
        %v3031 = vld [vmem:[%s2222 + $0x31] sm:$0xff]
        %v3032 = vld [vmem:[%s2222 + $0x41] sm:$0xff]
        %v3033 = vld [vmem:[%s2222 + $0x51] sm:$0xff]
        %v3034 = vld [vmem:[%s2222 + $0x61] sm:$0xff]
        %v3035 = vld [vmem:[%s2222 + $0x71] sm:$0xff]
        %3044 = vrot.lane.b32.xlu0 %v3028, 32
        %v3045 = vpop.permute.xlu0 %3044
        %3046 = vrot.lane.b32.xlu0 %v3029, 32
        %v3047 = vpop.permute.xlu0 %3046
        %3048 = vrot.lane.b32.xlu0 %v3030, 32
        %v3049 = vpop.permute.xlu0 %3048
        %3050 = vrot.lane.b32.xlu0 %v3031, 32
        %v3051 = vpop.permute.xlu0 %3050
        %3052 = vrot.lane.b32.xlu0 %v3032, 32
        %v3053 = vpop.permute.xlu0 %3052
        %3054 = vrot.lane.b32.xlu0 %v3033, 32
        %v3055 = vpop.permute.xlu0 %3054
        %3056 = vrot.lane.b32.xlu0 %v3034, 32
        %v3057 = vpop.permute.xlu0 %3056
        %3058 = vrot.lane.b32.xlu0 %v3035, 32
        %v3059 = vpop.permute.xlu0 %3058
        %3068 = vst.msk [vmem:[#allocation4 + $0x8] sm:$0xff] %vm2905, %v3045
        %3069 = vst.msk [vmem:[#allocation4 + $0x20] sm:$0xff] %vm2905, %v3047
        %3070 = vst.msk [vmem:[#allocation4 + $0x38] sm:$0xff] %vm2905, %v3049
        %3071 = vst.msk [vmem:[#allocation4 + $0x50] sm:$0xff] %vm2905, %v3051
        %3072 = vst.msk [vmem:[#allocation4 + $0x68] sm:$0xff] %vm2905, %v3053
        %3073 = vst.msk [vmem:[#allocation4 + $0x80] sm:$0xff] %vm2905, %v3055
        %3074 = vst.msk [vmem:[#allocation4 + $0x98] sm:$0xff] %vm2905, %v3057
        %3075 = vst.msk [vmem:[#allocation4 + $0xb0] sm:$0xff] %vm2905, %v3059
        %v3076 = vld [vmem:[%s986] sm:$0xff]
        %v3077 = vld [vmem:[%s986 + $0x10] sm:$0xff]
        %v3078 = vld [vmem:[%s986 + $0x20] sm:$0xff]
        %v3079 = vld [vmem:[%s986 + $0x30] sm:$0xff]
        %v3080 = vld [vmem:[%s986 + $0x40] sm:$0xff]
        %v3081 = vld [vmem:[%s986 + $0x50] sm:$0xff]
        %v3082 = vld [vmem:[%s986 + $0x60] sm:$0xff]
        %v3083 = vld [vmem:[%s986 + $0x70] sm:$0xff]
        %3092 = vrot.lane.b32.xlu0 %v3076, 64
        %v3093 = vpop.permute.xlu0 %3092
        %3094 = vrot.lane.b32.xlu0 %v3077, 64
        %v3095 = vpop.permute.xlu0 %3094
        %3096 = vrot.lane.b32.xlu0 %v3078, 64
        %v3097 = vpop.permute.xlu0 %3096
        %3098 = vrot.lane.b32.xlu0 %v3079, 64
        %v3099 = vpop.permute.xlu0 %3098
        %3100 = vrot.lane.b32.xlu0 %v3080, 64
        %v3101 = vpop.permute.xlu0 %3100
        %3102 = vrot.lane.b32.xlu0 %v3081, 64
        %v3103 = vpop.permute.xlu0 %3102
        %3104 = vrot.lane.b32.xlu0 %v3082, 64
        %v3105 = vpop.permute.xlu0 %3104
        %3106 = vrot.lane.b32.xlu0 %v3083, 64
        %v3107 = vpop.permute.xlu0 %3106
        %3116 = vst.msk [vmem:[#allocation4 + $0x8] sm:$0xff] %vm2954, %v3093
        %3117 = vst.msk [vmem:[#allocation4 + $0x20] sm:$0xff] %vm2954, %v3095
        %3118 = vst.msk [vmem:[#allocation4 + $0x38] sm:$0xff] %vm2954, %v3097
        %3119 = vst.msk [vmem:[#allocation4 + $0x50] sm:$0xff] %vm2954, %v3099
        %3120 = vst.msk [vmem:[#allocation4 + $0x68] sm:$0xff] %vm2954, %v3101
        %3121 = vst.msk [vmem:[#allocation4 + $0x80] sm:$0xff] %vm2954, %v3103
        %3122 = vst.msk [vmem:[#allocation4 + $0x98] sm:$0xff] %vm2954, %v3105
        %3123 = vst.msk [vmem:[#allocation4 + $0xb0] sm:$0xff] %vm2954, %v3107
        %v3124 = vld [vmem:[%s1603] sm:$0xff]
        %v3125 = vld [vmem:[%s1603 + $0x10] sm:$0xff]
        %v3126 = vld [vmem:[%s1603 + $0x20] sm:$0xff]
        %v3127 = vld [vmem:[%s1603 + $0x30] sm:$0xff]
        %v3128 = vld [vmem:[%s1603 + $0x40] sm:$0xff]
        %v3129 = vld [vmem:[%s1603 + $0x50] sm:$0xff]
        %v3130 = vld [vmem:[%s1603 + $0x60] sm:$0xff]
        %v3131 = vld [vmem:[%s1603 + $0x70] sm:$0xff]
        %3140 = vrot.lane.b32.xlu0 %v3124, 96
        %v3141 = vpop.permute.xlu0 %3140
        %3142 = vrot.lane.b32.xlu0 %v3125, 96
        %v3143 = vpop.permute.xlu0 %3142
        %3144 = vrot.lane.b32.xlu0 %v3126, 96
        %v3145 = vpop.permute.xlu0 %3144
        %3146 = vrot.lane.b32.xlu0 %v3127, 96
        %v3147 = vpop.permute.xlu0 %3146
        %3148 = vrot.lane.b32.xlu0 %v3128, 96
        %v3149 = vpop.permute.xlu0 %3148
        %3150 = vrot.lane.b32.xlu0 %v3129, 96
        %v3151 = vpop.permute.xlu0 %3150
        %3152 = vrot.lane.b32.xlu0 %v3130, 96
        %v3153 = vpop.permute.xlu0 %3152
        %3154 = vrot.lane.b32.xlu0 %v3131, 96
        %v3155 = vpop.permute.xlu0 %3154
        %3164 = vst.msk [vmem:[#allocation4 + $0x8] sm:$0xff] %vm3003, %v3141
        %3165 = vst.msk [vmem:[#allocation4 + $0x20] sm:$0xff] %vm3003, %v3143
        %3166 = vst.msk [vmem:[#allocation4 + $0x38] sm:$0xff] %vm3003, %v3145
        %3167 = vst.msk [vmem:[#allocation4 + $0x50] sm:$0xff] %vm3003, %v3147
        %3168 = vst.msk [vmem:[#allocation4 + $0x68] sm:$0xff] %vm3003, %v3149
        %3169 = vst.msk [vmem:[#allocation4 + $0x80] sm:$0xff] %vm3003, %v3151
        %3170 = vst.msk [vmem:[#allocation4 + $0x98] sm:$0xff] %vm3003, %v3153
        %3171 = vst.msk [vmem:[#allocation4 + $0xb0] sm:$0xff] %vm3003, %v3155
        %v3172 = vld [vmem:[%s986 + $0x1] sm:$0xff]
        %v3173 = vld [vmem:[%s986 + $0x11] sm:$0xff]
        %v3174 = vld [vmem:[%s986 + $0x21] sm:$0xff]
        %v3175 = vld [vmem:[%s986 + $0x31] sm:$0xff]
        %v3176 = vld [vmem:[%s986 + $0x41] sm:$0xff]
        %v3177 = vld [vmem:[%s986 + $0x51] sm:$0xff]
        %v3178 = vld [vmem:[%s986 + $0x61] sm:$0xff]
        %v3179 = vld [vmem:[%s986 + $0x71] sm:$0xff]
        %3180 = vst.msk [vmem:[#allocation4 + $0x10] sm:$0xff] %vm254, %v3172
        %3181 = vst.msk [vmem:[#allocation4 + $0x28] sm:$0xff] %vm254, %v3173
        %3182 = vst.msk [vmem:[#allocation4 + $0x40] sm:$0xff] %vm254, %v3174
        %3183 = vst.msk [vmem:[#allocation4 + $0x58] sm:$0xff] %vm254, %v3175
        %3184 = vst.msk [vmem:[#allocation4 + $0x70] sm:$0xff] %vm254, %v3176
        %3185 = vst.msk [vmem:[#allocation4 + $0x88] sm:$0xff] %vm254, %v3177
        %3186 = vst.msk [vmem:[#allocation4 + $0xa0] sm:$0xff] %vm254, %v3178
        %3187 = vst.msk [vmem:[#allocation4 + $0xb8] sm:$0xff] %vm254, %v3179
        %v3188 = vld [vmem:[#allocation4] sm:$0xff]
        %v3189 = vld [vmem:[#allocation4 + $0x8] sm:$0xff]
        %v3190 = vld [vmem:[#allocation4 + $0x10] sm:$0xff]
        %v3191 = vld [vmem:[#allocation4 + $0x18] sm:$0xff]
        %v3192 = vld [vmem:[#allocation4 + $0x20] sm:$0xff]
        %v3193 = vld [vmem:[#allocation4 + $0x28] sm:$0xff]
        %v3194 = vld [vmem:[#allocation4 + $0x30] sm:$0xff]
        %v3195 = vld [vmem:[#allocation4 + $0x38] sm:$0xff]
        %v3196 = vld [vmem:[#allocation4 + $0x40] sm:$0xff]
        %v3197 = vld [vmem:[#allocation4 + $0x48] sm:$0xff]
        %v3198 = vld [vmem:[#allocation4 + $0x50] sm:$0xff]
        %v3199 = vld [vmem:[#allocation4 + $0x58] sm:$0xff]
        %v3200 = vld [vmem:[#allocation4 + $0x60] sm:$0xff]
        %v3201 = vld [vmem:[#allocation4 + $0x68] sm:$0xff]
        %v3202 = vld [vmem:[#allocation4 + $0x70] sm:$0xff]
        %v3203 = vld [vmem:[#allocation4 + $0x78] sm:$0xff]
        %v3204 = vld [vmem:[#allocation4 + $0x80] sm:$0xff]
        %v3205 = vld [vmem:[#allocation4 + $0x88] sm:$0xff]
        %v3206 = vld [vmem:[#allocation4 + $0x90] sm:$0xff]
        %v3207 = vld [vmem:[#allocation4 + $0x98] sm:$0xff]
        %v3208 = vld [vmem:[#allocation4 + $0xa0] sm:$0xff]
        %v3209 = vld [vmem:[#allocation4 + $0xa8] sm:$0xff]
        %v3210 = vld [vmem:[#allocation4 + $0xb0] sm:$0xff]
        %v3211 = vld [vmem:[#allocation4 + $0xb8] sm:$0xff]
        %s3212 = scalar_lea.vmem %s2, 576
        %v3213 = vld [vmem:[%s3212] sm:$0xff]
        %v3214 = vld [vmem:[%s3212 + $0x8] sm:$0xff]
        %v3215 = vld [vmem:[%s3212 + $0x10] sm:$0xff]
        %v3216 = vld [vmem:[%s3212 + $0x18] sm:$0xff]
        %v3217 = vld [vmem:[%s3212 + $0x20] sm:$0xff]
        %v3218 = vld [vmem:[%s3212 + $0x28] sm:$0xff]
        %v3219 = vld [vmem:[%s3212 + $0x30] sm:$0xff]
        %v3220 = vld [vmem:[%s3212 + $0x38] sm:$0xff]
        %v3221 = vld [vmem:[%s3212 + $0x40] sm:$0xff]
        %v3222 = vld [vmem:[%s3212 + $0x48] sm:$0xff]
        %v3223 = vld [vmem:[%s3212 + $0x50] sm:$0xff]
        %v3224 = vld [vmem:[%s3212 + $0x58] sm:$0xff]
        %v3225 = vld [vmem:[%s3212 + $0x60] sm:$0xff]
        %v3226 = vld [vmem:[%s3212 + $0x68] sm:$0xff]
        %v3227 = vld [vmem:[%s3212 + $0x70] sm:$0xff]
        %v3228 = vld [vmem:[%s3212 + $0x78] sm:$0xff]
        %v3229 = vld [vmem:[%s3212 + $0x80] sm:$0xff]
        %v3230 = vld [vmem:[%s3212 + $0x88] sm:$0xff]
        %v3231 = vld [vmem:[%s3212 + $0x90] sm:$0xff]
        %v3232 = vld [vmem:[%s3212 + $0x98] sm:$0xff]
        %v3233 = vld [vmem:[%s3212 + $0xa0] sm:$0xff]
        %v3234 = vld [vmem:[%s3212 + $0xa8] sm:$0xff]
        %v3235 = vld [vmem:[%s3212 + $0xb0] sm:$0xff]
        %v3236 = vld [vmem:[%s3212 + $0xb8] sm:$0xff]
        %v3237 = vld [vmem:[%s3212 + $0xc0] sm:$0xff]
        %v3238 = vld [vmem:[%s3212 + $0xc8] sm:$0xff]
        %v3239 = vld [vmem:[%s3212 + $0xd0] sm:$0xff]
        %v3240 = vld [vmem:[%s3212 + $0xd8] sm:$0xff]
        %v3241 = vld [vmem:[%s3212 + $0xe0] sm:$0xff]
        %v3242 = vld [vmem:[%s3212 + $0xe8] sm:$0xff]
        %v3243 = vld [vmem:[%s3212 + $0xf0] sm:$0xff]
        %v3244 = vld [vmem:[%s3212 + $0xf8] sm:$0xff]
        %v3245 = vld [vmem:[%s3212 + $0x100] sm:$0xff]
        %v3246 = vld [vmem:[%s3212 + $0x108] sm:$0xff]
        %v3247 = vld [vmem:[%s3212 + $0x110] sm:$0xff]
        %v3248 = vld [vmem:[%s3212 + $0x118] sm:$0xff]
        %v3250 = vsel %vm254, %v3190, 0
        %v3253 = vsel %vm254, %v3193, 0
        %v3256 = vsel %vm254, %v3196, 0
        %v3259 = vsel %vm254, %v3199, 0
        %v3262 = vsel %vm254, %v3202, 0
        %v3265 = vsel %vm254, %v3205, 0
        %v3268 = vsel %vm254, %v3208, 0
        %v3271 = vsel %vm254, %v3211, 0
        %3273 = vmatprep.subr.mxu0 0.0
        %3274 = vmatpush1.msra.mxu0 %v3213
        %3275 = vmatprep.subr.mxu0 0.0
        %3276 = vmatpush1.msra.mxu0 %v3214
        %3277 = vmatprep.subr.mxu0 0.0
        %3278 = vmatpush1.msra.mxu0 %v3215
        %3279 = vmatprep.subr.mxu0 0.0
        %3280 = vmatpush1.msra.mxu0 %v3216
        %3281 = vmatprep.subr.mxu0 0.0
        %3282 = vmatpush1.msra.mxu0 %v3217
        %3283 = vmatprep.subr.mxu0 0.0
        %3284 = vmatpush1.msra.mxu0 %v3218
        %3285 = vmatprep.subr.mxu0 0.0
        %3286 = vmatpush1.msra.mxu0 %v3219
        %3287 = vmatprep.subr.mxu0 0.0
        %3288 = vmatpush1.msra.mxu0 %v3220
        %3289 = vmatprep.subr.mxu0 0.0
        %3290 = vmatpush1.msra.mxu0 %v3221
        %3291 = vmatprep.subr.mxu0 0.0
        %3292 = vmatpush1.msra.mxu0 %v3222
        %3293 = vmatprep.subr.mxu0 0.0
        %3294 = vmatpush1.msra.mxu0 %v3223
        %3295 = vmatprep.subr.mxu0 0.0
        %3296 = vmatpush1.msra.mxu0 %v3224
        %3297 = vmatprep.subr.mxu0 0.0
        %3298 = vmatpush1.msra.mxu0 %v3225
        %3299 = vmatprep.subr.mxu0 0.0
        %3300 = vmatpush1.msra.mxu0 %v3226
        %3301 = vmatprep.subr.mxu0 0.0
        %3302 = vmatpush1.msra.mxu0 %v3227
        %3303 = vmatprep.subr.mxu0 0.0
        %3304 = vmatpush1.msra.mxu0 %v3228
        %3305 = vmatprep.subr.mxu0 0.0
        %3306 = vmatpush1.msra.mxu0 %v3229
        %3307 = vmatprep.subr.mxu0 0.0
        %3308 = vmatpush1.msra.mxu0 %v3230
        %3309 = vmatprep.subr.mxu0 0.0
        %3310 = vmatpush1.msra.mxu0 %v3231
        %3311 = vmatprep.subr.mxu0 0.0
        %3312 = vmatpush1.msra.mxu0 %v3232
        %3313 = vmatprep.subr.mxu0 0.0
        %3314 = vmatpush1.msra.mxu0 %v3233
        %3315 = vmatprep.subr.mxu0 0.0
        %3316 = vmatpush1.msra.mxu0 %v3234
        %3317 = vmatprep.subr.mxu0 0.0
        %3318 = vmatpush1.msra.mxu0 %v3235
        %3319 = vmatprep.subr.mxu0 0.0
        %3320 = vmatpush1.msra.mxu0 %v3236
        %3321 = vmatprep.subr.mxu0 0.0
        %3322 = vmatpush1.msra.mxu0 %v3237
        %3323 = vmatprep.subr.mxu0 0.0
        %3324 = vmatpush1.msra.mxu0 %v3238
        %3325 = vmatprep.subr.mxu0 0.0
        %3326 = vmatpush1.msra.mxu0 %v3239
        %3327 = vmatprep.subr.mxu0 0.0
        %3328 = vmatpush1.msra.mxu0 %v3240
        %3329 = vmatprep.subr.mxu0 0.0
        %3330 = vmatpush1.msra.mxu0 %v3241
        %3331 = vmatprep.subr.mxu0 0.0
        %3332 = vmatpush1.msra.mxu0 %v3242
        %3333 = vmatprep.subr.mxu0 0.0
        %3334 = vmatpush1.msra.mxu0 %v3243
        %3335 = vmatprep.subr.mxu0 0.0
        %3336 = vmatpush1.msra.mxu0 %v3244
        %3337 = vmatprep.mubr.f32.mxu0 %v3189
        %3338 = vmatmul.mubr.f32.gmra.mrb[0].mxu0 %v3188
        %v3339 = vpop.f32.mrb[0].mxu0
        %v3340 = vadd.f32 0.0, %v3339
        %v3341 = vpop.f32.mrb[0].mxu0
        %3342 = vmatprep.mubr.f32.mxu0 %v3192
        %3343 = vmatmul.mubr.f32.gmra.mrb[0].mxu0 %v3191
        %v3344 = vpop.f32.mrb[0].mxu0
        %v3345 = vadd.f32 0.0, %v3344
        %v3346 = vpop.f32.mrb[0].mxu0
        %3347 = vmatprep.mubr.f32.mxu0 %v3195
        %3348 = vmatmul.mubr.f32.gmra.mrb[0].mxu0 %v3194
        %v3349 = vpop.f32.mrb[0].mxu0
        %v3350 = vadd.f32 0.0, %v3349
        %v3351 = vpop.f32.mrb[0].mxu0
        %3352 = vmatprep.mubr.f32.mxu0 %v3198
        %3353 = vmatmul.mubr.f32.gmra.mrb[0].mxu0 %v3197
        %v3354 = vpop.f32.mrb[0].mxu0
        %v3355 = vadd.f32 0.0, %v3354
        %v3356 = vpop.f32.mrb[0].mxu0
        %3357 = vmatprep.mubr.f32.mxu0 %v3201
        %3358 = vmatmul.mubr.f32.gmra.mrb[0].mxu0 %v3200
        %v3359 = vpop.f32.mrb[0].mxu0
        %v3360 = vadd.f32 0.0, %v3359
        %v3361 = vpop.f32.mrb[0].mxu0
        %3362 = vmatprep.mubr.f32.mxu0 %v3204
        %3363 = vmatmul.mubr.f32.gmra.mrb[0].mxu0 %v3203
        %v3364 = vpop.f32.mrb[0].mxu0
        %v3365 = vadd.f32 0.0, %v3364
        %v3366 = vpop.f32.mrb[0].mxu0
        %3367 = vmatprep.mubr.f32.mxu0 %v3207
        %3368 = vmatmul.mubr.f32.gmra.mrb[0].mxu0 %v3206
        %v3369 = vpop.f32.mrb[0].mxu0
        %v3370 = vadd.f32 0.0, %v3369
        %v3371 = vpop.f32.mrb[0].mxu0
        %3372 = vmatprep.mubr.f32.mxu0 %v3210
        %3373 = vmatmul.mubr.f32.gmra.mrb[0].mxu0 %v3209
        %v3374 = vpop.f32.mrb[0].mxu0
        %v3375 = vadd.f32 0.0, %v3374
        %v3376 = vpop.f32.mrb[0].mxu0
        %3377 = vdwg.mxu0
        %3378 = vmatprep.subr.mxu0 0.0
        %3379 = vmatpush1.msra.mxu0 %v3245
        %3380 = vmatprep.subr.mxu0 0.0
        %3381 = vmatpush1.msra.mxu0 %v3246
        %3382 = vmatprep.subr.mxu0 0.0
        %3383 = vmatpush1.msra.mxu0 %v3247
        %3384 = vmatprep.subr.mxu0 0.0
        %3385 = vmatpush1.msra.mxu0 %v3248
        %3386 = vmatprep.subr.mxu0 0.0
        %3387 = vmatpush1.msra.mxu0 0.0
        %3388 = vmatprep.subr.mxu0 0.0
        %3389 = vmatpush1.msra.mxu0 0.0
        %3390 = vmatprep.subr.mxu0 0.0
        %3391 = vmatpush1.msra.mxu0 0.0
        %3392 = vmatprep.subr.mxu0 0.0
        %3393 = vmatpush1.msra.mxu0 0.0
        %3394 = vmatprep.subr.mxu0 0.0
        %3395 = vmatpush1.msra.mxu0 0.0
        %3396 = vmatprep.subr.mxu0 0.0
        %3397 = vmatpush1.msra.mxu0 0.0
        %3398 = vmatprep.subr.mxu0 0.0
        %3399 = vmatpush1.msra.mxu0 0.0
        %3400 = vmatprep.subr.mxu0 0.0
        %3401 = vmatpush1.msra.mxu0 0.0
        %3402 = vmatprep.subr.mxu0 0.0
        %3403 = vmatpush1.msra.mxu0 0.0
        %3404 = vmatprep.subr.mxu0 0.0
        %3405 = vmatpush1.msra.mxu0 0.0
        %3406 = vmatprep.subr.mxu0 0.0
        %3407 = vmatpush1.msra.mxu0 0.0
        %3408 = vmatprep.subr.mxu0 0.0
        %3409 = vmatpush1.msra.mxu0 0.0
        %3410 = vmatprep.subr.mxu0 0.0
        %3411 = vmatpush1.msra.mxu0 0.0
        %3412 = vmatprep.subr.mxu0 0.0
        %3413 = vmatpush1.msra.mxu0 0.0
        %3414 = vmatprep.subr.mxu0 0.0
        %3415 = vmatpush1.msra.mxu0 0.0
        %3416 = vmatprep.subr.mxu0 0.0
        %3417 = vmatpush1.msra.mxu0 0.0
        %3418 = vmatprep.subr.mxu0 0.0
        %3419 = vmatpush1.msra.mxu0 0.0
        %3420 = vmatprep.subr.mxu0 0.0
        %3421 = vmatpush1.msra.mxu0 0.0
        %3422 = vmatprep.subr.mxu0 0.0
        %3423 = vmatpush1.msra.mxu0 0.0
        %3424 = vmatprep.subr.mxu0 0.0
        %3425 = vmatpush1.msra.mxu0 0.0
        %3426 = vmatprep.subr.mxu0 0.0
        %3427 = vmatpush1.msra.mxu0 0.0
        %3428 = vmatprep.subr.mxu0 0.0
        %3429 = vmatpush1.msra.mxu0 0.0
        %3430 = vmatprep.subr.mxu0 0.0
        %3431 = vmatpush1.msra.mxu0 0.0
        %3432 = vmatprep.subr.mxu0 0.0
        %3433 = vmatpush1.msra.mxu0 0.0
        %3434 = vmatprep.subr.mxu0 0.0
        %3435 = vmatpush1.msra.mxu0 0.0
        %3436 = vmatprep.subr.mxu0 0.0
        %3437 = vmatpush1.msra.mxu0 0.0
        %3438 = vmatprep.subr.mxu0 0.0
        %3439 = vmatpush1.msra.mxu0 0.0
        %3440 = vmatprep.subr.mxu0 0.0
        %3441 = vmatpush1.msra.mxu0 0.0
        %3442 = vmatprep.mubr.f32.mxu0 0.0
        %3443 = vmatmul.mubr.f32.gmra.mrb[0].mxu0 %v3250
        %v3444 = vpop.f32.mrb[0].mxu0
        %v3445 = vadd.f32 %v3340, %v3444
        %v3446 = vpop.f32.mrb[0].mxu0
        %3447 = vmatprep.mubr.f32.mxu0 0.0
        %3448 = vmatmul.mubr.f32.gmra.mrb[0].mxu0 %v3253
        %v3449 = vpop.f32.mrb[0].mxu0
        %v3450 = vadd.f32 %v3345, %v3449
        %v3451 = vpop.f32.mrb[0].mxu0
        %3452 = vmatprep.mubr.f32.mxu0 0.0
        %3453 = vmatmul.mubr.f32.gmra.mrb[0].mxu0 %v3256
        %v3454 = vpop.f32.mrb[0].mxu0
        %v3455 = vadd.f32 %v3350, %v3454
        %v3456 = vpop.f32.mrb[0].mxu0
        %3457 = vmatprep.mubr.f32.mxu0 0.0
        %3458 = vmatmul.mubr.f32.gmra.mrb[0].mxu0 %v3259
        %v3459 = vpop.f32.mrb[0].mxu0
        %v3460 = vadd.f32 %v3355, %v3459
        %v3461 = vpop.f32.mrb[0].mxu0
        %3462 = vmatprep.mubr.f32.mxu0 0.0
        %3463 = vmatmul.mubr.f32.gmra.mrb[0].mxu0 %v3262
        %v3464 = vpop.f32.mrb[0].mxu0
        %v3465 = vadd.f32 %v3360, %v3464
        %v3466 = vpop.f32.mrb[0].mxu0
        %3467 = vmatprep.mubr.f32.mxu0 0.0
        %3468 = vmatmul.mubr.f32.gmra.mrb[0].mxu0 %v3265
        %v3469 = vpop.f32.mrb[0].mxu0
        %v3470 = vadd.f32 %v3365, %v3469
        %v3471 = vpop.f32.mrb[0].mxu0
        %3472 = vmatprep.mubr.f32.mxu0 0.0
        %3473 = vmatmul.mubr.f32.gmra.mrb[0].mxu0 %v3268
        %v3474 = vpop.f32.mrb[0].mxu0
        %v3475 = vadd.f32 %v3370, %v3474
        %v3476 = vpop.f32.mrb[0].mxu0
        %3477 = vmatprep.mubr.f32.mxu0 0.0
        %3478 = vmatmul.mubr.f32.gmra.mrb[0].mxu0 %v3271
        %v3479 = vpop.f32.mrb[0].mxu0
        %v3480 = vadd.f32 %v3375, %v3479
        %v3481 = vpop.f32.mrb[0].mxu0
        %3482 = vdwg.mxu0
        %s3483 = scalar_lea.vmem %s3, 64
        %v3484 = vld [vmem:[%s3483] sm:$0xff]
        %v3485 = vld [vmem:[%s3483 + $0x8] sm:$0xff]
        %v3486 = vld [vmem:[%s3483 + $0x10] sm:$0xff]
        %v3487 = vld [vmem:[%s3483 + $0x18] sm:$0xff]
        %v3488 = vlaneseq
        %v3489 = vshrl.u32 %v3488, 7
        %v3490 = vsub.s32 3, %v3489
        %v3491 = vrot.slane %v252, %v3490
        %v3493 = vsel %vm254, %v3445, 0
        %v3496 = vsel %vm254, %v3450, 0
        %v3499 = vsel %vm254, %v3455, 0
        %v3502 = vsel %vm254, %v3460, 0
        %v3505 = vsel %vm254, %v3465, 0
        %v3508 = vsel %vm254, %v3470, 0
        %v3511 = vsel %vm254, %v3475, 0
        %v3514 = vsel %vm254, %v3480, 0
        %3516 = vmatprep.subr.mxu0 0.0
        %3517 = vmatpush1.msra.mxu0 %v3484
        %3518 = vmatprep.subr.mxu0 0.0
        %3519 = vmatpush1.msra.mxu0 %v3485
        %3520 = vmatprep.subr.mxu0 0.0
        %3521 = vmatpush1.msra.mxu0 %v3486
        %3522 = vmatprep.subr.mxu0 0.0
        %3523 = vmatpush1.msra.mxu0 %v3487
        %3524 = vmatprep.subr.mxu0 0.0
        %3525 = vmatpush1.msra.mxu0 0.0
        %3526 = vmatprep.subr.mxu0 0.0
        %3527 = vmatpush1.msra.mxu0 0.0
        %3528 = vmatprep.subr.mxu0 0.0
        %3529 = vmatpush1.msra.mxu0 0.0
        %3530 = vmatprep.subr.mxu0 0.0
        %3531 = vmatpush1.msra.mxu0 0.0
        %3532 = vmatprep.subr.mxu0 0.0
        %3533 = vmatpush1.msra.mxu0 0.0
        %3534 = vmatprep.subr.mxu0 0.0
        %3535 = vmatpush1.msra.mxu0 0.0
        %3536 = vmatprep.subr.mxu0 0.0
        %3537 = vmatpush1.msra.mxu0 0.0
        %3538 = vmatprep.subr.mxu0 0.0
        %3539 = vmatpush1.msra.mxu0 0.0
        %3540 = vmatprep.subr.mxu0 0.0
        %3541 = vmatpush1.msra.mxu0 0.0
        %3542 = vmatprep.subr.mxu0 0.0
        %3543 = vmatpush1.msra.mxu0 0.0
        %3544 = vmatprep.subr.mxu0 0.0
        %3545 = vmatpush1.msra.mxu0 0.0
        %3546 = vmatprep.subr.mxu0 0.0
        %3547 = vmatpush1.msra.mxu0 0.0
        %3548 = vmatprep.subr.mxu0 0.0
        %3549 = vmatpush1.msra.mxu0 0.0
        %3550 = vmatprep.subr.mxu0 0.0
        %3551 = vmatpush1.msra.mxu0 0.0
        %3552 = vmatprep.subr.mxu0 0.0
        %3553 = vmatpush1.msra.mxu0 0.0
        %3554 = vmatprep.subr.mxu0 0.0
        %3555 = vmatpush1.msra.mxu0 0.0
        %3556 = vmatprep.subr.mxu0 0.0
        %3557 = vmatpush1.msra.mxu0 0.0
        %3558 = vmatprep.subr.mxu0 0.0
        %3559 = vmatpush1.msra.mxu0 0.0
        %3560 = vmatprep.subr.mxu0 0.0
        %3561 = vmatpush1.msra.mxu0 0.0
        %3562 = vmatprep.subr.mxu0 0.0
        %3563 = vmatpush1.msra.mxu0 0.0
        %3564 = vmatprep.subr.mxu0 0.0
        %3565 = vmatpush1.msra.mxu0 0.0
        %3566 = vmatprep.subr.mxu0 0.0
        %3567 = vmatpush1.msra.mxu0 0.0
        %3568 = vmatprep.subr.mxu0 0.0
        %3569 = vmatpush1.msra.mxu0 0.0
        %3570 = vmatprep.subr.mxu0 0.0
        %3571 = vmatpush1.msra.mxu0 0.0
        %3572 = vmatprep.subr.mxu0 0.0
        %3573 = vmatpush1.msra.mxu0 0.0
        %3574 = vmatprep.subr.mxu0 0.0
        %3575 = vmatpush1.msra.mxu0 0.0
        %3576 = vmatprep.subr.mxu0 0.0
        %3577 = vmatpush1.msra.mxu0 0.0
        %3578 = vmatprep.subr.mxu0 0.0
        %3579 = vmatpush1.msra.mxu0 0.0
        %3580 = vmatprep.mubr.f32.mxu0 0.0
        %3581 = vmatmul.mubr.f32.gmra.mrb[0].mxu0 %v3493
        %v3582 = vpop.f32.mrb[0].mxu0
        %v3583 = vadd.f32 %v3491, %v3582
        %v3584 = vpop.f32.mrb[0].mxu0
        %3585 = vmatprep.mubr.f32.mxu0 0.0
        %3586 = vmatmul.mubr.f32.gmra.mrb[0].mxu0 %v3496
        %v3587 = vpop.f32.mrb[0].mxu0
        %v3588 = vadd.f32 %v3491, %v3587
        %v3589 = vpop.f32.mrb[0].mxu0
        %3590 = vmatprep.mubr.f32.mxu0 0.0
        %3591 = vmatmul.mubr.f32.gmra.mrb[0].mxu0 %v3499
        %v3592 = vpop.f32.mrb[0].mxu0
        %v3593 = vadd.f32 %v3491, %v3592
        %v3594 = vpop.f32.mrb[0].mxu0
        %3595 = vmatprep.mubr.f32.mxu0 0.0
        %3596 = vmatmul.mubr.f32.gmra.mrb[0].mxu0 %v3502
        %v3597 = vpop.f32.mrb[0].mxu0
        %v3598 = vadd.f32 %v3491, %v3597
        %v3599 = vpop.f32.mrb[0].mxu0
        %3600 = vmatprep.mubr.f32.mxu0 0.0
        %3601 = vmatmul.mubr.f32.gmra.mrb[0].mxu0 %v3505
        %v3602 = vpop.f32.mrb[0].mxu0
        %v3603 = vadd.f32 %v3491, %v3602
        %v3604 = vpop.f32.mrb[0].mxu0
        %3605 = vmatprep.mubr.f32.mxu0 0.0
        %3606 = vmatmul.mubr.f32.gmra.mrb[0].mxu0 %v3508
        %v3607 = vpop.f32.mrb[0].mxu0
        %v3608 = vadd.f32 %v3491, %v3607
        %v3609 = vpop.f32.mrb[0].mxu0
        %3610 = vmatprep.mubr.f32.mxu0 0.0
        %3611 = vmatmul.mubr.f32.gmra.mrb[0].mxu0 %v3511
        %v3612 = vpop.f32.mrb[0].mxu0
        %v3613 = vadd.f32 %v3491, %v3612
        %v3614 = vpop.f32.mrb[0].mxu0
        %3615 = vmatprep.mubr.f32.mxu0 0.0
        %3616 = vmatmul.mubr.f32.gmra.mrb[0].mxu0 %v3514
        %v3617 = vpop.f32.mrb[0].mxu0
        %v3618 = vadd.f32 %v3491, %v3617
        %v3619 = vpop.f32.mrb[0].mxu0
        %3620 = vdwg.mxu0
        %v3621 = vld [vmem:[%s2] sm:$0xff]
        %v3622 = vld [vmem:[%s2 + $0x8] sm:$0xff]
        %v3623 = vld [vmem:[%s2 + $0x10] sm:$0xff]
        %v3624 = vld [vmem:[%s2 + $0x18] sm:$0xff]
        %v3625 = vld [vmem:[%s2 + $0x20] sm:$0xff]
        %v3626 = vld [vmem:[%s2 + $0x28] sm:$0xff]
        %v3627 = vld [vmem:[%s2 + $0x30] sm:$0xff]
        %v3628 = vld [vmem:[%s2 + $0x38] sm:$0xff]
        %v3629 = vld [vmem:[%s2 + $0x40] sm:$0xff]
        %v3630 = vld [vmem:[%s2 + $0x48] sm:$0xff]
        %v3631 = vld [vmem:[%s2 + $0x50] sm:$0xff]
        %v3632 = vld [vmem:[%s2 + $0x58] sm:$0xff]
        %v3633 = vld [vmem:[%s2 + $0x60] sm:$0xff]
        %v3634 = vld [vmem:[%s2 + $0x68] sm:$0xff]
        %v3635 = vld [vmem:[%s2 + $0x70] sm:$0xff]
        %v3636 = vld [vmem:[%s2 + $0x78] sm:$0xff]
        %v3637 = vld [vmem:[%s2 + $0x80] sm:$0xff]
        %v3638 = vld [vmem:[%s2 + $0x88] sm:$0xff]
        %v3639 = vld [vmem:[%s2 + $0x90] sm:$0xff]
        %v3640 = vld [vmem:[%s2 + $0x98] sm:$0xff]
        %v3641 = vld [vmem:[%s2 + $0xa0] sm:$0xff]
        %v3642 = vld [vmem:[%s2 + $0xa8] sm:$0xff]
        %v3643 = vld [vmem:[%s2 + $0xb0] sm:$0xff]
        %v3644 = vld [vmem:[%s2 + $0xb8] sm:$0xff]
        %v3645 = vld [vmem:[%s2 + $0xc0] sm:$0xff]
        %v3646 = vld [vmem:[%s2 + $0xc8] sm:$0xff]
        %v3647 = vld [vmem:[%s2 + $0xd0] sm:$0xff]
        %v3648 = vld [vmem:[%s2 + $0xd8] sm:$0xff]
        %v3649 = vld [vmem:[%s2 + $0xe0] sm:$0xff]
        %v3650 = vld [vmem:[%s2 + $0xe8] sm:$0xff]
        %v3651 = vld [vmem:[%s2 + $0xf0] sm:$0xff]
        %v3652 = vld [vmem:[%s2 + $0xf8] sm:$0xff]
        %v3653 = vld [vmem:[%s2 + $0x100] sm:$0xff]
        %v3654 = vld [vmem:[%s2 + $0x108] sm:$0xff]
        %v3655 = vld [vmem:[%s2 + $0x110] sm:$0xff]
        %v3656 = vld [vmem:[%s2 + $0x118] sm:$0xff]
        %3657 = vmatprep.subr.mxu0 0.0
        %3658 = vmatpush1.msra.mxu0 %v3621
        %3659 = vmatprep.subr.mxu0 0.0
        %3660 = vmatpush1.msra.mxu0 %v3622
        %3661 = vmatprep.subr.mxu0 0.0
        %3662 = vmatpush1.msra.mxu0 %v3623
        %3663 = vmatprep.subr.mxu0 0.0
        %3664 = vmatpush1.msra.mxu0 %v3624
        %3665 = vmatprep.subr.mxu0 0.0
        %3666 = vmatpush1.msra.mxu0 %v3625
        %3667 = vmatprep.subr.mxu0 0.0
        %3668 = vmatpush1.msra.mxu0 %v3626
        %3669 = vmatprep.subr.mxu0 0.0
        %3670 = vmatpush1.msra.mxu0 %v3627
        %3671 = vmatprep.subr.mxu0 0.0
        %3672 = vmatpush1.msra.mxu0 %v3628
        %3673 = vmatprep.subr.mxu0 0.0
        %3674 = vmatpush1.msra.mxu0 %v3629
        %3675 = vmatprep.subr.mxu0 0.0
        %3676 = vmatpush1.msra.mxu0 %v3630
        %3677 = vmatprep.subr.mxu0 0.0
        %3678 = vmatpush1.msra.mxu0 %v3631
        %3679 = vmatprep.subr.mxu0 0.0
        %3680 = vmatpush1.msra.mxu0 %v3632
        %3681 = vmatprep.subr.mxu0 0.0
        %3682 = vmatpush1.msra.mxu0 %v3633
        %3683 = vmatprep.subr.mxu0 0.0
        %3684 = vmatpush1.msra.mxu0 %v3634
        %3685 = vmatprep.subr.mxu0 0.0
        %3686 = vmatpush1.msra.mxu0 %v3635
        %3687 = vmatprep.subr.mxu0 0.0
        %3688 = vmatpush1.msra.mxu0 %v3636
        %3689 = vmatprep.subr.mxu0 0.0
        %3690 = vmatpush1.msra.mxu0 %v3637
        %3691 = vmatprep.subr.mxu0 0.0
        %3692 = vmatpush1.msra.mxu0 %v3638
        %3693 = vmatprep.subr.mxu0 0.0
        %3694 = vmatpush1.msra.mxu0 %v3639
        %3695 = vmatprep.subr.mxu0 0.0
        %3696 = vmatpush1.msra.mxu0 %v3640
        %3697 = vmatprep.subr.mxu0 0.0
        %3698 = vmatpush1.msra.mxu0 %v3641
        %3699 = vmatprep.subr.mxu0 0.0
        %3700 = vmatpush1.msra.mxu0 %v3642
        %3701 = vmatprep.subr.mxu0 0.0
        %3702 = vmatpush1.msra.mxu0 %v3643
        %3703 = vmatprep.subr.mxu0 0.0
        %3704 = vmatpush1.msra.mxu0 %v3644
        %3705 = vmatprep.subr.mxu0 0.0
        %3706 = vmatpush1.msra.mxu0 %v3645
        %3707 = vmatprep.subr.mxu0 0.0
        %3708 = vmatpush1.msra.mxu0 %v3646
        %3709 = vmatprep.subr.mxu0 0.0
        %3710 = vmatpush1.msra.mxu0 %v3647
        %3711 = vmatprep.subr.mxu0 0.0
        %3712 = vmatpush1.msra.mxu0 %v3648
        %3713 = vmatprep.subr.mxu0 0.0
        %3714 = vmatpush1.msra.mxu0 %v3649
        %3715 = vmatprep.subr.mxu0 0.0
        %3716 = vmatpush1.msra.mxu0 %v3650
        %3717 = vmatprep.subr.mxu0 0.0
        %3718 = vmatpush1.msra.mxu0 %v3651
        %3719 = vmatprep.subr.mxu0 0.0
        %3720 = vmatpush1.msra.mxu0 %v3652
        %3721 = vmatprep.mubr.f32.mxu0 %v3189
        %3722 = vmatmul.mubr.f32.gmra.mrb[0].mxu0 %v3188
        %v3723 = vpop.f32.mrb[0].mxu0
        %v3724 = vadd.f32 0.0, %v3723
        %v3725 = vpop.f32.mrb[0].mxu0
        %3726 = vmatprep.mubr.f32.mxu0 %v3192
        %3727 = vmatmul.mubr.f32.gmra.mrb[0].mxu0 %v3191
        %v3728 = vpop.f32.mrb[0].mxu0
        %v3729 = vadd.f32 0.0, %v3728
        %v3730 = vpop.f32.mrb[0].mxu0
        %3731 = vmatprep.mubr.f32.mxu0 %v3195
        %3732 = vmatmul.mubr.f32.gmra.mrb[0].mxu0 %v3194
        %v3733 = vpop.f32.mrb[0].mxu0
        %v3734 = vadd.f32 0.0, %v3733
        %v3735 = vpop.f32.mrb[0].mxu0
        %3736 = vmatprep.mubr.f32.mxu0 %v3198
        %3737 = vmatmul.mubr.f32.gmra.mrb[0].mxu0 %v3197
        %v3738 = vpop.f32.mrb[0].mxu0
        %v3739 = vadd.f32 0.0, %v3738
        %v3740 = vpop.f32.mrb[0].mxu0
        %3741 = vmatprep.mubr.f32.mxu0 %v3201
        %3742 = vmatmul.mubr.f32.gmra.mrb[0].mxu0 %v3200
        %v3743 = vpop.f32.mrb[0].mxu0
        %v3744 = vadd.f32 0.0, %v3743
        %v3745 = vpop.f32.mrb[0].mxu0
        %3746 = vmatprep.mubr.f32.mxu0 %v3204
        %3747 = vmatmul.mubr.f32.gmra.mrb[0].mxu0 %v3203
        %v3748 = vpop.f32.mrb[0].mxu0
        %v3749 = vadd.f32 0.0, %v3748
        %v3750 = vpop.f32.mrb[0].mxu0
        %3751 = vmatprep.mubr.f32.mxu0 %v3207
        %3752 = vmatmul.mubr.f32.gmra.mrb[0].mxu0 %v3206
        %v3753 = vpop.f32.mrb[0].mxu0
        %v3754 = vadd.f32 0.0, %v3753
        %v3755 = vpop.f32.mrb[0].mxu0
        %3756 = vmatprep.mubr.f32.mxu0 %v3210
        %3757 = vmatmul.mubr.f32.gmra.mrb[0].mxu0 %v3209
        %v3758 = vpop.f32.mrb[0].mxu0
        %v3759 = vadd.f32 0.0, %v3758
        %v3760 = vpop.f32.mrb[0].mxu0
        %3761 = vdwg.mxu0
        %3762 = vmatprep.subr.mxu0 0.0
        %3763 = vmatpush1.msra.mxu0 %v3653
        %3764 = vmatprep.subr.mxu0 0.0
        %3765 = vmatpush1.msra.mxu0 %v3654
        %3766 = vmatprep.subr.mxu0 0.0
        %3767 = vmatpush1.msra.mxu0 %v3655
        %3768 = vmatprep.subr.mxu0 0.0
        %3769 = vmatpush1.msra.mxu0 %v3656
        %3770 = vmatprep.subr.mxu0 0.0
        %3771 = vmatpush1.msra.mxu0 0.0
        %3772 = vmatprep.subr.mxu0 0.0
        %3773 = vmatpush1.msra.mxu0 0.0
        %3774 = vmatprep.subr.mxu0 0.0
        %3775 = vmatpush1.msra.mxu0 0.0
        %3776 = vmatprep.subr.mxu0 0.0
        %3777 = vmatpush1.msra.mxu0 0.0
        %3778 = vmatprep.subr.mxu0 0.0
        %3779 = vmatpush1.msra.mxu0 0.0
        %3780 = vmatprep.subr.mxu0 0.0
        %3781 = vmatpush1.msra.mxu0 0.0
        %3782 = vmatprep.subr.mxu0 0.0
        %3783 = vmatpush1.msra.mxu0 0.0
        %3784 = vmatprep.subr.mxu0 0.0
        %3785 = vmatpush1.msra.mxu0 0.0
        %3786 = vmatprep.subr.mxu0 0.0
        %3787 = vmatpush1.msra.mxu0 0.0
        %3788 = vmatprep.subr.mxu0 0.0
        %3789 = vmatpush1.msra.mxu0 0.0
        %3790 = vmatprep.subr.mxu0 0.0
        %3791 = vmatpush1.msra.mxu0 0.0
        %3792 = vmatprep.subr.mxu0 0.0
        %3793 = vmatpush1.msra.mxu0 0.0
        %3794 = vmatprep.subr.mxu0 0.0
        %3795 = vmatpush1.msra.mxu0 0.0
        %3796 = vmatprep.subr.mxu0 0.0
        %3797 = vmatpush1.msra.mxu0 0.0
        %3798 = vmatprep.subr.mxu0 0.0
        %3799 = vmatpush1.msra.mxu0 0.0
        %3800 = vmatprep.subr.mxu0 0.0
        %3801 = vmatpush1.msra.mxu0 0.0
        %3802 = vmatprep.subr.mxu0 0.0
        %3803 = vmatpush1.msra.mxu0 0.0
        %3804 = vmatprep.subr.mxu0 0.0
        %3805 = vmatpush1.msra.mxu0 0.0
        %3806 = vmatprep.subr.mxu0 0.0
        %3807 = vmatpush1.msra.mxu0 0.0
        %3808 = vmatprep.subr.mxu0 0.0
        %3809 = vmatpush1.msra.mxu0 0.0
        %3810 = vmatprep.subr.mxu0 0.0
        %3811 = vmatpush1.msra.mxu0 0.0
        %3812 = vmatprep.subr.mxu0 0.0
        %3813 = vmatpush1.msra.mxu0 0.0
        %3814 = vmatprep.subr.mxu0 0.0
        %3815 = vmatpush1.msra.mxu0 0.0
        %3816 = vmatprep.subr.mxu0 0.0
        %3817 = vmatpush1.msra.mxu0 0.0
        %3818 = vmatprep.subr.mxu0 0.0
        %3819 = vmatpush1.msra.mxu0 0.0
        %3820 = vmatprep.subr.mxu0 0.0
        %3821 = vmatpush1.msra.mxu0 0.0
        %3822 = vmatprep.subr.mxu0 0.0
        %3823 = vmatpush1.msra.mxu0 0.0
        %3824 = vmatprep.subr.mxu0 0.0
        %3825 = vmatpush1.msra.mxu0 0.0
        %3826 = vmatprep.mubr.f32.mxu0 0.0
        %3827 = vmatmul.mubr.f32.gmra.mrb[0].mxu0 %v3250
        %v3828 = vpop.f32.mrb[0].mxu0
        %v3829 = vadd.f32 %v3724, %v3828
        %v3830 = vpop.f32.mrb[0].mxu0
        %3831 = vmatprep.mubr.f32.mxu0 0.0
        %3832 = vmatmul.mubr.f32.gmra.mrb[0].mxu0 %v3253
        %v3833 = vpop.f32.mrb[0].mxu0
        %v3834 = vadd.f32 %v3729, %v3833
        %v3835 = vpop.f32.mrb[0].mxu0
        %3836 = vmatprep.mubr.f32.mxu0 0.0
        %3837 = vmatmul.mubr.f32.gmra.mrb[0].mxu0 %v3256
        %v3838 = vpop.f32.mrb[0].mxu0
        %v3839 = vadd.f32 %v3734, %v3838
        %v3840 = vpop.f32.mrb[0].mxu0
        %3841 = vmatprep.mubr.f32.mxu0 0.0
        %3842 = vmatmul.mubr.f32.gmra.mrb[0].mxu0 %v3259
        %v3843 = vpop.f32.mrb[0].mxu0
        %v3844 = vadd.f32 %v3739, %v3843
        %v3845 = vpop.f32.mrb[0].mxu0
        %3846 = vmatprep.mubr.f32.mxu0 0.0
        %3847 = vmatmul.mubr.f32.gmra.mrb[0].mxu0 %v3262
        %v3848 = vpop.f32.mrb[0].mxu0
        %v3849 = vadd.f32 %v3744, %v3848
        %v3850 = vpop.f32.mrb[0].mxu0
        %3851 = vmatprep.mubr.f32.mxu0 0.0
        %3852 = vmatmul.mubr.f32.gmra.mrb[0].mxu0 %v3265
        %v3853 = vpop.f32.mrb[0].mxu0
        %v3854 = vadd.f32 %v3749, %v3853
        %v3855 = vpop.f32.mrb[0].mxu0
        %3856 = vmatprep.mubr.f32.mxu0 0.0
        %3857 = vmatmul.mubr.f32.gmra.mrb[0].mxu0 %v3268
        %v3858 = vpop.f32.mrb[0].mxu0
        %v3859 = vadd.f32 %v3754, %v3858
        %v3860 = vpop.f32.mrb[0].mxu0
        %3861 = vmatprep.mubr.f32.mxu0 0.0
        %3862 = vmatmul.mubr.f32.gmra.mrb[0].mxu0 %v3271
        %v3863 = vpop.f32.mrb[0].mxu0
        %v3864 = vadd.f32 %v3759, %v3863
        %v3865 = vpop.f32.mrb[0].mxu0
        %3866 = vdwg.mxu0
        %v3867 = vld [vmem:[%s3] sm:$0xff]
        %v3868 = vld [vmem:[%s3 + $0x8] sm:$0xff]
        %v3869 = vld [vmem:[%s3 + $0x10] sm:$0xff]
        %v3870 = vld [vmem:[%s3 + $0x18] sm:$0xff]
        %v3871 = vlaneseq
        %v3872 = vshrl.u32 %v3871, 7
        %v3873 = vsub.s32 1, %v3872
        %v3874 = vrot.slane %v252, %v3873
        %v3876 = vsel %vm254, %v3829, 0
        %v3879 = vsel %vm254, %v3834, 0
        %v3882 = vsel %vm254, %v3839, 0
        %v3885 = vsel %vm254, %v3844, 0
        %v3888 = vsel %vm254, %v3849, 0
        %v3891 = vsel %vm254, %v3854, 0
        %v3894 = vsel %vm254, %v3859, 0
        %v3897 = vsel %vm254, %v3864, 0
        %3899 = vmatprep.subr.mxu0 0.0
        %3900 = vmatpush1.msra.mxu0 %v3867
        %3901 = vmatprep.subr.mxu0 0.0
        %3902 = vmatpush1.msra.mxu0 %v3868
        %3903 = vmatprep.subr.mxu0 0.0
        %3904 = vmatpush1.msra.mxu0 %v3869
        %3905 = vmatprep.subr.mxu0 0.0
        %3906 = vmatpush1.msra.mxu0 %v3870
        %3907 = vmatprep.subr.mxu0 0.0
        %3908 = vmatpush1.msra.mxu0 0.0
        %3909 = vmatprep.subr.mxu0 0.0
        %3910 = vmatpush1.msra.mxu0 0.0
        %3911 = vmatprep.subr.mxu0 0.0
        %3912 = vmatpush1.msra.mxu0 0.0
        %3913 = vmatprep.subr.mxu0 0.0
        %3914 = vmatpush1.msra.mxu0 0.0
        %3915 = vmatprep.subr.mxu0 0.0
        %3916 = vmatpush1.msra.mxu0 0.0
        %3917 = vmatprep.subr.mxu0 0.0
        %3918 = vmatpush1.msra.mxu0 0.0
        %3919 = vmatprep.subr.mxu0 0.0
        %3920 = vmatpush1.msra.mxu0 0.0
        %3921 = vmatprep.subr.mxu0 0.0
        %3922 = vmatpush1.msra.mxu0 0.0
        %3923 = vmatprep.subr.mxu0 0.0
        %3924 = vmatpush1.msra.mxu0 0.0
        %3925 = vmatprep.subr.mxu0 0.0
        %3926 = vmatpush1.msra.mxu0 0.0
        %3927 = vmatprep.subr.mxu0 0.0
        %3928 = vmatpush1.msra.mxu0 0.0
        %3929 = vmatprep.subr.mxu0 0.0
        %3930 = vmatpush1.msra.mxu0 0.0
        %3931 = vmatprep.subr.mxu0 0.0
        %3932 = vmatpush1.msra.mxu0 0.0
        %3933 = vmatprep.subr.mxu0 0.0
        %3934 = vmatpush1.msra.mxu0 0.0
        %3935 = vmatprep.subr.mxu0 0.0
        %3936 = vmatpush1.msra.mxu0 0.0
        %3937 = vmatprep.subr.mxu0 0.0
        %3938 = vmatpush1.msra.mxu0 0.0
        %3939 = vmatprep.subr.mxu0 0.0
        %3940 = vmatpush1.msra.mxu0 0.0
        %3941 = vmatprep.subr.mxu0 0.0
        %3942 = vmatpush1.msra.mxu0 0.0
        %3943 = vmatprep.subr.mxu0 0.0
        %3944 = vmatpush1.msra.mxu0 0.0
        %3945 = vmatprep.subr.mxu0 0.0
        %3946 = vmatpush1.msra.mxu0 0.0
        %3947 = vmatprep.subr.mxu0 0.0
        %3948 = vmatpush1.msra.mxu0 0.0
        %3949 = vmatprep.subr.mxu0 0.0
        %3950 = vmatpush1.msra.mxu0 0.0
        %3951 = vmatprep.subr.mxu0 0.0
        %3952 = vmatpush1.msra.mxu0 0.0
        %3953 = vmatprep.subr.mxu0 0.0
        %3954 = vmatpush1.msra.mxu0 0.0
        %3955 = vmatprep.subr.mxu0 0.0
        %3956 = vmatpush1.msra.mxu0 0.0
        %3957 = vmatprep.subr.mxu0 0.0
        %3958 = vmatpush1.msra.mxu0 0.0
        %3959 = vmatprep.subr.mxu0 0.0
        %3960 = vmatpush1.msra.mxu0 0.0
        %3961 = vmatprep.subr.mxu0 0.0
        %3962 = vmatpush1.msra.mxu0 0.0
        %3963 = vmatprep.mubr.f32.mxu0 0.0
        %3964 = vmatmul.mubr.f32.gmra.mrb[0].mxu0 %v3876
        %v3965 = vpop.f32.mrb[0].mxu0
        %v3966 = vadd.f32 %v3874, %v3965
        %v3967 = vpop.f32.mrb[0].mxu0
        %3968 = vmatprep.mubr.f32.mxu0 0.0
        %3969 = vmatmul.mubr.f32.gmra.mrb[0].mxu0 %v3879
        %v3970 = vpop.f32.mrb[0].mxu0
        %v3971 = vadd.f32 %v3874, %v3970
        %v3972 = vpop.f32.mrb[0].mxu0
        %3973 = vmatprep.mubr.f32.mxu0 0.0
        %3974 = vmatmul.mubr.f32.gmra.mrb[0].mxu0 %v3882
        %v3975 = vpop.f32.mrb[0].mxu0
        %v3976 = vadd.f32 %v3874, %v3975
        %v3977 = vpop.f32.mrb[0].mxu0
        %3978 = vmatprep.mubr.f32.mxu0 0.0
        %3979 = vmatmul.mubr.f32.gmra.mrb[0].mxu0 %v3885
        %v3980 = vpop.f32.mrb[0].mxu0
        %v3981 = vadd.f32 %v3874, %v3980
        %v3982 = vpop.f32.mrb[0].mxu0
        %3983 = vmatprep.mubr.f32.mxu0 0.0
        %3984 = vmatmul.mubr.f32.gmra.mrb[0].mxu0 %v3888
        %v3985 = vpop.f32.mrb[0].mxu0
        %v3986 = vadd.f32 %v3874, %v3985
        %v3987 = vpop.f32.mrb[0].mxu0
        %3988 = vmatprep.mubr.f32.mxu0 0.0
        %3989 = vmatmul.mubr.f32.gmra.mrb[0].mxu0 %v3891
        %v3990 = vpop.f32.mrb[0].mxu0
        %v3991 = vadd.f32 %v3874, %v3990
        %v3992 = vpop.f32.mrb[0].mxu0
        %3993 = vmatprep.mubr.f32.mxu0 0.0
        %3994 = vmatmul.mubr.f32.gmra.mrb[0].mxu0 %v3894
        %v3995 = vpop.f32.mrb[0].mxu0
        %v3996 = vadd.f32 %v3874, %v3995
        %v3997 = vpop.f32.mrb[0].mxu0
        %3998 = vmatprep.mubr.f32.mxu0 0.0
        %3999 = vmatmul.mubr.f32.gmra.mrb[0].mxu0 %v3897
        %v4000 = vpop.f32.mrb[0].mxu0
        %v4001 = vadd.f32 %v3874, %v4000
        %v4002 = vpop.f32.mrb[0].mxu0
        %4003 = vdwg.mxu0
        %vm4004 = vcmp.ge.f32.partialorder %v3966, 0.0
        %vm4005 = vcmp.ge.f32.partialorder %v3971, 0.0
        %vm4006 = vcmp.ge.f32.partialorder %v3976, 0.0
        %vm4007 = vcmp.ge.f32.partialorder %v3981, 0.0
        %vm4008 = vcmp.ge.f32.partialorder %v3986, 0.0
        %vm4009 = vcmp.ge.f32.partialorder %v3991, 0.0
        %vm4010 = vcmp.ge.f32.partialorder %v3996, 0.0
        %vm4011 = vcmp.ge.f32.partialorder %v4001, 0.0
        %v4012 = vlaneseq
        %v4013 = vshrl.u32 %v4012, 7
        %v4014 = vsub.s32 1, %v4013
        %v4015 = vrot.slane %v253, %v4014
        %v4016 = vmul.f32 %v3966, %v4015
        %v4017 = vmul.f32 %v3971, %v4015
        %v4018 = vmul.f32 %v3976, %v4015
        %v4019 = vmul.f32 %v3981, %v4015
        %v4020 = vmul.f32 %v3986, %v4015
        %v4021 = vmul.f32 %v3991, %v4015
        %v4022 = vmul.f32 %v3996, %v4015
        %v4023 = vmul.f32 %v4001, %v4015
        %v4024 = vsel %vm4004, %v3966, %v4016
        %v4025 = vsel %vm4005, %v3971, %v4017
        %v4026 = vsel %vm4006, %v3976, %v4018
        %v4027 = vsel %vm4007, %v3981, %v4019
        %v4028 = vsel %vm4008, %v3986, %v4020
        %v4029 = vsel %vm4009, %v3991, %v4021
        %v4030 = vsel %vm4010, %v3996, %v4022
        %v4031 = vsel %vm4011, %v4001, %v4023
        %4032 = vst.msk [vmem:[#allocation3] sm:$0xff] %vm254, 0.0
        %vm4033 = vcmask 254976
        %4034 = vst.msk [vmem:[#allocation3 + $0x8] sm:$0x3] %vm4033, 0.0
        %4035 = vst.msk [vmem:[#allocation3 + $0x10] sm:$0xff] %vm254, 0.0
        %4036 = vst.msk [vmem:[#allocation3 + $0x18] sm:$0x3] %vm4033, 0.0
        %4037 = vst.msk [vmem:[#allocation3 + $0x20] sm:$0xff] %vm254, 0.0
        %4038 = vst.msk [vmem:[#allocation3 + $0x28] sm:$0x3] %vm4033, 0.0
        %4039 = vst.msk [vmem:[#allocation3 + $0x30] sm:$0xff] %vm254, 0.0
        %4040 = vst.msk [vmem:[#allocation3 + $0x38] sm:$0x3] %vm4033, 0.0
        %4041 = vst.msk [vmem:[#allocation3 + $0x40] sm:$0xff] %vm254, 0.0
        %4042 = vst.msk [vmem:[#allocation3 + $0x48] sm:$0x3] %vm4033, 0.0
        %4043 = vst.msk [vmem:[#allocation3 + $0x50] sm:$0xff] %vm254, 0.0
        %4044 = vst.msk [vmem:[#allocation3 + $0x58] sm:$0x3] %vm4033, 0.0
        %4045 = vst.msk [vmem:[#allocation3 + $0x60] sm:$0xff] %vm254, 0.0
        %4046 = vst.msk [vmem:[#allocation3 + $0x68] sm:$0x3] %vm4033, 0.0
        %4047 = vst.msk [vmem:[#allocation3 + $0x70] sm:$0xff] %vm254, 0.0
        %4048 = vst.msk [vmem:[#allocation3 + $0x78] sm:$0x3] %vm4033, 0.0
        %4049 = vst.msk [vmem:[#allocation3 + $0x80] sm:$0xff] %vm254, 0.0
        %4050 = vst.msk [vmem:[#allocation3 + $0x88] sm:$0x3] %vm4033, 0.0
        %4051 = vst.msk [vmem:[#allocation3 + $0x90] sm:$0xff] %vm254, 0.0
        %4052 = vst.msk [vmem:[#allocation3 + $0x98] sm:$0x3] %vm4033, 0.0
        %s4053 = scalar_lea.vmem [#allocation3], 16
        %4054 = vst.msk [vmem:[%s4053 + $0x1] sm:$0xff] %vm254, %v4024
        %4055 = vst.msk [vmem:[%s4053 + $0x11] sm:$0xff] %vm254, %v4025
        %4056 = vst.msk [vmem:[%s4053 + $0x21] sm:$0xff] %vm254, %v4026
        %4057 = vst.msk [vmem:[%s4053 + $0x31] sm:$0xff] %vm254, %v4027
        %4058 = vst.msk [vmem:[%s4053 + $0x41] sm:$0xff] %vm254, %v4028
        %4059 = vst.msk [vmem:[%s4053 + $0x51] sm:$0xff] %vm254, %v4029
        %4060 = vst.msk [vmem:[%s4053 + $0x61] sm:$0xff] %vm254, %v4030
        %4061 = vst.msk [vmem:[%s4053 + $0x71] sm:$0xff] %vm254, %v4031
        %v4062 = vld [vmem:[#allocation3] sm:$0xff]
        %v4063 = vld [vmem:[#allocation3 + $0x10] sm:$0xff]
        %v4064 = vld [vmem:[#allocation3 + $0x20] sm:$0xff]
        %v4065 = vld [vmem:[#allocation3 + $0x30] sm:$0xff]
        %v4066 = vld [vmem:[#allocation3 + $0x40] sm:$0xff]
        %v4067 = vld [vmem:[#allocation3 + $0x50] sm:$0xff]
        %v4068 = vld [vmem:[#allocation3 + $0x60] sm:$0xff]
        %v4069 = vld [vmem:[#allocation3 + $0x70] sm:$0xff]
        %4070 = vst.msk [vmem:[#allocation4] sm:$0xff] %vm254, %v4062
        %4071 = vst.msk [vmem:[#allocation4 + $0x18] sm:$0xff] %vm254, %v4063
        %4072 = vst.msk [vmem:[#allocation4 + $0x30] sm:$0xff] %vm254, %v4064
        %4073 = vst.msk [vmem:[#allocation4 + $0x48] sm:$0xff] %vm254, %v4065
        %4074 = vst.msk [vmem:[#allocation4 + $0x60] sm:$0xff] %vm254, %v4066
        %4075 = vst.msk [vmem:[#allocation4 + $0x78] sm:$0xff] %vm254, %v4067
        %4076 = vst.msk [vmem:[#allocation4 + $0x90] sm:$0xff] %vm254, %v4068
        %4077 = vst.msk [vmem:[#allocation4 + $0xa8] sm:$0xff] %vm254, %v4069
        %v4078 = vld [vmem:[#allocation3 + $0x1] sm:$0xff]
        %v4079 = vld [vmem:[#allocation3 + $0x11] sm:$0xff]
        %v4080 = vld [vmem:[#allocation3 + $0x21] sm:$0xff]
        %v4081 = vld [vmem:[#allocation3 + $0x31] sm:$0xff]
        %v4082 = vld [vmem:[#allocation3 + $0x41] sm:$0xff]
        %v4083 = vld [vmem:[#allocation3 + $0x51] sm:$0xff]
        %v4084 = vld [vmem:[#allocation3 + $0x61] sm:$0xff]
        %v4085 = vld [vmem:[#allocation3 + $0x71] sm:$0xff]
        %4094 = vrot.lane.b32.xlu0 %v4078, 32
        %v4095 = vpop.permute.xlu0 %4094
        %4096 = vrot.lane.b32.xlu0 %v4079, 32
        %v4097 = vpop.permute.xlu0 %4096
        %4098 = vrot.lane.b32.xlu0 %v4080, 32
        %v4099 = vpop.permute.xlu0 %4098
        %4100 = vrot.lane.b32.xlu0 %v4081, 32
        %v4101 = vpop.permute.xlu0 %4100
        %4102 = vrot.lane.b32.xlu0 %v4082, 32
        %v4103 = vpop.permute.xlu0 %4102
        %4104 = vrot.lane.b32.xlu0 %v4083, 32
        %v4105 = vpop.permute.xlu0 %4104
        %4106 = vrot.lane.b32.xlu0 %v4084, 32
        %v4107 = vpop.permute.xlu0 %4106
        %4108 = vrot.lane.b32.xlu0 %v4085, 32
        %v4109 = vpop.permute.xlu0 %4108
        %4118 = vst.msk [vmem:[#allocation4] sm:$0xff] %vm2905, %v4095
        %4119 = vst.msk [vmem:[#allocation4 + $0x18] sm:$0xff] %vm2905, %v4097
        %4120 = vst.msk [vmem:[#allocation4 + $0x30] sm:$0xff] %vm2905, %v4099
        %4121 = vst.msk [vmem:[#allocation4 + $0x48] sm:$0xff] %vm2905, %v4101
        %4122 = vst.msk [vmem:[#allocation4 + $0x60] sm:$0xff] %vm2905, %v4103
        %4123 = vst.msk [vmem:[#allocation4 + $0x78] sm:$0xff] %vm2905, %v4105
        %4124 = vst.msk [vmem:[#allocation4 + $0x90] sm:$0xff] %vm2905, %v4107
        %4125 = vst.msk [vmem:[#allocation4 + $0xa8] sm:$0xff] %vm2905, %v4109
        %v4126 = vld [vmem:[#allocation3 + $0x2] sm:$0xff]
        %v4127 = vld [vmem:[#allocation3 + $0x12] sm:$0xff]
        %v4128 = vld [vmem:[#allocation3 + $0x22] sm:$0xff]
        %v4129 = vld [vmem:[#allocation3 + $0x32] sm:$0xff]
        %v4130 = vld [vmem:[#allocation3 + $0x42] sm:$0xff]
        %v4131 = vld [vmem:[#allocation3 + $0x52] sm:$0xff]
        %v4132 = vld [vmem:[#allocation3 + $0x62] sm:$0xff]
        %v4133 = vld [vmem:[#allocation3 + $0x72] sm:$0xff]
        %4142 = vrot.lane.b32.xlu0 %v4126, 64
        %v4143 = vpop.permute.xlu0 %4142
        %4144 = vrot.lane.b32.xlu0 %v4127, 64
        %v4145 = vpop.permute.xlu0 %4144
        %4146 = vrot.lane.b32.xlu0 %v4128, 64
        %v4147 = vpop.permute.xlu0 %4146
        %4148 = vrot.lane.b32.xlu0 %v4129, 64
        %v4149 = vpop.permute.xlu0 %4148
        %4150 = vrot.lane.b32.xlu0 %v4130, 64
        %v4151 = vpop.permute.xlu0 %4150
        %4152 = vrot.lane.b32.xlu0 %v4131, 64
        %v4153 = vpop.permute.xlu0 %4152
        %4154 = vrot.lane.b32.xlu0 %v4132, 64
        %v4155 = vpop.permute.xlu0 %4154
        %4156 = vrot.lane.b32.xlu0 %v4133, 64
        %v4157 = vpop.permute.xlu0 %4156
        %4166 = vst.msk [vmem:[#allocation4] sm:$0xff] %vm2954, %v4143
        %4167 = vst.msk [vmem:[#allocation4 + $0x18] sm:$0xff] %vm2954, %v4145
        %4168 = vst.msk [vmem:[#allocation4 + $0x30] sm:$0xff] %vm2954, %v4147
        %4169 = vst.msk [vmem:[#allocation4 + $0x48] sm:$0xff] %vm2954, %v4149
        %4170 = vst.msk [vmem:[#allocation4 + $0x60] sm:$0xff] %vm2954, %v4151
        %4171 = vst.msk [vmem:[#allocation4 + $0x78] sm:$0xff] %vm2954, %v4153
        %4172 = vst.msk [vmem:[#allocation4 + $0x90] sm:$0xff] %vm2954, %v4155
        %4173 = vst.msk [vmem:[#allocation4 + $0xa8] sm:$0xff] %vm2954, %v4157
        %v4174 = vld [vmem:[%s4053] sm:$0xff]
        %v4175 = vld [vmem:[%s4053 + $0x10] sm:$0xff]
        %v4176 = vld [vmem:[%s4053 + $0x20] sm:$0xff]
        %v4177 = vld [vmem:[%s4053 + $0x30] sm:$0xff]
        %v4178 = vld [vmem:[%s4053 + $0x40] sm:$0xff]
        %v4179 = vld [vmem:[%s4053 + $0x50] sm:$0xff]
        %v4180 = vld [vmem:[%s4053 + $0x60] sm:$0xff]
        %v4181 = vld [vmem:[%s4053 + $0x70] sm:$0xff]
        %4190 = vrot.lane.b32.xlu0 %v4174, 96
        %v4191 = vpop.permute.xlu0 %4190
        %4192 = vrot.lane.b32.xlu0 %v4175, 96
        %v4193 = vpop.permute.xlu0 %4192
        %4194 = vrot.lane.b32.xlu0 %v4176, 96
        %v4195 = vpop.permute.xlu0 %4194
        %4196 = vrot.lane.b32.xlu0 %v4177, 96
        %v4197 = vpop.permute.xlu0 %4196
        %4198 = vrot.lane.b32.xlu0 %v4178, 96
        %v4199 = vpop.permute.xlu0 %4198
        %4200 = vrot.lane.b32.xlu0 %v4179, 96
        %v4201 = vpop.permute.xlu0 %4200
        %4202 = vrot.lane.b32.xlu0 %v4180, 96
        %v4203 = vpop.permute.xlu0 %4202
        %4204 = vrot.lane.b32.xlu0 %v4181, 96
        %v4205 = vpop.permute.xlu0 %4204
        %4214 = vst.msk [vmem:[#allocation4] sm:$0xff] %vm3003, %v4191
        %4215 = vst.msk [vmem:[#allocation4 + $0x18] sm:$0xff] %vm3003, %v4193
        %4216 = vst.msk [vmem:[#allocation4 + $0x30] sm:$0xff] %vm3003, %v4195
        %4217 = vst.msk [vmem:[#allocation4 + $0x48] sm:$0xff] %vm3003, %v4197
        %4218 = vst.msk [vmem:[#allocation4 + $0x60] sm:$0xff] %vm3003, %v4199
        %4219 = vst.msk [vmem:[#allocation4 + $0x78] sm:$0xff] %vm3003, %v4201
        %4220 = vst.msk [vmem:[#allocation4 + $0x90] sm:$0xff] %vm3003, %v4203
        %4221 = vst.msk [vmem:[#allocation4 + $0xa8] sm:$0xff] %vm3003, %v4205
        %v4222 = vld [vmem:[%s4053 + $0x1] sm:$0xff]
        %v4223 = vld [vmem:[%s4053 + $0x11] sm:$0xff]
        %v4224 = vld [vmem:[%s4053 + $0x21] sm:$0xff]
        %v4225 = vld [vmem:[%s4053 + $0x31] sm:$0xff]
        %v4226 = vld [vmem:[%s4053 + $0x41] sm:$0xff]
        %v4227 = vld [vmem:[%s4053 + $0x51] sm:$0xff]
        %v4228 = vld [vmem:[%s4053 + $0x61] sm:$0xff]
        %v4229 = vld [vmem:[%s4053 + $0x71] sm:$0xff]
        %4230 = vst.msk [vmem:[#allocation4 + $0x8] sm:$0xff] %vm254, %v4222
        %4231 = vst.msk [vmem:[#allocation4 + $0x20] sm:$0xff] %vm254, %v4223
        %4232 = vst.msk [vmem:[#allocation4 + $0x38] sm:$0xff] %vm254, %v4224
        %4233 = vst.msk [vmem:[#allocation4 + $0x50] sm:$0xff] %vm254, %v4225
        %4234 = vst.msk [vmem:[#allocation4 + $0x68] sm:$0xff] %vm254, %v4226
        %4235 = vst.msk [vmem:[#allocation4 + $0x80] sm:$0xff] %vm254, %v4227
        %4236 = vst.msk [vmem:[#allocation4 + $0x98] sm:$0xff] %vm254, %v4228
        %4237 = vst.msk [vmem:[#allocation4 + $0xb0] sm:$0xff] %vm254, %v4229
        %v4238 = vld [vmem:[%s4053 + $0x2] sm:$0xff]
        %v4239 = vld [vmem:[%s4053 + $0x12] sm:$0xff]
        %v4240 = vld [vmem:[%s4053 + $0x22] sm:$0xff]
        %v4241 = vld [vmem:[%s4053 + $0x32] sm:$0xff]
        %v4242 = vld [vmem:[%s4053 + $0x42] sm:$0xff]
        %v4243 = vld [vmem:[%s4053 + $0x52] sm:$0xff]
        %v4244 = vld [vmem:[%s4053 + $0x62] sm:$0xff]
        %v4245 = vld [vmem:[%s4053 + $0x72] sm:$0xff]
        %4254 = vrot.lane.b32.xlu0 %v4238, 32
        %v4255 = vpop.permute.xlu0 %4254
        %4256 = vrot.lane.b32.xlu0 %v4239, 32
        %v4257 = vpop.permute.xlu0 %4256
        %4258 = vrot.lane.b32.xlu0 %v4240, 32
        %v4259 = vpop.permute.xlu0 %4258
        %4260 = vrot.lane.b32.xlu0 %v4241, 32
        %v4261 = vpop.permute.xlu0 %4260
        %4262 = vrot.lane.b32.xlu0 %v4242, 32
        %v4263 = vpop.permute.xlu0 %4262
        %4264 = vrot.lane.b32.xlu0 %v4243, 32
        %v4265 = vpop.permute.xlu0 %4264
        %4266 = vrot.lane.b32.xlu0 %v4244, 32
        %v4267 = vpop.permute.xlu0 %4266
        %4268 = vrot.lane.b32.xlu0 %v4245, 32
        %v4269 = vpop.permute.xlu0 %4268
        %4278 = vst.msk [vmem:[#allocation4 + $0x8] sm:$0xff] %vm2905, %v4255
        %4279 = vst.msk [vmem:[#allocation4 + $0x20] sm:$0xff] %vm2905, %v4257
        %4280 = vst.msk [vmem:[#allocation4 + $0x38] sm:$0xff] %vm2905, %v4259
        %4281 = vst.msk [vmem:[#allocation4 + $0x50] sm:$0xff] %vm2905, %v4261
        %4282 = vst.msk [vmem:[#allocation4 + $0x68] sm:$0xff] %vm2905, %v4263
        %4283 = vst.msk [vmem:[#allocation4 + $0x80] sm:$0xff] %vm2905, %v4265
        %4284 = vst.msk [vmem:[#allocation4 + $0x98] sm:$0xff] %vm2905, %v4267
        %4285 = vst.msk [vmem:[#allocation4 + $0xb0] sm:$0xff] %vm2905, %v4269
        %s4286 = scalar_lea.vmem [#allocation3], 32
        %v4287 = vld [vmem:[%s4286] sm:$0xff]
        %v4288 = vld [vmem:[%s4286 + $0x10] sm:$0xff]
        %v4289 = vld [vmem:[%s4286 + $0x20] sm:$0xff]
        %v4290 = vld [vmem:[%s4286 + $0x30] sm:$0xff]
        %v4291 = vld [vmem:[%s4286 + $0x40] sm:$0xff]
        %v4292 = vld [vmem:[%s4286 + $0x50] sm:$0xff]
        %v4293 = vld [vmem:[%s4286 + $0x60] sm:$0xff]
        %v4294 = vld [vmem:[%s4286 + $0x70] sm:$0xff]
        %4303 = vrot.lane.b32.xlu0 %v4287, 64
        %v4304 = vpop.permute.xlu0 %4303
        %4305 = vrot.lane.b32.xlu0 %v4288, 64
        %v4306 = vpop.permute.xlu0 %4305
        %4307 = vrot.lane.b32.xlu0 %v4289, 64
        %v4308 = vpop.permute.xlu0 %4307
        %4309 = vrot.lane.b32.xlu0 %v4290, 64
        %v4310 = vpop.permute.xlu0 %4309
        %4311 = vrot.lane.b32.xlu0 %v4291, 64
        %v4312 = vpop.permute.xlu0 %4311
        %4313 = vrot.lane.b32.xlu0 %v4292, 64
        %v4314 = vpop.permute.xlu0 %4313
        %4315 = vrot.lane.b32.xlu0 %v4293, 64
        %v4316 = vpop.permute.xlu0 %4315
        %4317 = vrot.lane.b32.xlu0 %v4294, 64
        %v4318 = vpop.permute.xlu0 %4317
        %4327 = vst.msk [vmem:[#allocation4 + $0x8] sm:$0xff] %vm2954, %v4304
        %4328 = vst.msk [vmem:[#allocation4 + $0x20] sm:$0xff] %vm2954, %v4306
        %4329 = vst.msk [vmem:[#allocation4 + $0x38] sm:$0xff] %vm2954, %v4308
        %4330 = vst.msk [vmem:[#allocation4 + $0x50] sm:$0xff] %vm2954, %v4310
        %4331 = vst.msk [vmem:[#allocation4 + $0x68] sm:$0xff] %vm2954, %v4312
        %4332 = vst.msk [vmem:[#allocation4 + $0x80] sm:$0xff] %vm2954, %v4314
        %4333 = vst.msk [vmem:[#allocation4 + $0x98] sm:$0xff] %vm2954, %v4316
        %4334 = vst.msk [vmem:[#allocation4 + $0xb0] sm:$0xff] %vm2954, %v4318
        %v4335 = vld [vmem:[%s4286 + $0x1] sm:$0xff]
        %v4336 = vld [vmem:[%s4286 + $0x11] sm:$0xff]
        %v4337 = vld [vmem:[%s4286 + $0x21] sm:$0xff]
        %v4338 = vld [vmem:[%s4286 + $0x31] sm:$0xff]
        %v4339 = vld [vmem:[%s4286 + $0x41] sm:$0xff]
        %v4340 = vld [vmem:[%s4286 + $0x51] sm:$0xff]
        %v4341 = vld [vmem:[%s4286 + $0x61] sm:$0xff]
        %v4342 = vld [vmem:[%s4286 + $0x71] sm:$0xff]
        %4351 = vrot.lane.b32.xlu0 %v4335, 96
        %v4352 = vpop.permute.xlu0 %4351
        %4353 = vrot.lane.b32.xlu0 %v4336, 96
        %v4354 = vpop.permute.xlu0 %4353
        %4355 = vrot.lane.b32.xlu0 %v4337, 96
        %v4356 = vpop.permute.xlu0 %4355
        %4357 = vrot.lane.b32.xlu0 %v4338, 96
        %v4358 = vpop.permute.xlu0 %4357
        %4359 = vrot.lane.b32.xlu0 %v4339, 96
        %v4360 = vpop.permute.xlu0 %4359
        %4361 = vrot.lane.b32.xlu0 %v4340, 96
        %v4362 = vpop.permute.xlu0 %4361
        %4363 = vrot.lane.b32.xlu0 %v4341, 96
        %v4364 = vpop.permute.xlu0 %4363
        %4365 = vrot.lane.b32.xlu0 %v4342, 96
        %v4366 = vpop.permute.xlu0 %4365
        %4375 = vst.msk [vmem:[#allocation4 + $0x8] sm:$0xff] %vm3003, %v4352
        %4376 = vst.msk [vmem:[#allocation4 + $0x20] sm:$0xff] %vm3003, %v4354
        %4377 = vst.msk [vmem:[#allocation4 + $0x38] sm:$0xff] %vm3003, %v4356
        %4378 = vst.msk [vmem:[#allocation4 + $0x50] sm:$0xff] %vm3003, %v4358
        %4379 = vst.msk [vmem:[#allocation4 + $0x68] sm:$0xff] %vm3003, %v4360
        %4380 = vst.msk [vmem:[#allocation4 + $0x80] sm:$0xff] %vm3003, %v4362
        %4381 = vst.msk [vmem:[#allocation4 + $0x98] sm:$0xff] %vm3003, %v4364
        %4382 = vst.msk [vmem:[#allocation4 + $0xb0] sm:$0xff] %vm3003, %v4366
        %v4383 = vld [vmem:[%s4286 + $0x2] sm:$0xff]
        %v4384 = vld [vmem:[%s4286 + $0x12] sm:$0xff]
        %v4385 = vld [vmem:[%s4286 + $0x22] sm:$0xff]
        %v4386 = vld [vmem:[%s4286 + $0x32] sm:$0xff]
        %v4387 = vld [vmem:[%s4286 + $0x42] sm:$0xff]
        %v4388 = vld [vmem:[%s4286 + $0x52] sm:$0xff]
        %v4389 = vld [vmem:[%s4286 + $0x62] sm:$0xff]
        %v4390 = vld [vmem:[%s4286 + $0x72] sm:$0xff]
        %4391 = vst.msk [vmem:[#allocation4 + $0x10] sm:$0xff] %vm254, %v4383
        %4392 = vst.msk [vmem:[#allocation4 + $0x28] sm:$0xff] %vm254, %v4384
        %4393 = vst.msk [vmem:[#allocation4 + $0x40] sm:$0xff] %vm254, %v4385
        %4394 = vst.msk [vmem:[#allocation4 + $0x58] sm:$0xff] %vm254, %v4386
        %4395 = vst.msk [vmem:[#allocation4 + $0x70] sm:$0xff] %vm254, %v4387
        %4396 = vst.msk [vmem:[#allocation4 + $0x88] sm:$0xff] %vm254, %v4388
        %4397 = vst.msk [vmem:[#allocation4 + $0xa0] sm:$0xff] %vm254, %v4389
        %4398 = vst.msk [vmem:[#allocation4 + $0xb8] sm:$0xff] %vm254, %v4390
        %v4399 = vld [vmem:[#allocation4] sm:$0xff]
        %v4400 = vld [vmem:[#allocation4 + $0x8] sm:$0xff]
        %v4401 = vld [vmem:[#allocation4 + $0x10] sm:$0xff]
        %v4402 = vld [vmem:[#allocation4 + $0x18] sm:$0xff]
        %v4403 = vld [vmem:[#allocation4 + $0x20] sm:$0xff]
        %v4404 = vld [vmem:[#allocation4 + $0x28] sm:$0xff]
        %v4405 = vld [vmem:[#allocation4 + $0x30] sm:$0xff]
        %v4406 = vld [vmem:[#allocation4 + $0x38] sm:$0xff]
        %v4407 = vld [vmem:[#allocation4 + $0x40] sm:$0xff]
        %v4408 = vld [vmem:[#allocation4 + $0x48] sm:$0xff]
        %v4409 = vld [vmem:[#allocation4 + $0x50] sm:$0xff]
        %v4410 = vld [vmem:[#allocation4 + $0x58] sm:$0xff]
        %v4411 = vld [vmem:[#allocation4 + $0x60] sm:$0xff]
        %v4412 = vld [vmem:[#allocation4 + $0x68] sm:$0xff]
        %v4413 = vld [vmem:[#allocation4 + $0x70] sm:$0xff]
        %v4414 = vld [vmem:[#allocation4 + $0x78] sm:$0xff]
        %v4415 = vld [vmem:[#allocation4 + $0x80] sm:$0xff]
        %v4416 = vld [vmem:[#allocation4 + $0x88] sm:$0xff]
        %v4417 = vld [vmem:[#allocation4 + $0x90] sm:$0xff]
        %v4418 = vld [vmem:[#allocation4 + $0x98] sm:$0xff]
        %v4419 = vld [vmem:[#allocation4 + $0xa0] sm:$0xff]
        %v4420 = vld [vmem:[#allocation4 + $0xa8] sm:$0xff]
        %v4421 = vld [vmem:[#allocation4 + $0xb0] sm:$0xff]
        %v4422 = vld [vmem:[#allocation4 + $0xb8] sm:$0xff]
        %s4423 = scalar_lea.vmem %s2, 288
        %v4424 = vld [vmem:[%s4423] sm:$0xff]
        %v4425 = vld [vmem:[%s4423 + $0x8] sm:$0xff]
        %v4426 = vld [vmem:[%s4423 + $0x10] sm:$0xff]
        %v4427 = vld [vmem:[%s4423 + $0x18] sm:$0xff]
        %v4428 = vld [vmem:[%s4423 + $0x20] sm:$0xff]
        %v4429 = vld [vmem:[%s4423 + $0x28] sm:$0xff]
        %v4430 = vld [vmem:[%s4423 + $0x30] sm:$0xff]
        %v4431 = vld [vmem:[%s4423 + $0x38] sm:$0xff]
        %v4432 = vld [vmem:[%s4423 + $0x40] sm:$0xff]
        %v4433 = vld [vmem:[%s4423 + $0x48] sm:$0xff]
        %v4434 = vld [vmem:[%s4423 + $0x50] sm:$0xff]
        %v4435 = vld [vmem:[%s4423 + $0x58] sm:$0xff]
        %v4436 = vld [vmem:[%s4423 + $0x60] sm:$0xff]
        %v4437 = vld [vmem:[%s4423 + $0x68] sm:$0xff]
        %v4438 = vld [vmem:[%s4423 + $0x70] sm:$0xff]
        %v4439 = vld [vmem:[%s4423 + $0x78] sm:$0xff]
        %v4440 = vld [vmem:[%s4423 + $0x80] sm:$0xff]
        %v4441 = vld [vmem:[%s4423 + $0x88] sm:$0xff]
        %v4442 = vld [vmem:[%s4423 + $0x90] sm:$0xff]
        %v4443 = vld [vmem:[%s4423 + $0x98] sm:$0xff]
        %v4444 = vld [vmem:[%s4423 + $0xa0] sm:$0xff]
        %v4445 = vld [vmem:[%s4423 + $0xa8] sm:$0xff]
        %v4446 = vld [vmem:[%s4423 + $0xb0] sm:$0xff]
        %v4447 = vld [vmem:[%s4423 + $0xb8] sm:$0xff]
        %v4448 = vld [vmem:[%s4423 + $0xc0] sm:$0xff]
        %v4449 = vld [vmem:[%s4423 + $0xc8] sm:$0xff]
        %v4450 = vld [vmem:[%s4423 + $0xd0] sm:$0xff]
        %v4451 = vld [vmem:[%s4423 + $0xd8] sm:$0xff]
        %v4452 = vld [vmem:[%s4423 + $0xe0] sm:$0xff]
        %v4453 = vld [vmem:[%s4423 + $0xe8] sm:$0xff]
        %v4454 = vld [vmem:[%s4423 + $0xf0] sm:$0xff]
        %v4455 = vld [vmem:[%s4423 + $0xf8] sm:$0xff]
        %v4456 = vld [vmem:[%s4423 + $0x100] sm:$0xff]
        %v4457 = vld [vmem:[%s4423 + $0x108] sm:$0xff]
        %v4458 = vld [vmem:[%s4423 + $0x110] sm:$0xff]
        %v4459 = vld [vmem:[%s4423 + $0x118] sm:$0xff]
        %v4461 = vsel %vm254, %v4401, 0
        %v4464 = vsel %vm254, %v4404, 0
        %v4467 = vsel %vm254, %v4407, 0
        %v4470 = vsel %vm254, %v4410, 0
        %v4473 = vsel %vm254, %v4413, 0
        %v4476 = vsel %vm254, %v4416, 0
        %v4479 = vsel %vm254, %v4419, 0
        %v4482 = vsel %vm254, %v4422, 0
        %4484 = vmatprep.subr.mxu0 0.0
        %4485 = vmatpush1.msra.mxu0 %v4424
        %4486 = vmatprep.subr.mxu0 0.0
        %4487 = vmatpush1.msra.mxu0 %v4425
        %4488 = vmatprep.subr.mxu0 0.0
        %4489 = vmatpush1.msra.mxu0 %v4426
        %4490 = vmatprep.subr.mxu0 0.0
        %4491 = vmatpush1.msra.mxu0 %v4427
        %4492 = vmatprep.subr.mxu0 0.0
        %4493 = vmatpush1.msra.mxu0 %v4428
        %4494 = vmatprep.subr.mxu0 0.0
        %4495 = vmatpush1.msra.mxu0 %v4429
        %4496 = vmatprep.subr.mxu0 0.0
        %4497 = vmatpush1.msra.mxu0 %v4430
        %4498 = vmatprep.subr.mxu0 0.0
        %4499 = vmatpush1.msra.mxu0 %v4431
        %4500 = vmatprep.subr.mxu0 0.0
        %4501 = vmatpush1.msra.mxu0 %v4432
        %4502 = vmatprep.subr.mxu0 0.0
        %4503 = vmatpush1.msra.mxu0 %v4433
        %4504 = vmatprep.subr.mxu0 0.0
        %4505 = vmatpush1.msra.mxu0 %v4434
        %4506 = vmatprep.subr.mxu0 0.0
        %4507 = vmatpush1.msra.mxu0 %v4435
        %4508 = vmatprep.subr.mxu0 0.0
        %4509 = vmatpush1.msra.mxu0 %v4436
        %4510 = vmatprep.subr.mxu0 0.0
        %4511 = vmatpush1.msra.mxu0 %v4437
        %4512 = vmatprep.subr.mxu0 0.0
        %4513 = vmatpush1.msra.mxu0 %v4438
        %4514 = vmatprep.subr.mxu0 0.0
        %4515 = vmatpush1.msra.mxu0 %v4439
        %4516 = vmatprep.subr.mxu0 0.0
        %4517 = vmatpush1.msra.mxu0 %v4440
        %4518 = vmatprep.subr.mxu0 0.0
        %4519 = vmatpush1.msra.mxu0 %v4441
        %4520 = vmatprep.subr.mxu0 0.0
        %4521 = vmatpush1.msra.mxu0 %v4442
        %4522 = vmatprep.subr.mxu0 0.0
        %4523 = vmatpush1.msra.mxu0 %v4443
        %4524 = vmatprep.subr.mxu0 0.0
        %4525 = vmatpush1.msra.mxu0 %v4444
        %4526 = vmatprep.subr.mxu0 0.0
        %4527 = vmatpush1.msra.mxu0 %v4445
        %4528 = vmatprep.subr.mxu0 0.0
        %4529 = vmatpush1.msra.mxu0 %v4446
        %4530 = vmatprep.subr.mxu0 0.0
        %4531 = vmatpush1.msra.mxu0 %v4447
        %4532 = vmatprep.subr.mxu0 0.0
        %4533 = vmatpush1.msra.mxu0 %v4448
        %4534 = vmatprep.subr.mxu0 0.0
        %4535 = vmatpush1.msra.mxu0 %v4449
        %4536 = vmatprep.subr.mxu0 0.0
        %4537 = vmatpush1.msra.mxu0 %v4450
        %4538 = vmatprep.subr.mxu0 0.0
        %4539 = vmatpush1.msra.mxu0 %v4451
        %4540 = vmatprep.subr.mxu0 0.0
        %4541 = vmatpush1.msra.mxu0 %v4452
        %4542 = vmatprep.subr.mxu0 0.0
        %4543 = vmatpush1.msra.mxu0 %v4453
        %4544 = vmatprep.subr.mxu0 0.0
        %4545 = vmatpush1.msra.mxu0 %v4454
        %4546 = vmatprep.subr.mxu0 0.0
        %4547 = vmatpush1.msra.mxu0 %v4455
        %4548 = vmatprep.mubr.f32.mxu0 %v4400
        %4549 = vmatmul.mubr.f32.gmra.mrb[0].mxu0 %v4399
        %v4550 = vpop.f32.mrb[0].mxu0
        %v4551 = vadd.f32 0.0, %v4550
        %v4552 = vpop.f32.mrb[0].mxu0
        %4553 = vmatprep.mubr.f32.mxu0 %v4403
        %4554 = vmatmul.mubr.f32.gmra.mrb[0].mxu0 %v4402
        %v4555 = vpop.f32.mrb[0].mxu0
        %v4556 = vadd.f32 0.0, %v4555
        %v4557 = vpop.f32.mrb[0].mxu0
        %4558 = vmatprep.mubr.f32.mxu0 %v4406
        %4559 = vmatmul.mubr.f32.gmra.mrb[0].mxu0 %v4405
        %v4560 = vpop.f32.mrb[0].mxu0
        %v4561 = vadd.f32 0.0, %v4560
        %v4562 = vpop.f32.mrb[0].mxu0
        %4563 = vmatprep.mubr.f32.mxu0 %v4409
        %4564 = vmatmul.mubr.f32.gmra.mrb[0].mxu0 %v4408
        %v4565 = vpop.f32.mrb[0].mxu0
        %v4566 = vadd.f32 0.0, %v4565
        %v4567 = vpop.f32.mrb[0].mxu0
        %4568 = vmatprep.mubr.f32.mxu0 %v4412
        %4569 = vmatmul.mubr.f32.gmra.mrb[0].mxu0 %v4411
        %v4570 = vpop.f32.mrb[0].mxu0
        %v4571 = vadd.f32 0.0, %v4570
        %v4572 = vpop.f32.mrb[0].mxu0
        %4573 = vmatprep.mubr.f32.mxu0 %v4415
        %4574 = vmatmul.mubr.f32.gmra.mrb[0].mxu0 %v4414
        %v4575 = vpop.f32.mrb[0].mxu0
        %v4576 = vadd.f32 0.0, %v4575
        %v4577 = vpop.f32.mrb[0].mxu0
        %4578 = vmatprep.mubr.f32.mxu0 %v4418
        %4579 = vmatmul.mubr.f32.gmra.mrb[0].mxu0 %v4417
        %v4580 = vpop.f32.mrb[0].mxu0
        %v4581 = vadd.f32 0.0, %v4580
        %v4582 = vpop.f32.mrb[0].mxu0
        %4583 = vmatprep.mubr.f32.mxu0 %v4421
        %4584 = vmatmul.mubr.f32.gmra.mrb[0].mxu0 %v4420
        %v4585 = vpop.f32.mrb[0].mxu0
        %v4586 = vadd.f32 0.0, %v4585
        %v4587 = vpop.f32.mrb[0].mxu0
        %4588 = vdwg.mxu0
        %4589 = vmatprep.subr.mxu0 0.0
        %4590 = vmatpush1.msra.mxu0 %v4456
        %4591 = vmatprep.subr.mxu0 0.0
        %4592 = vmatpush1.msra.mxu0 %v4457
        %4593 = vmatprep.subr.mxu0 0.0
        %4594 = vmatpush1.msra.mxu0 %v4458
        %4595 = vmatprep.subr.mxu0 0.0
        %4596 = vmatpush1.msra.mxu0 %v4459
        %4597 = vmatprep.subr.mxu0 0.0
        %4598 = vmatpush1.msra.mxu0 0.0
        %4599 = vmatprep.subr.mxu0 0.0
        %4600 = vmatpush1.msra.mxu0 0.0
        %4601 = vmatprep.subr.mxu0 0.0
        %4602 = vmatpush1.msra.mxu0 0.0
        %4603 = vmatprep.subr.mxu0 0.0
        %4604 = vmatpush1.msra.mxu0 0.0
        %4605 = vmatprep.subr.mxu0 0.0
        %4606 = vmatpush1.msra.mxu0 0.0
        %4607 = vmatprep.subr.mxu0 0.0
        %4608 = vmatpush1.msra.mxu0 0.0
        %4609 = vmatprep.subr.mxu0 0.0
        %4610 = vmatpush1.msra.mxu0 0.0
        %4611 = vmatprep.subr.mxu0 0.0
        %4612 = vmatpush1.msra.mxu0 0.0
        %4613 = vmatprep.subr.mxu0 0.0
        %4614 = vmatpush1.msra.mxu0 0.0
        %4615 = vmatprep.subr.mxu0 0.0
        %4616 = vmatpush1.msra.mxu0 0.0
        %4617 = vmatprep.subr.mxu0 0.0
        %4618 = vmatpush1.msra.mxu0 0.0
        %4619 = vmatprep.subr.mxu0 0.0
        %4620 = vmatpush1.msra.mxu0 0.0
        %4621 = vmatprep.subr.mxu0 0.0
        %4622 = vmatpush1.msra.mxu0 0.0
        %4623 = vmatprep.subr.mxu0 0.0
        %4624 = vmatpush1.msra.mxu0 0.0
        %4625 = vmatprep.subr.mxu0 0.0
        %4626 = vmatpush1.msra.mxu0 0.0
        %4627 = vmatprep.subr.mxu0 0.0
        %4628 = vmatpush1.msra.mxu0 0.0
        %4629 = vmatprep.subr.mxu0 0.0
        %4630 = vmatpush1.msra.mxu0 0.0
        %4631 = vmatprep.subr.mxu0 0.0
        %4632 = vmatpush1.msra.mxu0 0.0
        %4633 = vmatprep.subr.mxu0 0.0
        %4634 = vmatpush1.msra.mxu0 0.0
        %4635 = vmatprep.subr.mxu0 0.0
        %4636 = vmatpush1.msra.mxu0 0.0
        %4637 = vmatprep.subr.mxu0 0.0
        %4638 = vmatpush1.msra.mxu0 0.0
        %4639 = vmatprep.subr.mxu0 0.0
        %4640 = vmatpush1.msra.mxu0 0.0
        %4641 = vmatprep.subr.mxu0 0.0
        %4642 = vmatpush1.msra.mxu0 0.0
        %4643 = vmatprep.subr.mxu0 0.0
        %4644 = vmatpush1.msra.mxu0 0.0
        %4645 = vmatprep.subr.mxu0 0.0
        %4646 = vmatpush1.msra.mxu0 0.0
        %4647 = vmatprep.subr.mxu0 0.0
        %4648 = vmatpush1.msra.mxu0 0.0
        %4649 = vmatprep.subr.mxu0 0.0
        %4650 = vmatpush1.msra.mxu0 0.0
        %4651 = vmatprep.subr.mxu0 0.0
        %4652 = vmatpush1.msra.mxu0 0.0
        %4653 = vmatprep.mubr.f32.mxu0 0.0
        %4654 = vmatmul.mubr.f32.gmra.mrb[0].mxu0 %v4461
        %v4655 = vpop.f32.mrb[0].mxu0
        %v4656 = vadd.f32 %v4551, %v4655
        %v4657 = vpop.f32.mrb[0].mxu0
        %4658 = vmatprep.mubr.f32.mxu0 0.0
        %4659 = vmatmul.mubr.f32.gmra.mrb[0].mxu0 %v4464
        %v4660 = vpop.f32.mrb[0].mxu0
        %v4661 = vadd.f32 %v4556, %v4660
        %v4662 = vpop.f32.mrb[0].mxu0
        %4663 = vmatprep.mubr.f32.mxu0 0.0
        %4664 = vmatmul.mubr.f32.gmra.mrb[0].mxu0 %v4467
        %v4665 = vpop.f32.mrb[0].mxu0
        %v4666 = vadd.f32 %v4561, %v4665
        %v4667 = vpop.f32.mrb[0].mxu0
        %4668 = vmatprep.mubr.f32.mxu0 0.0
        %4669 = vmatmul.mubr.f32.gmra.mrb[0].mxu0 %v4470
        %v4670 = vpop.f32.mrb[0].mxu0
        %v4671 = vadd.f32 %v4566, %v4670
        %v4672 = vpop.f32.mrb[0].mxu0
        %4673 = vmatprep.mubr.f32.mxu0 0.0
        %4674 = vmatmul.mubr.f32.gmra.mrb[0].mxu0 %v4473
        %v4675 = vpop.f32.mrb[0].mxu0
        %v4676 = vadd.f32 %v4571, %v4675
        %v4677 = vpop.f32.mrb[0].mxu0
        %4678 = vmatprep.mubr.f32.mxu0 0.0
        %4679 = vmatmul.mubr.f32.gmra.mrb[0].mxu0 %v4476
        %v4680 = vpop.f32.mrb[0].mxu0
        %v4681 = vadd.f32 %v4576, %v4680
        %v4682 = vpop.f32.mrb[0].mxu0
        %4683 = vmatprep.mubr.f32.mxu0 0.0
        %4684 = vmatmul.mubr.f32.gmra.mrb[0].mxu0 %v4479
        %v4685 = vpop.f32.mrb[0].mxu0
        %v4686 = vadd.f32 %v4581, %v4685
        %v4687 = vpop.f32.mrb[0].mxu0
        %4688 = vmatprep.mubr.f32.mxu0 0.0
        %4689 = vmatmul.mubr.f32.gmra.mrb[0].mxu0 %v4482
        %v4690 = vpop.f32.mrb[0].mxu0
        %v4691 = vadd.f32 %v4586, %v4690
        %v4692 = vpop.f32.mrb[0].mxu0
        %4693 = vdwg.mxu0
        %s4694 = scalar_lea.vmem %s3, 32
        %v4695 = vld [vmem:[%s4694] sm:$0xff]
        %v4696 = vld [vmem:[%s4694 + $0x8] sm:$0xff]
        %v4697 = vld [vmem:[%s4694 + $0x10] sm:$0xff]
        %v4698 = vld [vmem:[%s4694 + $0x18] sm:$0xff]
        %v4699 = vlaneseq
        %v4700 = vshrl.u32 %v4699, 7
        %v4701 = vsub.s32 2, %v4700
        %v4702 = vrot.slane %v252, %v4701
        %v4704 = vsel %vm254, %v4656, 0
        %v4707 = vsel %vm254, %v4661, 0
        %v4710 = vsel %vm254, %v4666, 0
        %v4713 = vsel %vm254, %v4671, 0
        %v4716 = vsel %vm254, %v4676, 0
        %v4719 = vsel %vm254, %v4681, 0
        %v4722 = vsel %vm254, %v4686, 0
        %v4725 = vsel %vm254, %v4691, 0
        %4727 = vmatprep.subr.mxu0 0.0
        %4728 = vmatpush1.msra.mxu0 %v4695
        %4729 = vmatprep.subr.mxu0 0.0
        %4730 = vmatpush1.msra.mxu0 %v4696
        %4731 = vmatprep.subr.mxu0 0.0
        %4732 = vmatpush1.msra.mxu0 %v4697
        %4733 = vmatprep.subr.mxu0 0.0
        %4734 = vmatpush1.msra.mxu0 %v4698
        %4735 = vmatprep.subr.mxu0 0.0
        %4736 = vmatpush1.msra.mxu0 0.0
        %4737 = vmatprep.subr.mxu0 0.0
        %4738 = vmatpush1.msra.mxu0 0.0
        %4739 = vmatprep.subr.mxu0 0.0
        %4740 = vmatpush1.msra.mxu0 0.0
        %4741 = vmatprep.subr.mxu0 0.0
        %4742 = vmatpush1.msra.mxu0 0.0
        %4743 = vmatprep.subr.mxu0 0.0
        %4744 = vmatpush1.msra.mxu0 0.0
        %4745 = vmatprep.subr.mxu0 0.0
        %4746 = vmatpush1.msra.mxu0 0.0
        %4747 = vmatprep.subr.mxu0 0.0
        %4748 = vmatpush1.msra.mxu0 0.0
        %4749 = vmatprep.subr.mxu0 0.0
        %4750 = vmatpush1.msra.mxu0 0.0
        %4751 = vmatprep.subr.mxu0 0.0
        %4752 = vmatpush1.msra.mxu0 0.0
        %4753 = vmatprep.subr.mxu0 0.0
        %4754 = vmatpush1.msra.mxu0 0.0
        %4755 = vmatprep.subr.mxu0 0.0
        %4756 = vmatpush1.msra.mxu0 0.0
        %4757 = vmatprep.subr.mxu0 0.0
        %4758 = vmatpush1.msra.mxu0 0.0
        %4759 = vmatprep.subr.mxu0 0.0
        %4760 = vmatpush1.msra.mxu0 0.0
        %4761 = vmatprep.subr.mxu0 0.0
        %4762 = vmatpush1.msra.mxu0 0.0
        %4763 = vmatprep.subr.mxu0 0.0
        %4764 = vmatpush1.msra.mxu0 0.0
        %4765 = vmatprep.subr.mxu0 0.0
        %4766 = vmatpush1.msra.mxu0 0.0
        %4767 = vmatprep.subr.mxu0 0.0
        %4768 = vmatpush1.msra.mxu0 0.0
        %4769 = vmatprep.subr.mxu0 0.0
        %4770 = vmatpush1.msra.mxu0 0.0
        %4771 = vmatprep.subr.mxu0 0.0
        %4772 = vmatpush1.msra.mxu0 0.0
        %4773 = vmatprep.subr.mxu0 0.0
        %4774 = vmatpush1.msra.mxu0 0.0
        %4775 = vmatprep.subr.mxu0 0.0
        %4776 = vmatpush1.msra.mxu0 0.0
        %4777 = vmatprep.subr.mxu0 0.0
        %4778 = vmatpush1.msra.mxu0 0.0
        %4779 = vmatprep.subr.mxu0 0.0
        %4780 = vmatpush1.msra.mxu0 0.0
        %4781 = vmatprep.subr.mxu0 0.0
        %4782 = vmatpush1.msra.mxu0 0.0
        %4783 = vmatprep.subr.mxu0 0.0
        %4784 = vmatpush1.msra.mxu0 0.0
        %4785 = vmatprep.subr.mxu0 0.0
        %4786 = vmatpush1.msra.mxu0 0.0
        %4787 = vmatprep.subr.mxu0 0.0
        %4788 = vmatpush1.msra.mxu0 0.0
        %4789 = vmatprep.subr.mxu0 0.0
        %4790 = vmatpush1.msra.mxu0 0.0
        %4791 = vmatprep.mubr.f32.mxu0 0.0
        %4792 = vmatmul.mubr.f32.gmra.mrb[0].mxu0 %v4704
        %v4793 = vpop.f32.mrb[0].mxu0
        %v4794 = vadd.f32 %v4702, %v4793
        %v4795 = vpop.f32.mrb[0].mxu0
        %4796 = vmatprep.mubr.f32.mxu0 0.0
        %4797 = vmatmul.mubr.f32.gmra.mrb[0].mxu0 %v4707
        %v4798 = vpop.f32.mrb[0].mxu0
        %v4799 = vadd.f32 %v4702, %v4798
        %v4800 = vpop.f32.mrb[0].mxu0
        %4801 = vmatprep.mubr.f32.mxu0 0.0
        %4802 = vmatmul.mubr.f32.gmra.mrb[0].mxu0 %v4710
        %v4803 = vpop.f32.mrb[0].mxu0
        %v4804 = vadd.f32 %v4702, %v4803
        %v4805 = vpop.f32.mrb[0].mxu0
        %4806 = vmatprep.mubr.f32.mxu0 0.0
        %4807 = vmatmul.mubr.f32.gmra.mrb[0].mxu0 %v4713
        %v4808 = vpop.f32.mrb[0].mxu0
        %v4809 = vadd.f32 %v4702, %v4808
        %v4810 = vpop.f32.mrb[0].mxu0
        %4811 = vmatprep.mubr.f32.mxu0 0.0
        %4812 = vmatmul.mubr.f32.gmra.mrb[0].mxu0 %v4716
        %v4813 = vpop.f32.mrb[0].mxu0
        %v4814 = vadd.f32 %v4702, %v4813
        %v4815 = vpop.f32.mrb[0].mxu0
        %4816 = vmatprep.mubr.f32.mxu0 0.0
        %4817 = vmatmul.mubr.f32.gmra.mrb[0].mxu0 %v4719
        %v4818 = vpop.f32.mrb[0].mxu0
        %v4819 = vadd.f32 %v4702, %v4818
        %v4820 = vpop.f32.mrb[0].mxu0
        %4821 = vmatprep.mubr.f32.mxu0 0.0
        %4822 = vmatmul.mubr.f32.gmra.mrb[0].mxu0 %v4722
        %v4823 = vpop.f32.mrb[0].mxu0
        %v4824 = vadd.f32 %v4702, %v4823
        %v4825 = vpop.f32.mrb[0].mxu0
        %4826 = vmatprep.mubr.f32.mxu0 0.0
        %4827 = vmatmul.mubr.f32.gmra.mrb[0].mxu0 %v4725
        %v4828 = vpop.f32.mrb[0].mxu0
        %v4829 = vadd.f32 %v4702, %v4828
        %v4830 = vpop.f32.mrb[0].mxu0
        %4831 = vdwg.mxu0
        %v4832 = vadd.f32 %v4794, %v3583
        %v4833 = vadd.f32 %v4799, %v3588
        %v4834 = vadd.f32 %v4804, %v3593
        %v4835 = vadd.f32 %v4809, %v3598
        %v4836 = vadd.f32 %v4814, %v3603
        %v4837 = vadd.f32 %v4819, %v3608
        %v4838 = vadd.f32 %v4824, %v3613
        %v4839 = vadd.f32 %v4829, %v3618
        %vm4840 = vcmp.ge.f32.partialorder %v4832, 0.0
        %vm4841 = vcmp.ge.f32.partialorder %v4833, 0.0
        %vm4842 = vcmp.ge.f32.partialorder %v4834, 0.0
        %vm4843 = vcmp.ge.f32.partialorder %v4835, 0.0
        %vm4844 = vcmp.ge.f32.partialorder %v4836, 0.0
        %vm4845 = vcmp.ge.f32.partialorder %v4837, 0.0
        %vm4846 = vcmp.ge.f32.partialorder %v4838, 0.0
        %vm4847 = vcmp.ge.f32.partialorder %v4839, 0.0
        %v4848 = vlaneseq
        %v4849 = vshrl.u32 %v4848, 7
        %v4850 = vsub.s32 2, %v4849
        %v4851 = vrot.slane %v253, %v4850
        %v4852 = vmul.f32 %v4832, %v4851
        %v4853 = vmul.f32 %v4833, %v4851
        %v4854 = vmul.f32 %v4834, %v4851
        %v4855 = vmul.f32 %v4835, %v4851
        %v4856 = vmul.f32 %v4836, %v4851
        %v4857 = vmul.f32 %v4837, %v4851
        %v4858 = vmul.f32 %v4838, %v4851
        %v4859 = vmul.f32 %v4839, %v4851
        %v4860 = vsel %vm4840, %v4832, %v4852
        %v4861 = vsel %vm4841, %v4833, %v4853
        %v4862 = vsel %vm4842, %v4834, %v4854
        %v4863 = vsel %vm4843, %v4835, %v4855
        %v4864 = vsel %vm4844, %v4836, %v4856
        %v4865 = vsel %vm4845, %v4837, %v4857
        %v4866 = vsel %vm4846, %v4838, %v4858
        %v4867 = vsel %vm4847, %v4839, %v4859
        %4868 = vst.msk [vmem:[%s244] sm:$0xff] %vm254, %v4860
        %4869 = vst.msk [vmem:[%s244 + $0x8] sm:$0xff] %vm254, %v4861
        %4870 = vst.msk [vmem:[%s244 + $0x10] sm:$0xff] %vm254, %v4862
        %4871 = vst.msk [vmem:[%s244 + $0x18] sm:$0xff] %vm254, %v4863
        %4872 = vst.msk [vmem:[%s244 + $0x20] sm:$0xff] %vm254, %v4864
        %4873 = vst.msk [vmem:[%s244 + $0x28] sm:$0xff] %vm254, %v4865
        %4874 = vst.msk [vmem:[%s244 + $0x30] sm:$0xff] %vm254, %v4866
        %4875 = vst.msk [vmem:[%s244 + $0x38] sm:$0xff] %vm254, %v4867
        %s4876 = sand.u32 %s159, 1
        %s4877 = scalar_lea.sflag [#allocation6], %s4876
        %s4878 = sand.u32 %s159, 1
        %s4879 = smul.addr %s4878, 64
        %s4880 = scalar_lea.vmem [#allocation5], %s4879
        // Predicated region
        $region45: #{head_block_pallas.1} parent=43 // pred_check
          %p4881 = pneg %p169
        $region46: #{head_block_pallas.1} parent=43 // pred_check_branch
          %4883 = sbr.rel (%p4881) target = $region48
        $region47: #{head_block_pallas.1} parent=43 // pred_region
          %s4885 = ssub.s32 1024, 1024
          %4886 = vsyncadd %s4877, %s4885
          %s4887 = smul.addr %s20, 8
          %s4888 = smul.addr %s4887, 128
          %s4889 = scalar_lea.hbm %s6, %s4888
          %s4890 = sshll.u32 %s4880, 4
          %s4891 = int_to_ptr.vmem [resolvable:$true] %s4890
          %4896 = dma.vmem_to_hbm [thread:$0]  %s4891, 1024, %s4889, %s4877, 128, 128, 8
        $region48: #{head_block_pallas.1} parent=43 // pred_fallthru
          _
      $region44: #{head_block_pallas.1} parent=5 // pred_fallthru
        _
      %p4897 = scmp.le.s32.totalorder 2, %s15
      // Predicated region
      $region49: #{head_block_pallas.1} parent=5 // pred_check
        %p4898 = pneg %p4897
      $region50: #{head_block_pallas.1} parent=5 // pred_check_branch
        %4900 = sbr.rel (%p4898) target = $region52
      $region51: #{head_block_pallas.1} parent=5 // pred_region
        %s4901 = ssub.s32 %s15, 2
        // Predicated region
        $region53: #{head_block_pallas.1} parent=51 // pred_check
          %p4902 = pneg %p175
        $region54: #{head_block_pallas.1} parent=51 // pred_check_branch
          %4904 = sbr.rel (%p4902) target = $region56
        $region55: #{head_block_pallas.1} parent=51 // pred_region
          %s4905 = sand.u32 %s160, 1
          %s4906 = scalar_lea.sflag [#allocation6], %s4905
          %s4907 = sand.u32 %s160, 1
          %s4908 = smul.addr %s4907, 64
          %s4909 = scalar_lea.vmem [#allocation5], %s4908
          %4910 = dma.done %s4906, 1024
        $region56: #{head_block_pallas.1} parent=51 // pred_fallthru
          _
      $region52: #{head_block_pallas.1} parent=5 // pred_fallthru
        _
    $region6: #{head_block_pallas.1} parent=1 // loop_footer
      %s19 = sadd.s32 1, %s15
    $region7: #{head_block_pallas.1} parent=1 // loop_footer_branch
      %14 = sbr.rel target = $region3
    $region8: #{head_block_pallas.1} parent=1 // loop_exit
      _
    %4911 = vsyncpa [#allocation6], 1
    %s4912 = scalar_lea.sflag [#allocation6], 1
    %4913 = vsyncpa %s4912, 1

</llo_original>
